<compile_context>
chip_gen: v7x
topology: tpu7x:2x2x1
jax: 0.10.0
libtpu: 0.0.40
codegen_flags: <defaults>
</compile_context>

<pallas_src>
import jax
import jax.numpy as jnp
from jax.experimental import pallas as pl
from jax.experimental.pallas import tpu as pltpu

NEG_SLOPE = 0.01   # nn.LeakyReLU default
BN_EPS = 1e-5      # nn.BatchNorm3d default


def _pad8(c):
    return ((c + 7) // 8) * 8


def _make_convblock_kernel(Cin, Cout, D, H, W):
    P = D * H * W
    # Halo big enough for the largest flattened-index shift (H*W + W + 1),
    # rounded to a lane-tile multiple so the interior write stays aligned.
    HALO = ((H * W + W + 1 + 127) // 128) * 128
    Cp1 = _pad8(Cin)
    Cp2 = _pad8(Cout)

    def kernel(coord_ref, x_ref, w1_ref, s1_ref, b1_ref, w2_ref, s2_ref,
               b2_ref, o_ref, halo, col):
        # ---- per-lane (h, w) coordinates -> 9 shared boundary masks -------
        h = coord_ref[0:1, :]
        w = coord_ref[1:2, :]
        hm = [h >= 1, None, h <= H - 2]   # tap offsets -1, 0, +1
        wm = [w >= 1, None, w <= W - 2]

        def comb(a, b):
            if a is None:
                return b
            if b is None:
                return a
            return a & b

        # D-axis taps need no mask: the +-H*W shifts land in the zero halo.
        masks = [[comb(hm[i], wm[j]) for j in range(3)] for i in range(3)]

        def load_halo(val_bf16, c_data, c_tot):
            zh = jnp.zeros((c_tot, HALO), jnp.bfloat16)
            halo[0:c_tot, 0:HALO] = zh                          # left halo
            halo[0:c_tot, HALO + P:HALO + P + HALO] = zh        # right halo
            halo[0:c_data, HALO:HALO + P] = val_bf16            # interior
            if c_data < c_tot:                                  # channel pad
                halo[c_data:c_tot, HALO:HALO + P] = jnp.zeros(
                    (c_tot - c_data, P), jnp.bfloat16)

        def conv3x3x3(cp_in, w_ref):
            # kd-chunked im2col + MXU matmul with f32 accumulation; only
            # 9*cp_in bf16 rows of columns are live at a time.
            acc = None
            for kd in range(3):
                for t in range(9):
                    kh, kw = t // 3, t % 3
                    s = (kd - 1) * H * W + (kh - 1) * W + (kw - 1)
                    shifted = halo[0:cp_in, HALO + s:HALO + s + P]
                    m = masks[kh][kw]
                    val = shifted if m is None else jnp.where(
                        m, shifted, jnp.zeros_like(shifted))
                    col[t * cp_in:(t + 1) * cp_in, :] = val
                part = jnp.dot(w_ref[kd], col[0:9 * cp_in, :],
                               preferred_element_type=jnp.float32)
                acc = part if acc is None else acc + part
            return acc

        # ---- conv1 + folded BN1 + LeakyReLU -------------------------------
        load_halo(x_ref[0].astype(jnp.bfloat16), Cin, Cp1)
        y = conv3x3x3(Cp1, w1_ref)                 # (Cp2, P) f32, pad rows 0
        y = y * s1_ref[...] + b1_ref[...]
        y = jnp.where(y > 0, y, NEG_SLOPE * y)

        # TODO(synk): nn.Dropout in training mode (random mask) not
        # implemented; eval-mode dropout is identity, reproduced here.

        # ---- conv2 + folded BN2 + LeakyReLU (intermediate stays in VMEM) --
        load_halo(y.astype(jnp.bfloat16), Cp2, Cp2)
        y = conv3x3x3(Cp2, w2_ref)
        y = y * s2_ref[...] + b2_ref[...]
        y = jnp.where(y > 0, y, NEG_SLOPE * y)
        o_ref[0] = y[0:Cout, :].astype(o_ref.dtype)

    return kernel, P, HALO, Cp1, Cp2


@jax.jit
def conv_block_forward(x_ncdhw, params):
    """ConvBlock.forward (eval mode). Input/output layout: NCDHW (PyTorch)."""
    N, Cin, D, H, W = x_ncdhw.shape
    Cout = params["s1"].shape[0]
    kernel, P, HALO, Cp1, Cp2 = _make_convblock_kernel(Cin, Cout, D, H, W)
    PB = P + 2 * HALO
    Cpm = max(Cp1, Cp2)

    # Free (contiguous) reshape: channels on sublanes, flat spatial on lanes.
    x2 = x_ncdhw.reshape(N, Cin, P)

    # Per-lane (h, w) coordinates, constant-folded under jit.
    pos = jnp.arange(P, dtype=jnp.int32)
    coords = jnp.stack([(pos // W) % H, pos % W]).astype(jnp.int32)

    flops = 2 * N * P * 27 * (Cout * Cin + Cout * Cout)
    bytes_accessed = (x2.size * 4 + N * Cout * P * 4
                      + params["w1p"].size * 2 + params["w2p"].size * 2)

    out = pl.pallas_call(
        kernel,
        out_shape=jax.ShapeDtypeStruct((N, Cout, P), x_ncdhw.dtype),
        grid_spec=pltpu.PrefetchScalarGridSpec(
            num_scalar_prefetch=0,
            grid=(N,),
            in_specs=[
                pl.BlockSpec((2, P), lambda n: (0, 0)),              # coords
                pl.BlockSpec((1, Cin, P), lambda n: (n, 0, 0)),      # x
                pl.BlockSpec((3, Cp2, 9 * Cp1), lambda n: (0, 0, 0)),  # w1
                pl.BlockSpec((Cp2, 1), lambda n: (0, 0)),            # s1
                pl.BlockSpec((Cp2, 1), lambda n: (0, 0)),            # b1
                pl.BlockSpec((3, Cp2, 9 * Cp2), lambda n: (0, 0, 0)),  # w2
                pl.BlockSpec((Cp2, 1), lambda n: (0, 0)),            # s2
                pl.BlockSpec((Cp2, 1), lambda n: (0, 0)),            # b2
            ],
            out_specs=pl.BlockSpec((1, Cout, P), lambda n: (n, 0, 0)),
            scratch_shapes=[
                pltpu.VMEM((Cpm, PB), jnp.bfloat16),       # shared halo buf
                pltpu.VMEM((9 * Cpm, P), jnp.bfloat16),    # shared im2col buf
            ],
        ),
        compiler_params=pltpu.CompilerParams(
            dimension_semantics=("parallel",)),
        cost_estimate=pl.CostEstimate(
            flops=flops, transcendentals=0, bytes_accessed=bytes_accessed),
    )(coords, x2,
      params["w1p"], params["s1p"], params["b1p"],
      params["w2p"], params["s2p"], params["b2p"])

    return out.reshape(N, Cout, D, H, W)


# ----------------------------- parameters -----------------------------------

def _fold_bn(conv_b, gamma, beta, r_mean, r_var):
    """Fold eval-mode BatchNorm + conv bias into (scale, bias)."""
    inv_std = 1.0 / jnp.sqrt(r_var + BN_EPS)
    scale = gamma * inv_std
    bias = beta + (conv_b - r_mean) * scale
    return scale, bias


def _pack_conv_weight(w_oidhw, cin_pad, cout_pad):
    """(Cout,Cin,3,3,3) -> (3, Cout_pad, 9*Cin_pad) bf16, matching the kernel's
    kd-chunked, 8-aligned tap-slab im2col layout (pad columns/rows are zero)."""
    cout, cin = w_oidhw.shape[0], w_oidhw.shape[1]
    wt = jnp.transpose(w_oidhw, (2, 0, 3, 4, 1)).reshape(3, cout, 9, cin)
    wp = jnp.zeros((3, cout_pad, 9, cin_pad), jnp.float32)
    wp = wp.at[:, :cout, :, :cin].set(wt)
    return wp.reshape(3, cout_pad, 9 * cin_pad).astype(jnp.bfloat16)


def _pad_vec(v, cpad):
    return jnp.pad(v, (0, cpad - v.shape[0]))[:, None]


def make_convblock_params(key, in_channels, out_channels):
    """Deterministic synthetic parameters with the same shapes as the module."""
    ks = jax.random.split(key, 12)
    cp1, cp2 = _pad8(in_channels), _pad8(out_channels)

    w1 = jax.random.normal(ks[0], (out_channels, in_channels, 3, 3, 3),
                           jnp.float32) * 0.1
    b1 = jax.random.normal(ks[1], (out_channels,), jnp.float32) * 0.1
    g1 = 1.0 + 0.1 * jax.random.normal(ks[2], (out_channels,), jnp.float32)
    be1 = 0.1 * jax.random.normal(ks[3], (out_channels,), jnp.float32)
    m1 = 0.1 * jax.random.normal(ks[4], (out_channels,), jnp.float32)
    v1 = jnp.abs(1.0 + 0.1 * jax.random.normal(ks[5], (out_channels,),
                                               jnp.float32))
    s1, bb1 = _fold_bn(b1, g1, be1, m1, v1)

    w2 = jax.random.normal(ks[6], (out_channels, out_channels, 3, 3, 3),
                           jnp.float32) * 0.1
    b2 = jax.random.normal(ks[7], (out_channels,), jnp.float32) * 0.1
    g2 = 1.0 + 0.1 * jax.random.normal(ks[8], (out_channels,), jnp.float32)
    be2 = 0.1 * jax.random.normal(ks[9], (out_channels,), jnp.float32)
    m2 = 0.1 * jax.random.normal(ks[10], (out_channels,), jnp.float32)
    v2 = jnp.abs(1.0 + 0.1 * jax.random.normal(ks[11], (out_channels,),
                                               jnp.float32))
    s2, bb2 = _fold_bn(b2, g2, be2, m2, v2)

    return dict(
        # reference (f32, PyTorch layouts)
        w1_oidhw=w1, w2_oidhw=w2, s1=s1, b1=bb1, s2=s2, b2=bb2,
        # kernel operands (bf16 packed weights, padded folded scale/bias)
        w1p=_pack_conv_weight(w1, cp1, cp2),
        w2p=_pack_conv_weight(w2, cp2, cp2),
        s1p=_pad_vec(s1, cp2), b1p=_pad_vec(bb1, cp2),
        s2p=_pad_vec(s2, cp2), b2p=_pad_vec(bb2, cp2),
    )


def _reference_forward(x_ncdhw, params):
    """Pure-JAX f32 reference (lax conv) for validation."""
    def layer(x, w, scale, bias):
        y = jax.lax.conv_general_dilated(
            x, w, window_strides=(1, 1, 1), padding=((1, 1),) * 3,
            dimension_numbers=("NCDHW", "OIDHW", "NCDHW"))
        y = y * scale[None, :, None, None, None] + bias[None, :, None, None, None]
        return jnp.where(y > 0, y, NEG_SLOPE * y)

    x = layer(x_ncdhw, params["w1_oidhw"], params["s1"], params["b1"])
    x = layer(x, params["w2_oidhw"], params["s2"], params["b2"])
    return x


if __name__ == "__main__":
    key = jax.random.PRNGKey(0)
    k_x, k_p = jax.random.split(key)

    N, Cin, Cout, D, H, W = 2, 4, 8, 8, 8, 8
    x = jax.random.normal(k_x, (N, Cin, D, H, W), jnp.float32)
    params = make_convblock_params(k_p, Cin, Cout)

    out = jax.block_until_ready(conv_block_forward(x, params))

    ref = _reference_forward(x, params)
    assert out.shape == (N, Cout, D, H, W), out.shape
    max_err = float(jnp.max(jnp.abs(out - ref)))
    # bf16 MXU operands with f32 accumulation vs. f32 reference: loose tol.
    assert jnp.allclose(out, ref, rtol=5e-2, atol=5e-2), max_err

    print("KERNEL_OK")
</pallas_src>

<mosaic_0001>
module attributes {stable_mosaic.version = 11 : i64} {
  func.func @kernel(%arg0: i32, %arg1: memref<2x512xi32, #tpu.memory_space<vmem>>, %arg2: memref<1x4x512xf32, #tpu.memory_space<vmem>>, %arg3: memref<3x8x72xbf16, #tpu.memory_space<vmem>>, %arg4: memref<8x1xf32, #tpu.memory_space<vmem>>, %arg5: memref<8x1xf32, #tpu.memory_space<vmem>>, %arg6: memref<3x8x72xbf16, #tpu.memory_space<vmem>>, %arg7: memref<8x1xf32, #tpu.memory_space<vmem>>, %arg8: memref<8x1xf32, #tpu.memory_space<vmem>>, %arg9: memref<1x8x512xf32, #tpu.memory_space<vmem>>, %arg10: memref<8x768xbf16, #tpu.memory_space<vmem>>, %arg11: memref<72x512xbf16, #tpu.memory_space<vmem>>) attributes {dimension_semantics = [#tpu.dimension_semantics<parallel>], iteration_bounds = array<i64: 2>, scalar_prefetch = 0 : i64, scratch_operands = 2 : i64, tpu.core_type = #tpu.core_type<tc>, window_params = [{pipeline_mode = #tpu.pipeline_mode<synchronous>, transform_indices = @transform_0, window_bounds = array<i64: 2, 512>}, {transform_indices = @transform_1, window_bounds = array<i64: 1, 4, 512>}, {pipeline_mode = #tpu.pipeline_mode<synchronous>, transform_indices = @transform_2, window_bounds = array<i64: 3, 8, 72>}, {pipeline_mode = #tpu.pipeline_mode<synchronous>, transform_indices = @transform_3, window_bounds = array<i64: 8, 1>}, {pipeline_mode = #tpu.pipeline_mode<synchronous>, transform_indices = @transform_4, window_bounds = array<i64: 8, 1>}, {pipeline_mode = #tpu.pipeline_mode<synchronous>, transform_indices = @transform_5, window_bounds = array<i64: 3, 8, 72>}, {pipeline_mode = #tpu.pipeline_mode<synchronous>, transform_indices = @transform_6, window_bounds = array<i64: 8, 1>}, {pipeline_mode = #tpu.pipeline_mode<synchronous>, transform_indices = @transform_7, window_bounds = array<i64: 8, 1>}, {transform_indices = @transform_8, window_bounds = array<i64: 1, 8, 512>}]} {
    %c0 = arith.constant 0 : index
    %c0_0 = arith.constant 0 : index
    %0 = vector.load %arg1[%c0, %c0_0] : memref<2x512xi32, #tpu.memory_space<vmem>>, vector<1x512xi32>
    %c1 = arith.constant 1 : index
    %c0_1 = arith.constant 0 : index
    %1 = vector.load %arg1[%c1, %c0_1] : memref<2x512xi32, #tpu.memory_space<vmem>>, vector<1x512xi32>
    %c1_i32 = arith.constant 1 : i32
    %2 = vector.broadcast %c1_i32 : i32 to vector<1x512xi32>
    %3 = arith.cmpi sge, %0, %2 : vector<1x512xi32>
    %c6_i32 = arith.constant 6 : i32
    %4 = vector.broadcast %c6_i32 : i32 to vector<1x512xi32>
    %5 = arith.cmpi sle, %0, %4 : vector<1x512xi32>
    %c1_i32_2 = arith.constant 1 : i32
    %6 = vector.broadcast %c1_i32_2 : i32 to vector<1x512xi32>
    %7 = arith.cmpi sge, %1, %6 : vector<1x512xi32>
    %c6_i32_3 = arith.constant 6 : i32
    %8 = vector.broadcast %c6_i32_3 : i32 to vector<1x512xi32>
    %9 = arith.cmpi sle, %1, %8 : vector<1x512xi32>
    %10 = arith.andi %3, %7 : vector<1x512xi1>
    %11 = arith.andi %3, %9 : vector<1x512xi1>
    %12 = arith.andi %5, %7 : vector<1x512xi1>
    %13 = arith.andi %5, %9 : vector<1x512xi1>
    %c0_4 = arith.constant 0 : index
    %c0_5 = arith.constant 0 : index
    %c0_6 = arith.constant 0 : index
    %14 = vector.load %arg2[%c0_4, %c0_5, %c0_6] : memref<1x4x512xf32, #tpu.memory_space<vmem>>, vector<1x4x512xf32>
    %15 = vector.shape_cast %14 : vector<1x4x512xf32> to vector<4x512xf32>
    %16 = arith.truncf %15 : vector<4x512xf32> to vector<4x512xbf16>
    %cst = arith.constant 0.000000e+00 : bf16
    %17 = vector.broadcast %cst : bf16 to vector<8x128xbf16>
    %c0_7 = arith.constant 0 : index
    %c0_8 = arith.constant 0 : index
    %18 = vector.load %arg10[%c0_7, %c0_8] : memref<8x768xbf16, #tpu.memory_space<vmem>>, vector<8x128xbf16>
    tpu.vector_store %arg10[%c0_7, %c0_8], %17 {strides = array<i32>} : memref<8x768xbf16, #tpu.memory_space<vmem>>, vector<8x128xbf16>,
    %c0_9 = arith.constant 0 : index
    %c640 = arith.constant 640 : index
    %19 = vector.load %arg10[%c0_9, %c640] : memref<8x768xbf16, #tpu.memory_space<vmem>>, vector<8x128xbf16>
    tpu.vector_store %arg10[%c0_9, %c640], %17 {strides = array<i32>} : memref<8x768xbf16, #tpu.memory_space<vmem>>, vector<8x128xbf16>,
    %c0_10 = arith.constant 0 : index
    %c128 = arith.constant 128 : index
    %20 = vector.load %arg10[%c0_10, %c128] : memref<8x768xbf16, #tpu.memory_space<vmem>>, vector<4x512xbf16>
    tpu.vector_store %arg10[%c0_10, %c128], %16 {strides = array<i32>} : memref<8x768xbf16, #tpu.memory_space<vmem>>, vector<4x512xbf16>,
    %cst_11 = arith.constant 0.000000e+00 : bf16
    %21 = vector.broadcast %cst_11 : bf16 to vector<4x512xbf16>
    %c4 = arith.constant 4 : index
    %c128_12 = arith.constant 128 : index
    %22 = vector.load %arg10[%c4, %c128_12] : memref<8x768xbf16, #tpu.memory_space<vmem>>, vector<4x512xbf16>
    tpu.vector_store %arg10[%c4, %c128_12], %21 {strides = array<i32>} : memref<8x768xbf16, #tpu.memory_space<vmem>>, vector<4x512xbf16>,
    %c0_13 = arith.constant 0 : index
    %c55 = arith.constant 55 : index
    %23 = vector.load %arg10[%c0_13, %c55] : memref<8x768xbf16, #tpu.memory_space<vmem>>, vector<8x512xbf16>
    %cst_14 = arith.constant 0.000000e+00 : bf16
    %24 = vector.broadcast %cst_14 : bf16 to vector<8x512xbf16>
    %25 = vector.shape_cast %10 : vector<1x512xi1> to vector<1x512xi1>
    %26 = vector.broadcast %25 : vector<1x512xi1> to vector<8x512xi1>
    %27 = arith.select %26, %23, %24 : vector<8x512xi1>, vector<8x512xbf16>
    %c0_15 = arith.constant 0 : index
    %c0_16 = arith.constant 0 : index
    %28 = vector.load %arg11[%c0_15, %c0_16] : memref<72x512xbf16, #tpu.memory_space<vmem>>, vector<8x512xbf16>
    tpu.vector_store %arg11[%c0_15, %c0_16], %27 {strides = array<i32>} : memref<72x512xbf16, #tpu.memory_space<vmem>>, vector<8x512xbf16>,
    %c0_17 = arith.constant 0 : index
    %c56 = arith.constant 56 : index
    %29 = vector.load %arg10[%c0_17, %c56] : memref<8x768xbf16, #tpu.memory_space<vmem>>, vector<8x512xbf16>
    %cst_18 = arith.constant 0.000000e+00 : bf16
    %30 = vector.broadcast %cst_18 : bf16 to vector<8x512xbf16>
    %31 = vector.shape_cast %3 : vector<1x512xi1> to vector<1x512xi1>
    %32 = vector.broadcast %31 : vector<1x512xi1> to vector<8x512xi1>
    %33 = arith.select %32, %29, %30 : vector<8x512xi1>, vector<8x512xbf16>
    %c8 = arith.constant 8 : index
    %c0_19 = arith.constant 0 : index
    %34 = vector.load %arg11[%c8, %c0_19] : memref<72x512xbf16, #tpu.memory_space<vmem>>, vector<8x512xbf16>
    tpu.vector_store %arg11[%c8, %c0_19], %33 {strides = array<i32>} : memref<72x512xbf16, #tpu.memory_space<vmem>>, vector<8x512xbf16>,
    %c0_20 = arith.constant 0 : index
    %c57 = arith.constant 57 : index
    %35 = vector.load %arg10[%c0_20, %c57] : memref<8x768xbf16, #tpu.memory_space<vmem>>, vector<8x512xbf16>
    %cst_21 = arith.constant 0.000000e+00 : bf16
    %36 = vector.broadcast %cst_21 : bf16 to vector<8x512xbf16>
    %37 = vector.shape_cast %11 : vector<1x512xi1> to vector<1x512xi1>
    %38 = vector.broadcast %37 : vector<1x512xi1> to vector<8x512xi1>
    %39 = arith.select %38, %35, %36 : vector<8x512xi1>, vector<8x512xbf16>
    %c16 = arith.constant 16 : index
    %c0_22 = arith.constant 0 : index
    %40 = vector.load %arg11[%c16, %c0_22] : memref<72x512xbf16, #tpu.memory_space<vmem>>, vector<8x512xbf16>
    tpu.vector_store %arg11[%c16, %c0_22], %39 {strides = array<i32>} : memref<72x512xbf16, #tpu.memory_space<vmem>>, vector<8x512xbf16>,
    %c0_23 = arith.constant 0 : index
    %c63 = arith.constant 63 : index
    %41 = vector.load %arg10[%c0_23, %c63] : memref<8x768xbf16, #tpu.memory_space<vmem>>, vector<8x512xbf16>
    %cst_24 = arith.constant 0.000000e+00 : bf16
    %42 = vector.broadcast %cst_24 : bf16 to vector<8x512xbf16>
    %43 = vector.shape_cast %7 : vector<1x512xi1> to vector<1x512xi1>
    %44 = vector.broadcast %43 : vector<1x512xi1> to vector<8x512xi1>
    %45 = arith.select %44, %41, %42 : vector<8x512xi1>, vector<8x512xbf16>
    %c24 = arith.constant 24 : index
    %c0_25 = arith.constant 0 : index
    %46 = vector.load %arg11[%c24, %c0_25] : memref<72x512xbf16, #tpu.memory_space<vmem>>, vector<8x512xbf16>
    tpu.vector_store %arg11[%c24, %c0_25], %45 {strides = array<i32>} : memref<72x512xbf16, #tpu.memory_space<vmem>>, vector<8x512xbf16>,
    %c0_26 = arith.constant 0 : index
    %c64 = arith.constant 64 : index
    %47 = vector.load %arg10[%c0_26, %c64] : memref<8x768xbf16, #tpu.memory_space<vmem>>, vector<8x512xbf16>
    %c32 = arith.constant 32 : index
    %c0_27 = arith.constant 0 : index
    %48 = vector.load %arg11[%c32, %c0_27] : memref<72x512xbf16, #tpu.memory_space<vmem>>, vector<8x512xbf16>
    tpu.vector_store %arg11[%c32, %c0_27], %47 {strides = array<i32>} : memref<72x512xbf16, #tpu.memory_space<vmem>>, vector<8x512xbf16>,
    %c0_28 = arith.constant 0 : index
    %c65 = arith.constant 65 : index
    %49 = vector.load %arg10[%c0_28, %c65] : memref<8x768xbf16, #tpu.memory_space<vmem>>, vector<8x512xbf16>
    %cst_29 = arith.constant 0.000000e+00 : bf16
    %50 = vector.broadcast %cst_29 : bf16 to vector<8x512xbf16>
    %51 = vector.shape_cast %9 : vector<1x512xi1> to vector<1x512xi1>
    %52 = vector.broadcast %51 : vector<1x512xi1> to vector<8x512xi1>
    %53 = arith.select %52, %49, %50 : vector<8x512xi1>, vector<8x512xbf16>
    %c40 = arith.constant 40 : index
    %c0_30 = arith.constant 0 : index
    %54 = vector.load %arg11[%c40, %c0_30] : memref<72x512xbf16, #tpu.memory_space<vmem>>, vector<8x512xbf16>
    tpu.vector_store %arg11[%c40, %c0_30], %53 {strides = array<i32>} : memref<72x512xbf16, #tpu.memory_space<vmem>>, vector<8x512xbf16>,
    %c0_31 = arith.constant 0 : index
    %c71 = arith.constant 71 : index
    %55 = vector.load %arg10[%c0_31, %c71] : memref<8x768xbf16, #tpu.memory_space<vmem>>, vector<8x512xbf16>
    %cst_32 = arith.constant 0.000000e+00 : bf16
    %56 = vector.broadcast %cst_32 : bf16 to vector<8x512xbf16>
    %57 = vector.shape_cast %12 : vector<1x512xi1> to vector<1x512xi1>
    %58 = vector.broadcast %57 : vector<1x512xi1> to vector<8x512xi1>
    %59 = arith.select %58, %55, %56 : vector<8x512xi1>, vector<8x512xbf16>
    %c48 = arith.constant 48 : index
    %c0_33 = arith.constant 0 : index
    %60 = vector.load %arg11[%c48, %c0_33] : memref<72x512xbf16, #tpu.memory_space<vmem>>, vector<8x512xbf16>
    tpu.vector_store %arg11[%c48, %c0_33], %59 {strides = array<i32>} : memref<72x512xbf16, #tpu.memory_space<vmem>>, vector<8x512xbf16>,
    %c0_34 = arith.constant 0 : index
    %c72 = arith.constant 72 : index
    %61 = vector.load %arg10[%c0_34, %c72] : memref<8x768xbf16, #tpu.memory_space<vmem>>, vector<8x512xbf16>
    %cst_35 = arith.constant 0.000000e+00 : bf16
    %62 = vector.broadcast %cst_35 : bf16 to vector<8x512xbf16>
    %63 = vector.shape_cast %5 : vector<1x512xi1> to vector<1x512xi1>
    %64 = vector.broadcast %63 : vector<1x512xi1> to vector<8x512xi1>
    %65 = arith.select %64, %61, %62 : vector<8x512xi1>, vector<8x512xbf16>
    %c56_36 = arith.constant 56 : index
    %c0_37 = arith.constant 0 : index
    %66 = vector.load %arg11[%c56_36, %c0_37] : memref<72x512xbf16, #tpu.memory_space<vmem>>, vector<8x512xbf16>
    tpu.vector_store %arg11[%c56_36, %c0_37], %65 {strides = array<i32>} : memref<72x512xbf16, #tpu.memory_space<vmem>>, vector<8x512xbf16>,
    %c0_38 = arith.constant 0 : index
    %c73 = arith.constant 73 : index
    %67 = vector.load %arg10[%c0_38, %c73] : memref<8x768xbf16, #tpu.memory_space<vmem>>, vector<8x512xbf16>
    %cst_39 = arith.constant 0.000000e+00 : bf16
    %68 = vector.broadcast %cst_39 : bf16 to vector<8x512xbf16>
    %69 = vector.shape_cast %13 : vector<1x512xi1> to vector<1x512xi1>
    %70 = vector.broadcast %69 : vector<1x512xi1> to vector<8x512xi1>
    %71 = arith.select %70, %67, %68 : vector<8x512xi1>, vector<8x512xbf16>
    %c64_40 = arith.constant 64 : index
    %c0_41 = arith.constant 0 : index
    %72 = vector.load %arg11[%c64_40, %c0_41] : memref<72x512xbf16, #tpu.memory_space<vmem>>, vector<8x512xbf16>
    tpu.vector_store %arg11[%c64_40, %c0_41], %71 {strides = array<i32>} : memref<72x512xbf16, #tpu.memory_space<vmem>>, vector<8x512xbf16>,
    %c0_42 = arith.constant 0 : index
    %c0_43 = arith.constant 0 : index
    %c0_44 = arith.constant 0 : index
    %73 = vector.load %arg3[%c0_42, %c0_43, %c0_44] : memref<3x8x72xbf16, #tpu.memory_space<vmem>>, vector<1x8x72xbf16>
    %74 = vector.shape_cast %73 : vector<1x8x72xbf16> to vector<8x72xbf16>
    %c0_45 = arith.constant 0 : index
    %c0_46 = arith.constant 0 : index
    %75 = vector.load %arg11[%c0_45, %c0_46] : memref<72x512xbf16, #tpu.memory_space<vmem>>, vector<72x512xbf16>
    %cst_47 = arith.constant dense<0.000000e+00> : vector<8x512xf32>
    %76 = tpu.matmul %74, %75, %cst_47 {dimension_numbers = #tpu.dot_dimension_numbers<[1], [0], [0], [1], [0, 0, 1, 1], [], []>} : vector<8x72xbf16>, vector<72x512xbf16>, vector<8x512xf32> -> vector<8x512xf32>
    %c0_48 = arith.constant 0 : index
    %c119 = arith.constant 119 : index
    %77 = vector.load %arg10[%c0_48, %c119] : memref<8x768xbf16, #tpu.memory_space<vmem>>, vector<8x512xbf16>
    %cst_49 = arith.constant 0.000000e+00 : bf16
    %78 = vector.broadcast %cst_49 : bf16 to vector<8x512xbf16>
    %79 = vector.shape_cast %10 : vector<1x512xi1> to vector<1x512xi1>
    %80 = vector.broadcast %79 : vector<1x512xi1> to vector<8x512xi1>
    %81 = arith.select %80, %77, %78 : vector<8x512xi1>, vector<8x512xbf16>
    %c0_50 = arith.constant 0 : index
    %c0_51 = arith.constant 0 : index
    %82 = vector.load %arg11[%c0_50, %c0_51] : memref<72x512xbf16, #tpu.memory_space<vmem>>, vector<8x512xbf16>
    tpu.vector_store %arg11[%c0_50, %c0_51], %81 {strides = array<i32>} : memref<72x512xbf16, #tpu.memory_space<vmem>>, vector<8x512xbf16>,
    %c0_52 = arith.constant 0 : index
    %c120 = arith.constant 120 : index
    %83 = vector.load %arg10[%c0_52, %c120] : memref<8x768xbf16, #tpu.memory_space<vmem>>, vector<8x512xbf16>
    %cst_53 = arith.constant 0.000000e+00 : bf16
    %84 = vector.broadcast %cst_53 : bf16 to vector<8x512xbf16>
    %85 = vector.shape_cast %3 : vector<1x512xi1> to vector<1x512xi1>
    %86 = vector.broadcast %85 : vector<1x512xi1> to vector<8x512xi1>
    %87 = arith.select %86, %83, %84 : vector<8x512xi1>, vector<8x512xbf16>
    %c8_54 = arith.constant 8 : index
    %c0_55 = arith.constant 0 : index
    %88 = vector.load %arg11[%c8_54, %c0_55] : memref<72x512xbf16, #tpu.memory_space<vmem>>, vector<8x512xbf16>
    tpu.vector_store %arg11[%c8_54, %c0_55], %87 {strides = array<i32>} : memref<72x512xbf16, #tpu.memory_space<vmem>>, vector<8x512xbf16>,
    %c0_56 = arith.constant 0 : index
    %c121 = arith.constant 121 : index
    %89 = vector.load %arg10[%c0_56, %c121] : memref<8x768xbf16, #tpu.memory_space<vmem>>, vector<8x512xbf16>
    %cst_57 = arith.constant 0.000000e+00 : bf16
    %90 = vector.broadcast %cst_57 : bf16 to vector<8x512xbf16>
    %91 = vector.shape_cast %11 : vector<1x512xi1> to vector<1x512xi1>
    %92 = vector.broadcast %91 : vector<1x512xi1> to vector<8x512xi1>
    %93 = arith.select %92, %89, %90 : vector<8x512xi1>, vector<8x512xbf16>
    %c16_58 = arith.constant 16 : index
    %c0_59 = arith.constant 0 : index
    %94 = vector.load %arg11[%c16_58, %c0_59] : memref<72x512xbf16, #tpu.memory_space<vmem>>, vector<8x512xbf16>
    tpu.vector_store %arg11[%c16_58, %c0_59], %93 {strides = array<i32>} : memref<72x512xbf16, #tpu.memory_space<vmem>>, vector<8x512xbf16>,
    %c0_60 = arith.constant 0 : index
    %c127 = arith.constant 127 : index
    %95 = vector.load %arg10[%c0_60, %c127] : memref<8x768xbf16, #tpu.memory_space<vmem>>, vector<8x512xbf16>
    %cst_61 = arith.constant 0.000000e+00 : bf16
    %96 = vector.broadcast %cst_61 : bf16 to vector<8x512xbf16>
    %97 = vector.shape_cast %7 : vector<1x512xi1> to vector<1x512xi1>
    %98 = vector.broadcast %97 : vector<1x512xi1> to vector<8x512xi1>
    %99 = arith.select %98, %95, %96 : vector<8x512xi1>, vector<8x512xbf16>
    %c24_62 = arith.constant 24 : index
    %c0_63 = arith.constant 0 : index
    %100 = vector.load %arg11[%c24_62, %c0_63] : memref<72x512xbf16, #tpu.memory_space<vmem>>, vector<8x512xbf16>
    tpu.vector_store %arg11[%c24_62, %c0_63], %99 {strides = array<i32>} : memref<72x512xbf16, #tpu.memory_space<vmem>>, vector<8x512xbf16>,
    %c0_64 = arith.constant 0 : index
    %c128_65 = arith.constant 128 : index
    %101 = vector.load %arg10[%c0_64, %c128_65] : memref<8x768xbf16, #tpu.memory_space<vmem>>, vector<8x512xbf16>
    %c32_66 = arith.constant 32 : index
    %c0_67 = arith.constant 0 : index
    %102 = vector.load %arg11[%c32_66, %c0_67] : memref<72x512xbf16, #tpu.memory_space<vmem>>, vector<8x512xbf16>
    tpu.vector_store %arg11[%c32_66, %c0_67], %101 {strides = array<i32>} : memref<72x512xbf16, #tpu.memory_space<vmem>>, vector<8x512xbf16>,
    %c0_68 = arith.constant 0 : index
    %c129 = arith.constant 129 : index
    %103 = vector.load %arg10[%c0_68, %c129] : memref<8x768xbf16, #tpu.memory_space<vmem>>, vector<8x512xbf16>
    %cst_69 = arith.constant 0.000000e+00 : bf16
    %104 = vector.broadcast %cst_69 : bf16 to vector<8x512xbf16>
    %105 = vector.shape_cast %9 : vector<1x512xi1> to vector<1x512xi1>
    %106 = vector.broadcast %105 : vector<1x512xi1> to vector<8x512xi1>
    %107 = arith.select %106, %103, %104 : vector<8x512xi1>, vector<8x512xbf16>
    %c40_70 = arith.constant 40 : index
    %c0_71 = arith.constant 0 : index
    %108 = vector.load %arg11[%c40_70, %c0_71] : memref<72x512xbf16, #tpu.memory_space<vmem>>, vector<8x512xbf16>
    tpu.vector_store %arg11[%c40_70, %c0_71], %107 {strides = array<i32>} : memref<72x512xbf16, #tpu.memory_space<vmem>>, vector<8x512xbf16>,
    %c0_72 = arith.constant 0 : index
    %c135 = arith.constant 135 : index
    %109 = vector.load %arg10[%c0_72, %c135] : memref<8x768xbf16, #tpu.memory_space<vmem>>, vector<8x512xbf16>
    %cst_73 = arith.constant 0.000000e+00 : bf16
    %110 = vector.broadcast %cst_73 : bf16 to vector<8x512xbf16>
    %111 = vector.shape_cast %12 : vector<1x512xi1> to vector<1x512xi1>
    %112 = vector.broadcast %111 : vector<1x512xi1> to vector<8x512xi1>
    %113 = arith.select %112, %109, %110 : vector<8x512xi1>, vector<8x512xbf16>
    %c48_74 = arith.constant 48 : index
    %c0_75 = arith.constant 0 : index
    %114 = vector.load %arg11[%c48_74, %c0_75] : memref<72x512xbf16, #tpu.memory_space<vmem>>, vector<8x512xbf16>
    tpu.vector_store %arg11[%c48_74, %c0_75], %113 {strides = array<i32>} : memref<72x512xbf16, #tpu.memory_space<vmem>>, vector<8x512xbf16>,
    %c0_76 = arith.constant 0 : index
    %c136 = arith.constant 136 : index
    %115 = vector.load %arg10[%c0_76, %c136] : memref<8x768xbf16, #tpu.memory_space<vmem>>, vector<8x512xbf16>
    %cst_77 = arith.constant 0.000000e+00 : bf16
    %116 = vector.broadcast %cst_77 : bf16 to vector<8x512xbf16>
    %117 = vector.shape_cast %5 : vector<1x512xi1> to vector<1x512xi1>
    %118 = vector.broadcast %117 : vector<1x512xi1> to vector<8x512xi1>
    %119 = arith.select %118, %115, %116 : vector<8x512xi1>, vector<8x512xbf16>
    %c56_78 = arith.constant 56 : index
    %c0_79 = arith.constant 0 : index
    %120 = vector.load %arg11[%c56_78, %c0_79] : memref<72x512xbf16, #tpu.memory_space<vmem>>, vector<8x512xbf16>
    tpu.vector_store %arg11[%c56_78, %c0_79], %119 {strides = array<i32>} : memref<72x512xbf16, #tpu.memory_space<vmem>>, vector<8x512xbf16>,
    %c0_80 = arith.constant 0 : index
    %c137 = arith.constant 137 : index
    %121 = vector.load %arg10[%c0_80, %c137] : memref<8x768xbf16, #tpu.memory_space<vmem>>, vector<8x512xbf16>
    %cst_81 = arith.constant 0.000000e+00 : bf16
    %122 = vector.broadcast %cst_81 : bf16 to vector<8x512xbf16>
    %123 = vector.shape_cast %13 : vector<1x512xi1> to vector<1x512xi1>
    %124 = vector.broadcast %123 : vector<1x512xi1> to vector<8x512xi1>
    %125 = arith.select %124, %121, %122 : vector<8x512xi1>, vector<8x512xbf16>
    %c64_82 = arith.constant 64 : index
    %c0_83 = arith.constant 0 : index
    %126 = vector.load %arg11[%c64_82, %c0_83] : memref<72x512xbf16, #tpu.memory_space<vmem>>, vector<8x512xbf16>
    tpu.vector_store %arg11[%c64_82, %c0_83], %125 {strides = array<i32>} : memref<72x512xbf16, #tpu.memory_space<vmem>>, vector<8x512xbf16>,
    %c1_84 = arith.constant 1 : index
    %c0_85 = arith.constant 0 : index
    %c0_86 = arith.constant 0 : index
    %127 = vector.load %arg3[%c1_84, %c0_85, %c0_86] : memref<3x8x72xbf16, #tpu.memory_space<vmem>>, vector<1x8x72xbf16>
    %128 = vector.shape_cast %127 : vector<1x8x72xbf16> to vector<8x72xbf16>
    %c0_87 = arith.constant 0 : index
    %c0_88 = arith.constant 0 : index
    %129 = vector.load %arg11[%c0_87, %c0_88] : memref<72x512xbf16, #tpu.memory_space<vmem>>, vector<72x512xbf16>
    %cst_89 = arith.constant dense<0.000000e+00> : vector<8x512xf32>
    %130 = tpu.matmul %128, %129, %cst_89 {dimension_numbers = #tpu.dot_dimension_numbers<[1], [0], [0], [1], [0, 0, 1, 1], [], []>} : vector<8x72xbf16>, vector<72x512xbf16>, vector<8x512xf32> -> vector<8x512xf32>
    %131 = arith.addf %76, %130 : vector<8x512xf32>
    %c0_90 = arith.constant 0 : index
    %c183 = arith.constant 183 : index
    %132 = vector.load %arg10[%c0_90, %c183] : memref<8x768xbf16, #tpu.memory_space<vmem>>, vector<8x512xbf16>
    %cst_91 = arith.constant 0.000000e+00 : bf16
    %133 = vector.broadcast %cst_91 : bf16 to vector<8x512xbf16>
    %134 = vector.shape_cast %10 : vector<1x512xi1> to vector<1x512xi1>
    %135 = vector.broadcast %134 : vector<1x512xi1> to vector<8x512xi1>
    %136 = arith.select %135, %132, %133 : vector<8x512xi1>, vector<8x512xbf16>
    %c0_92 = arith.constant 0 : index
    %c0_93 = arith.constant 0 : index
    %137 = vector.load %arg11[%c0_92, %c0_93] : memref<72x512xbf16, #tpu.memory_space<vmem>>, vector<8x512xbf16>
    tpu.vector_store %arg11[%c0_92, %c0_93], %136 {strides = array<i32>} : memref<72x512xbf16, #tpu.memory_space<vmem>>, vector<8x512xbf16>,
    %c0_94 = arith.constant 0 : index
    %c184 = arith.constant 184 : index
    %138 = vector.load %arg10[%c0_94, %c184] : memref<8x768xbf16, #tpu.memory_space<vmem>>, vector<8x512xbf16>
    %cst_95 = arith.constant 0.000000e+00 : bf16
    %139 = vector.broadcast %cst_95 : bf16 to vector<8x512xbf16>
    %140 = vector.shape_cast %3 : vector<1x512xi1> to vector<1x512xi1>
    %141 = vector.broadcast %140 : vector<1x512xi1> to vector<8x512xi1>
    %142 = arith.select %141, %138, %139 : vector<8x512xi1>, vector<8x512xbf16>
    %c8_96 = arith.constant 8 : index
    %c0_97 = arith.constant 0 : index
    %143 = vector.load %arg11[%c8_96, %c0_97] : memref<72x512xbf16, #tpu.memory_space<vmem>>, vector<8x512xbf16>
    tpu.vector_store %arg11[%c8_96, %c0_97], %142 {strides = array<i32>} : memref<72x512xbf16, #tpu.memory_space<vmem>>, vector<8x512xbf16>,
    %c0_98 = arith.constant 0 : index
    %c185 = arith.constant 185 : index
    %144 = vector.load %arg10[%c0_98, %c185] : memref<8x768xbf16, #tpu.memory_space<vmem>>, vector<8x512xbf16>
    %cst_99 = arith.constant 0.000000e+00 : bf16
    %145 = vector.broadcast %cst_99 : bf16 to vector<8x512xbf16>
    %146 = vector.shape_cast %11 : vector<1x512xi1> to vector<1x512xi1>
    %147 = vector.broadcast %146 : vector<1x512xi1> to vector<8x512xi1>
    %148 = arith.select %147, %144, %145 : vector<8x512xi1>, vector<8x512xbf16>
    %c16_100 = arith.constant 16 : index
    %c0_101 = arith.constant 0 : index
    %149 = vector.load %arg11[%c16_100, %c0_101] : memref<72x512xbf16, #tpu.memory_space<vmem>>, vector<8x512xbf16>
    tpu.vector_store %arg11[%c16_100, %c0_101], %148 {strides = array<i32>} : memref<72x512xbf16, #tpu.memory_space<vmem>>, vector<8x512xbf16>,
    %c0_102 = arith.constant 0 : index
    %c191 = arith.constant 191 : index
    %150 = vector.load %arg10[%c0_102, %c191] : memref<8x768xbf16, #tpu.memory_space<vmem>>, vector<8x512xbf16>
    %cst_103 = arith.constant 0.000000e+00 : bf16
    %151 = vector.broadcast %cst_103 : bf16 to vector<8x512xbf16>
    %152 = vector.shape_cast %7 : vector<1x512xi1> to vector<1x512xi1>
    %153 = vector.broadcast %152 : vector<1x512xi1> to vector<8x512xi1>
    %154 = arith.select %153, %150, %151 : vector<8x512xi1>, vector<8x512xbf16>
    %c24_104 = arith.constant 24 : index
    %c0_105 = arith.constant 0 : index
    %155 = vector.load %arg11[%c24_104, %c0_105] : memref<72x512xbf16, #tpu.memory_space<vmem>>, vector<8x512xbf16>
    tpu.vector_store %arg11[%c24_104, %c0_105], %154 {strides = array<i32>} : memref<72x512xbf16, #tpu.memory_space<vmem>>, vector<8x512xbf16>,
    %c0_106 = arith.constant 0 : index
    %c192 = arith.constant 192 : index
    %156 = vector.load %arg10[%c0_106, %c192] : memref<8x768xbf16, #tpu.memory_space<vmem>>, vector<8x512xbf16>
    %c32_107 = arith.constant 32 : index
    %c0_108 = arith.constant 0 : index
    %157 = vector.load %arg11[%c32_107, %c0_108] : memref<72x512xbf16, #tpu.memory_space<vmem>>, vector<8x512xbf16>
    tpu.vector_store %arg11[%c32_107, %c0_108], %156 {strides = array<i32>} : memref<72x512xbf16, #tpu.memory_space<vmem>>, vector<8x512xbf16>,
    %c0_109 = arith.constant 0 : index
    %c193 = arith.constant 193 : index
    %158 = vector.load %arg10[%c0_109, %c193] : memref<8x768xbf16, #tpu.memory_space<vmem>>, vector<8x512xbf16>
    %cst_110 = arith.constant 0.000000e+00 : bf16
    %159 = vector.broadcast %cst_110 : bf16 to vector<8x512xbf16>
    %160 = vector.shape_cast %9 : vector<1x512xi1> to vector<1x512xi1>
    %161 = vector.broadcast %160 : vector<1x512xi1> to vector<8x512xi1>
    %162 = arith.select %161, %158, %159 : vector<8x512xi1>, vector<8x512xbf16>
    %c40_111 = arith.constant 40 : index
    %c0_112 = arith.constant 0 : index
    %163 = vector.load %arg11[%c40_111, %c0_112] : memref<72x512xbf16, #tpu.memory_space<vmem>>, vector<8x512xbf16>
    tpu.vector_store %arg11[%c40_111, %c0_112], %162 {strides = array<i32>} : memref<72x512xbf16, #tpu.memory_space<vmem>>, vector<8x512xbf16>,
    %c0_113 = arith.constant 0 : index
    %c199 = arith.constant 199 : index
    %164 = vector.load %arg10[%c0_113, %c199] : memref<8x768xbf16, #tpu.memory_space<vmem>>, vector<8x512xbf16>
    %cst_114 = arith.constant 0.000000e+00 : bf16
    %165 = vector.broadcast %cst_114 : bf16 to vector<8x512xbf16>
    %166 = vector.shape_cast %12 : vector<1x512xi1> to vector<1x512xi1>
    %167 = vector.broadcast %166 : vector<1x512xi1> to vector<8x512xi1>
    %168 = arith.select %167, %164, %165 : vector<8x512xi1>, vector<8x512xbf16>
    %c48_115 = arith.constant 48 : index
    %c0_116 = arith.constant 0 : index
    %169 = vector.load %arg11[%c48_115, %c0_116] : memref<72x512xbf16, #tpu.memory_space<vmem>>, vector<8x512xbf16>
    tpu.vector_store %arg11[%c48_115, %c0_116], %168 {strides = array<i32>} : memref<72x512xbf16, #tpu.memory_space<vmem>>, vector<8x512xbf16>,
    %c0_117 = arith.constant 0 : index
    %c200 = arith.constant 200 : index
    %170 = vector.load %arg10[%c0_117, %c200] : memref<8x768xbf16, #tpu.memory_space<vmem>>, vector<8x512xbf16>
    %cst_118 = arith.constant 0.000000e+00 : bf16
    %171 = vector.broadcast %cst_118 : bf16 to vector<8x512xbf16>
    %172 = vector.shape_cast %5 : vector<1x512xi1> to vector<1x512xi1>
    %173 = vector.broadcast %172 : vector<1x512xi1> to vector<8x512xi1>
    %174 = arith.select %173, %170, %171 : vector<8x512xi1>, vector<8x512xbf16>
    %c56_119 = arith.constant 56 : index
    %c0_120 = arith.constant 0 : index
    %175 = vector.load %arg11[%c56_119, %c0_120] : memref<72x512xbf16, #tpu.memory_space<vmem>>, vector<8x512xbf16>
    tpu.vector_store %arg11[%c56_119, %c0_120], %174 {strides = array<i32>} : memref<72x512xbf16, #tpu.memory_space<vmem>>, vector<8x512xbf16>,
    %c0_121 = arith.constant 0 : index
    %c201 = arith.constant 201 : index
    %176 = vector.load %arg10[%c0_121, %c201] : memref<8x768xbf16, #tpu.memory_space<vmem>>, vector<8x512xbf16>
    %cst_122 = arith.constant 0.000000e+00 : bf16
    %177 = vector.broadcast %cst_122 : bf16 to vector<8x512xbf16>
    %178 = vector.shape_cast %13 : vector<1x512xi1> to vector<1x512xi1>
    %179 = vector.broadcast %178 : vector<1x512xi1> to vector<8x512xi1>
    %180 = arith.select %179, %176, %177 : vector<8x512xi1>, vector<8x512xbf16>
    %c64_123 = arith.constant 64 : index
    %c0_124 = arith.constant 0 : index
    %181 = vector.load %arg11[%c64_123, %c0_124] : memref<72x512xbf16, #tpu.memory_space<vmem>>, vector<8x512xbf16>
    tpu.vector_store %arg11[%c64_123, %c0_124], %180 {strides = array<i32>} : memref<72x512xbf16, #tpu.memory_space<vmem>>, vector<8x512xbf16>,
    %c2 = arith.constant 2 : index
    %c0_125 = arith.constant 0 : index
    %c0_126 = arith.constant 0 : index
    %182 = vector.load %arg3[%c2, %c0_125, %c0_126] : memref<3x8x72xbf16, #tpu.memory_space<vmem>>, vector<1x8x72xbf16>
    %183 = vector.shape_cast %182 : vector<1x8x72xbf16> to vector<8x72xbf16>
    %c0_127 = arith.constant 0 : index
    %c0_128 = arith.constant 0 : index
    %184 = vector.load %arg11[%c0_127, %c0_128] : memref<72x512xbf16, #tpu.memory_space<vmem>>, vector<72x512xbf16>
    %cst_129 = arith.constant dense<0.000000e+00> : vector<8x512xf32>
    %185 = tpu.matmul %183, %184, %cst_129 {dimension_numbers = #tpu.dot_dimension_numbers<[1], [0], [0], [1], [0, 0, 1, 1], [], []>} : vector<8x72xbf16>, vector<72x512xbf16>, vector<8x512xf32> -> vector<8x512xf32>
    %186 = arith.addf %131, %185 : vector<8x512xf32>
    %c0_130 = arith.constant 0 : index
    %c0_131 = arith.constant 0 : index
    %187 = vector.load %arg4[%c0_130, %c0_131] : memref<8x1xf32, #tpu.memory_space<vmem>>, vector<8x1xf32>
    %188 = vector.broadcast %187 : vector<8x1xf32> to vector<8x512xf32>
    %189 = arith.mulf %186, %188 : vector<8x512xf32>
    %c0_132 = arith.constant 0 : index
    %c0_133 = arith.constant 0 : index
    %190 = vector.load %arg5[%c0_132, %c0_133] : memref<8x1xf32, #tpu.memory_space<vmem>>, vector<8x1xf32>
    %191 = vector.broadcast %190 : vector<8x1xf32> to vector<8x512xf32>
    %192 = arith.addf %189, %191 : vector<8x512xf32>
    %cst_134 = arith.constant 0.000000e+00 : f32
    %193 = vector.broadcast %cst_134 : f32 to vector<8x512xf32>
    %194 = arith.cmpf ogt, %192, %193 : vector<8x512xf32>
    %cst_135 = arith.constant 0.00999999977 : f32
    %195 = vector.broadcast %cst_135 : f32 to vector<8x512xf32>
    %196 = arith.mulf %195, %192 : vector<8x512xf32>
    %197 = arith.select %194, %192, %196 : vector<8x512xi1>, vector<8x512xf32>
    %198 = arith.truncf %197 : vector<8x512xf32> to vector<8x512xbf16>
    %cst_136 = arith.constant 0.000000e+00 : bf16
    %199 = vector.broadcast %cst_136 : bf16 to vector<8x128xbf16>
    %c0_137 = arith.constant 0 : index
    %c0_138 = arith.constant 0 : index
    %200 = vector.load %arg10[%c0_137, %c0_138] : memref<8x768xbf16, #tpu.memory_space<vmem>>, vector<8x128xbf16>
    tpu.vector_store %arg10[%c0_137, %c0_138], %199 {strides = array<i32>} : memref<8x768xbf16, #tpu.memory_space<vmem>>, vector<8x128xbf16>,
    %c0_139 = arith.constant 0 : index
    %c640_140 = arith.constant 640 : index
    %201 = vector.load %arg10[%c0_139, %c640_140] : memref<8x768xbf16, #tpu.memory_space<vmem>>, vector<8x128xbf16>
    tpu.vector_store %arg10[%c0_139, %c640_140], %199 {strides = array<i32>} : memref<8x768xbf16, #tpu.memory_space<vmem>>, vector<8x128xbf16>,
    %c0_141 = arith.constant 0 : index
    %c128_142 = arith.constant 128 : index
    %202 = vector.load %arg10[%c0_141, %c128_142] : memref<8x768xbf16, #tpu.memory_space<vmem>>, vector<8x512xbf16>
    tpu.vector_store %arg10[%c0_141, %c128_142], %198 {strides = array<i32>} : memref<8x768xbf16, #tpu.memory_space<vmem>>, vector<8x512xbf16>,
    %c0_143 = arith.constant 0 : index
    %c55_144 = arith.constant 55 : index
    %203 = vector.load %arg10[%c0_143, %c55_144] : memref<8x768xbf16, #tpu.memory_space<vmem>>, vector<8x512xbf16>
    %cst_145 = arith.constant 0.000000e+00 : bf16
    %204 = vector.broadcast %cst_145 : bf16 to vector<8x512xbf16>
    %205 = vector.shape_cast %10 : vector<1x512xi1> to vector<1x512xi1>
    %206 = vector.broadcast %205 : vector<1x512xi1> to vector<8x512xi1>
    %207 = arith.select %206, %203, %204 : vector<8x512xi1>, vector<8x512xbf16>
    %c0_146 = arith.constant 0 : index
    %c0_147 = arith.constant 0 : index
    %208 = vector.load %arg11[%c0_146, %c0_147] : memref<72x512xbf16, #tpu.memory_space<vmem>>, vector<8x512xbf16>
    tpu.vector_store %arg11[%c0_146, %c0_147], %207 {strides = array<i32>} : memref<72x512xbf16, #tpu.memory_space<vmem>>, vector<8x512xbf16>,
    %c0_148 = arith.constant 0 : index
    %c56_149 = arith.constant 56 : index
    %209 = vector.load %arg10[%c0_148, %c56_149] : memref<8x768xbf16, #tpu.memory_space<vmem>>, vector<8x512xbf16>
    %cst_150 = arith.constant 0.000000e+00 : bf16
    %210 = vector.broadcast %cst_150 : bf16 to vector<8x512xbf16>
    %211 = vector.shape_cast %3 : vector<1x512xi1> to vector<1x512xi1>
    %212 = vector.broadcast %211 : vector<1x512xi1> to vector<8x512xi1>
    %213 = arith.select %212, %209, %210 : vector<8x512xi1>, vector<8x512xbf16>
    %c8_151 = arith.constant 8 : index
    %c0_152 = arith.constant 0 : index
    %214 = vector.load %arg11[%c8_151, %c0_152] : memref<72x512xbf16, #tpu.memory_space<vmem>>, vector<8x512xbf16>
    tpu.vector_store %arg11[%c8_151, %c0_152], %213 {strides = array<i32>} : memref<72x512xbf16, #tpu.memory_space<vmem>>, vector<8x512xbf16>,
    %c0_153 = arith.constant 0 : index
    %c57_154 = arith.constant 57 : index
    %215 = vector.load %arg10[%c0_153, %c57_154] : memref<8x768xbf16, #tpu.memory_space<vmem>>, vector<8x512xbf16>
    %cst_155 = arith.constant 0.000000e+00 : bf16
    %216 = vector.broadcast %cst_155 : bf16 to vector<8x512xbf16>
    %217 = vector.shape_cast %11 : vector<1x512xi1> to vector<1x512xi1>
    %218 = vector.broadcast %217 : vector<1x512xi1> to vector<8x512xi1>
    %219 = arith.select %218, %215, %216 : vector<8x512xi1>, vector<8x512xbf16>
    %c16_156 = arith.constant 16 : index
    %c0_157 = arith.constant 0 : index
    %220 = vector.load %arg11[%c16_156, %c0_157] : memref<72x512xbf16, #tpu.memory_space<vmem>>, vector<8x512xbf16>
    tpu.vector_store %arg11[%c16_156, %c0_157], %219 {strides = array<i32>} : memref<72x512xbf16, #tpu.memory_space<vmem>>, vector<8x512xbf16>,
    %c0_158 = arith.constant 0 : index
    %c63_159 = arith.constant 63 : index
    %221 = vector.load %arg10[%c0_158, %c63_159] : memref<8x768xbf16, #tpu.memory_space<vmem>>, vector<8x512xbf16>
    %cst_160 = arith.constant 0.000000e+00 : bf16
    %222 = vector.broadcast %cst_160 : bf16 to vector<8x512xbf16>
    %223 = vector.shape_cast %7 : vector<1x512xi1> to vector<1x512xi1>
    %224 = vector.broadcast %223 : vector<1x512xi1> to vector<8x512xi1>
    %225 = arith.select %224, %221, %222 : vector<8x512xi1>, vector<8x512xbf16>
    %c24_161 = arith.constant 24 : index
    %c0_162 = arith.constant 0 : index
    %226 = vector.load %arg11[%c24_161, %c0_162] : memref<72x512xbf16, #tpu.memory_space<vmem>>, vector<8x512xbf16>
    tpu.vector_store %arg11[%c24_161, %c0_162], %225 {strides = array<i32>} : memref<72x512xbf16, #tpu.memory_space<vmem>>, vector<8x512xbf16>,
    %c0_163 = arith.constant 0 : index
    %c64_164 = arith.constant 64 : index
    %227 = vector.load %arg10[%c0_163, %c64_164] : memref<8x768xbf16, #tpu.memory_space<vmem>>, vector<8x512xbf16>
    %c32_165 = arith.constant 32 : index
    %c0_166 = arith.constant 0 : index
    %228 = vector.load %arg11[%c32_165, %c0_166] : memref<72x512xbf16, #tpu.memory_space<vmem>>, vector<8x512xbf16>
    tpu.vector_store %arg11[%c32_165, %c0_166], %227 {strides = array<i32>} : memref<72x512xbf16, #tpu.memory_space<vmem>>, vector<8x512xbf16>,
    %c0_167 = arith.constant 0 : index
    %c65_168 = arith.constant 65 : index
    %229 = vector.load %arg10[%c0_167, %c65_168] : memref<8x768xbf16, #tpu.memory_space<vmem>>, vector<8x512xbf16>
    %cst_169 = arith.constant 0.000000e+00 : bf16
    %230 = vector.broadcast %cst_169 : bf16 to vector<8x512xbf16>
    %231 = vector.shape_cast %9 : vector<1x512xi1> to vector<1x512xi1>
    %232 = vector.broadcast %231 : vector<1x512xi1> to vector<8x512xi1>
    %233 = arith.select %232, %229, %230 : vector<8x512xi1>, vector<8x512xbf16>
    %c40_170 = arith.constant 40 : index
    %c0_171 = arith.constant 0 : index
    %234 = vector.load %arg11[%c40_170, %c0_171] : memref<72x512xbf16, #tpu.memory_space<vmem>>, vector<8x512xbf16>
    tpu.vector_store %arg11[%c40_170, %c0_171], %233 {strides = array<i32>} : memref<72x512xbf16, #tpu.memory_space<vmem>>, vector<8x512xbf16>,
    %c0_172 = arith.constant 0 : index
    %c71_173 = arith.constant 71 : index
    %235 = vector.load %arg10[%c0_172, %c71_173] : memref<8x768xbf16, #tpu.memory_space<vmem>>, vector<8x512xbf16>
    %cst_174 = arith.constant 0.000000e+00 : bf16
    %236 = vector.broadcast %cst_174 : bf16 to vector<8x512xbf16>
    %237 = vector.shape_cast %12 : vector<1x512xi1> to vector<1x512xi1>
    %238 = vector.broadcast %237 : vector<1x512xi1> to vector<8x512xi1>
    %239 = arith.select %238, %235, %236 : vector<8x512xi1>, vector<8x512xbf16>
    %c48_175 = arith.constant 48 : index
    %c0_176 = arith.constant 0 : index
    %240 = vector.load %arg11[%c48_175, %c0_176] : memref<72x512xbf16, #tpu.memory_space<vmem>>, vector<8x512xbf16>
    tpu.vector_store %arg11[%c48_175, %c0_176], %239 {strides = array<i32>} : memref<72x512xbf16, #tpu.memory_space<vmem>>, vector<8x512xbf16>,
    %c0_177 = arith.constant 0 : index
    %c72_178 = arith.constant 72 : index
    %241 = vector.load %arg10[%c0_177, %c72_178] : memref<8x768xbf16, #tpu.memory_space<vmem>>, vector<8x512xbf16>
    %cst_179 = arith.constant 0.000000e+00 : bf16
    %242 = vector.broadcast %cst_179 : bf16 to vector<8x512xbf16>
    %243 = vector.shape_cast %5 : vector<1x512xi1> to vector<1x512xi1>
    %244 = vector.broadcast %243 : vector<1x512xi1> to vector<8x512xi1>
    %245 = arith.select %244, %241, %242 : vector<8x512xi1>, vector<8x512xbf16>
    %c56_180 = arith.constant 56 : index
    %c0_181 = arith.constant 0 : index
    %246 = vector.load %arg11[%c56_180, %c0_181] : memref<72x512xbf16, #tpu.memory_space<vmem>>, vector<8x512xbf16>
    tpu.vector_store %arg11[%c56_180, %c0_181], %245 {strides = array<i32>} : memref<72x512xbf16, #tpu.memory_space<vmem>>, vector<8x512xbf16>,
    %c0_182 = arith.constant 0 : index
    %c73_183 = arith.constant 73 : index
    %247 = vector.load %arg10[%c0_182, %c73_183] : memref<8x768xbf16, #tpu.memory_space<vmem>>, vector<8x512xbf16>
    %cst_184 = arith.constant 0.000000e+00 : bf16
    %248 = vector.broadcast %cst_184 : bf16 to vector<8x512xbf16>
    %249 = vector.shape_cast %13 : vector<1x512xi1> to vector<1x512xi1>
    %250 = vector.broadcast %249 : vector<1x512xi1> to vector<8x512xi1>
    %251 = arith.select %250, %247, %248 : vector<8x512xi1>, vector<8x512xbf16>
    %c64_185 = arith.constant 64 : index
    %c0_186 = arith.constant 0 : index
    %252 = vector.load %arg11[%c64_185, %c0_186] : memref<72x512xbf16, #tpu.memory_space<vmem>>, vector<8x512xbf16>
    tpu.vector_store %arg11[%c64_185, %c0_186], %251 {strides = array<i32>} : memref<72x512xbf16, #tpu.memory_space<vmem>>, vector<8x512xbf16>,
    %c0_187 = arith.constant 0 : index
    %c0_188 = arith.constant 0 : index
    %c0_189 = arith.constant 0 : index
    %253 = vector.load %arg6[%c0_187, %c0_188, %c0_189] : memref<3x8x72xbf16, #tpu.memory_space<vmem>>, vector<1x8x72xbf16>
    %254 = vector.shape_cast %253 : vector<1x8x72xbf16> to vector<8x72xbf16>
    %c0_190 = arith.constant 0 : index
    %c0_191 = arith.constant 0 : index
    %255 = vector.load %arg11[%c0_190, %c0_191] : memref<72x512xbf16, #tpu.memory_space<vmem>>, vector<72x512xbf16>
    %cst_192 = arith.constant dense<0.000000e+00> : vector<8x512xf32>
    %256 = tpu.matmul %254, %255, %cst_192 {dimension_numbers = #tpu.dot_dimension_numbers<[1], [0], [0], [1], [0, 0, 1, 1], [], []>} : vector<8x72xbf16>, vector<72x512xbf16>, vector<8x512xf32> -> vector<8x512xf32>
    %c0_193 = arith.constant 0 : index
    %c119_194 = arith.constant 119 : index
    %257 = vector.load %arg10[%c0_193, %c119_194] : memref<8x768xbf16, #tpu.memory_space<vmem>>, vector<8x512xbf16>
    %cst_195 = arith.constant 0.000000e+00 : bf16
    %258 = vector.broadcast %cst_195 : bf16 to vector<8x512xbf16>
    %259 = vector.shape_cast %10 : vector<1x512xi1> to vector<1x512xi1>
    %260 = vector.broadcast %259 : vector<1x512xi1> to vector<8x512xi1>
    %261 = arith.select %260, %257, %258 : vector<8x512xi1>, vector<8x512xbf16>
    %c0_196 = arith.constant 0 : index
    %c0_197 = arith.constant 0 : index
    %262 = vector.load %arg11[%c0_196, %c0_197] : memref<72x512xbf16, #tpu.memory_space<vmem>>, vector<8x512xbf16>
    tpu.vector_store %arg11[%c0_196, %c0_197], %261 {strides = array<i32>} : memref<72x512xbf16, #tpu.memory_space<vmem>>, vector<8x512xbf16>,
    %c0_198 = arith.constant 0 : index
    %c120_199 = arith.constant 120 : index
    %263 = vector.load %arg10[%c0_198, %c120_199] : memref<8x768xbf16, #tpu.memory_space<vmem>>, vector<8x512xbf16>
    %cst_200 = arith.constant 0.000000e+00 : bf16
    %264 = vector.broadcast %cst_200 : bf16 to vector<8x512xbf16>
    %265 = vector.shape_cast %3 : vector<1x512xi1> to vector<1x512xi1>
    %266 = vector.broadcast %265 : vector<1x512xi1> to vector<8x512xi1>
    %267 = arith.select %266, %263, %264 : vector<8x512xi1>, vector<8x512xbf16>
    %c8_201 = arith.constant 8 : index
    %c0_202 = arith.constant 0 : index
    %268 = vector.load %arg11[%c8_201, %c0_202] : memref<72x512xbf16, #tpu.memory_space<vmem>>, vector<8x512xbf16>
    tpu.vector_store %arg11[%c8_201, %c0_202], %267 {strides = array<i32>} : memref<72x512xbf16, #tpu.memory_space<vmem>>, vector<8x512xbf16>,
    %c0_203 = arith.constant 0 : index
    %c121_204 = arith.constant 121 : index
    %269 = vector.load %arg10[%c0_203, %c121_204] : memref<8x768xbf16, #tpu.memory_space<vmem>>, vector<8x512xbf16>
    %cst_205 = arith.constant 0.000000e+00 : bf16
    %270 = vector.broadcast %cst_205 : bf16 to vector<8x512xbf16>
    %271 = vector.shape_cast %11 : vector<1x512xi1> to vector<1x512xi1>
    %272 = vector.broadcast %271 : vector<1x512xi1> to vector<8x512xi1>
    %273 = arith.select %272, %269, %270 : vector<8x512xi1>, vector<8x512xbf16>
    %c16_206 = arith.constant 16 : index
    %c0_207 = arith.constant 0 : index
    %274 = vector.load %arg11[%c16_206, %c0_207] : memref<72x512xbf16, #tpu.memory_space<vmem>>, vector<8x512xbf16>
    tpu.vector_store %arg11[%c16_206, %c0_207], %273 {strides = array<i32>} : memref<72x512xbf16, #tpu.memory_space<vmem>>, vector<8x512xbf16>,
    %c0_208 = arith.constant 0 : index
    %c127_209 = arith.constant 127 : index
    %275 = vector.load %arg10[%c0_208, %c127_209] : memref<8x768xbf16, #tpu.memory_space<vmem>>, vector<8x512xbf16>
    %cst_210 = arith.constant 0.000000e+00 : bf16
    %276 = vector.broadcast %cst_210 : bf16 to vector<8x512xbf16>
    %277 = vector.shape_cast %7 : vector<1x512xi1> to vector<1x512xi1>
    %278 = vector.broadcast %277 : vector<1x512xi1> to vector<8x512xi1>
    %279 = arith.select %278, %275, %276 : vector<8x512xi1>, vector<8x512xbf16>
    %c24_211 = arith.constant 24 : index
    %c0_212 = arith.constant 0 : index
    %280 = vector.load %arg11[%c24_211, %c0_212] : memref<72x512xbf16, #tpu.memory_space<vmem>>, vector<8x512xbf16>
    tpu.vector_store %arg11[%c24_211, %c0_212], %279 {strides = array<i32>} : memref<72x512xbf16, #tpu.memory_space<vmem>>, vector<8x512xbf16>,
    %c0_213 = arith.constant 0 : index
    %c128_214 = arith.constant 128 : index
    %281 = vector.load %arg10[%c0_213, %c128_214] : memref<8x768xbf16, #tpu.memory_space<vmem>>, vector<8x512xbf16>
    %c32_215 = arith.constant 32 : index
    %c0_216 = arith.constant 0 : index
    %282 = vector.load %arg11[%c32_215, %c0_216] : memref<72x512xbf16, #tpu.memory_space<vmem>>, vector<8x512xbf16>
    tpu.vector_store %arg11[%c32_215, %c0_216], %281 {strides = array<i32>} : memref<72x512xbf16, #tpu.memory_space<vmem>>, vector<8x512xbf16>,
    %c0_217 = arith.constant 0 : index
    %c129_218 = arith.constant 129 : index
    %283 = vector.load %arg10[%c0_217, %c129_218] : memref<8x768xbf16, #tpu.memory_space<vmem>>, vector<8x512xbf16>
    %cst_219 = arith.constant 0.000000e+00 : bf16
    %284 = vector.broadcast %cst_219 : bf16 to vector<8x512xbf16>
    %285 = vector.shape_cast %9 : vector<1x512xi1> to vector<1x512xi1>
    %286 = vector.broadcast %285 : vector<1x512xi1> to vector<8x512xi1>
    %287 = arith.select %286, %283, %284 : vector<8x512xi1>, vector<8x512xbf16>
    %c40_220 = arith.constant 40 : index
    %c0_221 = arith.constant 0 : index
    %288 = vector.load %arg11[%c40_220, %c0_221] : memref<72x512xbf16, #tpu.memory_space<vmem>>, vector<8x512xbf16>
    tpu.vector_store %arg11[%c40_220, %c0_221], %287 {strides = array<i32>} : memref<72x512xbf16, #tpu.memory_space<vmem>>, vector<8x512xbf16>,
    %c0_222 = arith.constant 0 : index
    %c135_223 = arith.constant 135 : index
    %289 = vector.load %arg10[%c0_222, %c135_223] : memref<8x768xbf16, #tpu.memory_space<vmem>>, vector<8x512xbf16>
    %cst_224 = arith.constant 0.000000e+00 : bf16
    %290 = vector.broadcast %cst_224 : bf16 to vector<8x512xbf16>
    %291 = vector.shape_cast %12 : vector<1x512xi1> to vector<1x512xi1>
    %292 = vector.broadcast %291 : vector<1x512xi1> to vector<8x512xi1>
    %293 = arith.select %292, %289, %290 : vector<8x512xi1>, vector<8x512xbf16>
    %c48_225 = arith.constant 48 : index
    %c0_226 = arith.constant 0 : index
    %294 = vector.load %arg11[%c48_225, %c0_226] : memref<72x512xbf16, #tpu.memory_space<vmem>>, vector<8x512xbf16>
    tpu.vector_store %arg11[%c48_225, %c0_226], %293 {strides = array<i32>} : memref<72x512xbf16, #tpu.memory_space<vmem>>, vector<8x512xbf16>,
    %c0_227 = arith.constant 0 : index
    %c136_228 = arith.constant 136 : index
    %295 = vector.load %arg10[%c0_227, %c136_228] : memref<8x768xbf16, #tpu.memory_space<vmem>>, vector<8x512xbf16>
    %cst_229 = arith.constant 0.000000e+00 : bf16
    %296 = vector.broadcast %cst_229 : bf16 to vector<8x512xbf16>
    %297 = vector.shape_cast %5 : vector<1x512xi1> to vector<1x512xi1>
    %298 = vector.broadcast %297 : vector<1x512xi1> to vector<8x512xi1>
    %299 = arith.select %298, %295, %296 : vector<8x512xi1>, vector<8x512xbf16>
    %c56_230 = arith.constant 56 : index
    %c0_231 = arith.constant 0 : index
    %300 = vector.load %arg11[%c56_230, %c0_231] : memref<72x512xbf16, #tpu.memory_space<vmem>>, vector<8x512xbf16>
    tpu.vector_store %arg11[%c56_230, %c0_231], %299 {strides = array<i32>} : memref<72x512xbf16, #tpu.memory_space<vmem>>, vector<8x512xbf16>,
    %c0_232 = arith.constant 0 : index
    %c137_233 = arith.constant 137 : index
    %301 = vector.load %arg10[%c0_232, %c137_233] : memref<8x768xbf16, #tpu.memory_space<vmem>>, vector<8x512xbf16>
    %cst_234 = arith.constant 0.000000e+00 : bf16
    %302 = vector.broadcast %cst_234 : bf16 to vector<8x512xbf16>
    %303 = vector.shape_cast %13 : vector<1x512xi1> to vector<1x512xi1>
    %304 = vector.broadcast %303 : vector<1x512xi1> to vector<8x512xi1>
    %305 = arith.select %304, %301, %302 : vector<8x512xi1>, vector<8x512xbf16>
    %c64_235 = arith.constant 64 : index
    %c0_236 = arith.constant 0 : index
    %306 = vector.load %arg11[%c64_235, %c0_236] : memref<72x512xbf16, #tpu.memory_space<vmem>>, vector<8x512xbf16>
    tpu.vector_store %arg11[%c64_235, %c0_236], %305 {strides = array<i32>} : memref<72x512xbf16, #tpu.memory_space<vmem>>, vector<8x512xbf16>,
    %c1_237 = arith.constant 1 : index
    %c0_238 = arith.constant 0 : index
    %c0_239 = arith.constant 0 : index
    %307 = vector.load %arg6[%c1_237, %c0_238, %c0_239] : memref<3x8x72xbf16, #tpu.memory_space<vmem>>, vector<1x8x72xbf16>
    %308 = vector.shape_cast %307 : vector<1x8x72xbf16> to vector<8x72xbf16>
    %c0_240 = arith.constant 0 : index
    %c0_241 = arith.constant 0 : index
    %309 = vector.load %arg11[%c0_240, %c0_241] : memref<72x512xbf16, #tpu.memory_space<vmem>>, vector<72x512xbf16>
    %cst_242 = arith.constant dense<0.000000e+00> : vector<8x512xf32>
    %310 = tpu.matmul %308, %309, %cst_242 {dimension_numbers = #tpu.dot_dimension_numbers<[1], [0], [0], [1], [0, 0, 1, 1], [], []>} : vector<8x72xbf16>, vector<72x512xbf16>, vector<8x512xf32> -> vector<8x512xf32>
    %311 = arith.addf %256, %310 : vector<8x512xf32>
    %c0_243 = arith.constant 0 : index
    %c183_244 = arith.constant 183 : index
    %312 = vector.load %arg10[%c0_243, %c183_244] : memref<8x768xbf16, #tpu.memory_space<vmem>>, vector<8x512xbf16>
    %cst_245 = arith.constant 0.000000e+00 : bf16
    %313 = vector.broadcast %cst_245 : bf16 to vector<8x512xbf16>
    %314 = vector.shape_cast %10 : vector<1x512xi1> to vector<1x512xi1>
    %315 = vector.broadcast %314 : vector<1x512xi1> to vector<8x512xi1>
    %316 = arith.select %315, %312, %313 : vector<8x512xi1>, vector<8x512xbf16>
    %c0_246 = arith.constant 0 : index
    %c0_247 = arith.constant 0 : index
    %317 = vector.load %arg11[%c0_246, %c0_247] : memref<72x512xbf16, #tpu.memory_space<vmem>>, vector<8x512xbf16>
    tpu.vector_store %arg11[%c0_246, %c0_247], %316 {strides = array<i32>} : memref<72x512xbf16, #tpu.memory_space<vmem>>, vector<8x512xbf16>,
    %c0_248 = arith.constant 0 : index
    %c184_249 = arith.constant 184 : index
    %318 = vector.load %arg10[%c0_248, %c184_249] : memref<8x768xbf16, #tpu.memory_space<vmem>>, vector<8x512xbf16>
    %cst_250 = arith.constant 0.000000e+00 : bf16
    %319 = vector.broadcast %cst_250 : bf16 to vector<8x512xbf16>
    %320 = vector.shape_cast %3 : vector<1x512xi1> to vector<1x512xi1>
    %321 = vector.broadcast %320 : vector<1x512xi1> to vector<8x512xi1>
    %322 = arith.select %321, %318, %319 : vector<8x512xi1>, vector<8x512xbf16>
    %c8_251 = arith.constant 8 : index
    %c0_252 = arith.constant 0 : index
    %323 = vector.load %arg11[%c8_251, %c0_252] : memref<72x512xbf16, #tpu.memory_space<vmem>>, vector<8x512xbf16>
    tpu.vector_store %arg11[%c8_251, %c0_252], %322 {strides = array<i32>} : memref<72x512xbf16, #tpu.memory_space<vmem>>, vector<8x512xbf16>,
    %c0_253 = arith.constant 0 : index
    %c185_254 = arith.constant 185 : index
    %324 = vector.load %arg10[%c0_253, %c185_254] : memref<8x768xbf16, #tpu.memory_space<vmem>>, vector<8x512xbf16>
    %cst_255 = arith.constant 0.000000e+00 : bf16
    %325 = vector.broadcast %cst_255 : bf16 to vector<8x512xbf16>
    %326 = vector.shape_cast %11 : vector<1x512xi1> to vector<1x512xi1>
    %327 = vector.broadcast %326 : vector<1x512xi1> to vector<8x512xi1>
    %328 = arith.select %327, %324, %325 : vector<8x512xi1>, vector<8x512xbf16>
    %c16_256 = arith.constant 16 : index
    %c0_257 = arith.constant 0 : index
    %329 = vector.load %arg11[%c16_256, %c0_257] : memref<72x512xbf16, #tpu.memory_space<vmem>>, vector<8x512xbf16>
    tpu.vector_store %arg11[%c16_256, %c0_257], %328 {strides = array<i32>} : memref<72x512xbf16, #tpu.memory_space<vmem>>, vector<8x512xbf16>,
    %c0_258 = arith.constant 0 : index
    %c191_259 = arith.constant 191 : index
    %330 = vector.load %arg10[%c0_258, %c191_259] : memref<8x768xbf16, #tpu.memory_space<vmem>>, vector<8x512xbf16>
    %cst_260 = arith.constant 0.000000e+00 : bf16
    %331 = vector.broadcast %cst_260 : bf16 to vector<8x512xbf16>
    %332 = vector.shape_cast %7 : vector<1x512xi1> to vector<1x512xi1>
    %333 = vector.broadcast %332 : vector<1x512xi1> to vector<8x512xi1>
    %334 = arith.select %333, %330, %331 : vector<8x512xi1>, vector<8x512xbf16>
    %c24_261 = arith.constant 24 : index
    %c0_262 = arith.constant 0 : index
    %335 = vector.load %arg11[%c24_261, %c0_262] : memref<72x512xbf16, #tpu.memory_space<vmem>>, vector<8x512xbf16>
    tpu.vector_store %arg11[%c24_261, %c0_262], %334 {strides = array<i32>} : memref<72x512xbf16, #tpu.memory_space<vmem>>, vector<8x512xbf16>,
    %c0_263 = arith.constant 0 : index
    %c192_264 = arith.constant 192 : index
    %336 = vector.load %arg10[%c0_263, %c192_264] : memref<8x768xbf16, #tpu.memory_space<vmem>>, vector<8x512xbf16>
    %c32_265 = arith.constant 32 : index
    %c0_266 = arith.constant 0 : index
    %337 = vector.load %arg11[%c32_265, %c0_266] : memref<72x512xbf16, #tpu.memory_space<vmem>>, vector<8x512xbf16>
    tpu.vector_store %arg11[%c32_265, %c0_266], %336 {strides = array<i32>} : memref<72x512xbf16, #tpu.memory_space<vmem>>, vector<8x512xbf16>,
    %c0_267 = arith.constant 0 : index
    %c193_268 = arith.constant 193 : index
    %338 = vector.load %arg10[%c0_267, %c193_268] : memref<8x768xbf16, #tpu.memory_space<vmem>>, vector<8x512xbf16>
    %cst_269 = arith.constant 0.000000e+00 : bf16
    %339 = vector.broadcast %cst_269 : bf16 to vector<8x512xbf16>
    %340 = vector.shape_cast %9 : vector<1x512xi1> to vector<1x512xi1>
    %341 = vector.broadcast %340 : vector<1x512xi1> to vector<8x512xi1>
    %342 = arith.select %341, %338, %339 : vector<8x512xi1>, vector<8x512xbf16>
    %c40_270 = arith.constant 40 : index
    %c0_271 = arith.constant 0 : index
    %343 = vector.load %arg11[%c40_270, %c0_271] : memref<72x512xbf16, #tpu.memory_space<vmem>>, vector<8x512xbf16>
    tpu.vector_store %arg11[%c40_270, %c0_271], %342 {strides = array<i32>} : memref<72x512xbf16, #tpu.memory_space<vmem>>, vector<8x512xbf16>,
    %c0_272 = arith.constant 0 : index
    %c199_273 = arith.constant 199 : index
    %344 = vector.load %arg10[%c0_272, %c199_273] : memref<8x768xbf16, #tpu.memory_space<vmem>>, vector<8x512xbf16>
    %cst_274 = arith.constant 0.000000e+00 : bf16
    %345 = vector.broadcast %cst_274 : bf16 to vector<8x512xbf16>
    %346 = vector.shape_cast %12 : vector<1x512xi1> to vector<1x512xi1>
    %347 = vector.broadcast %346 : vector<1x512xi1> to vector<8x512xi1>
    %348 = arith.select %347, %344, %345 : vector<8x512xi1>, vector<8x512xbf16>
    %c48_275 = arith.constant 48 : index
    %c0_276 = arith.constant 0 : index
    %349 = vector.load %arg11[%c48_275, %c0_276] : memref<72x512xbf16, #tpu.memory_space<vmem>>, vector<8x512xbf16>
    tpu.vector_store %arg11[%c48_275, %c0_276], %348 {strides = array<i32>} : memref<72x512xbf16, #tpu.memory_space<vmem>>, vector<8x512xbf16>,
    %c0_277 = arith.constant 0 : index
    %c200_278 = arith.constant 200 : index
    %350 = vector.load %arg10[%c0_277, %c200_278] : memref<8x768xbf16, #tpu.memory_space<vmem>>, vector<8x512xbf16>
    %cst_279 = arith.constant 0.000000e+00 : bf16
    %351 = vector.broadcast %cst_279 : bf16 to vector<8x512xbf16>
    %352 = vector.shape_cast %5 : vector<1x512xi1> to vector<1x512xi1>
    %353 = vector.broadcast %352 : vector<1x512xi1> to vector<8x512xi1>
    %354 = arith.select %353, %350, %351 : vector<8x512xi1>, vector<8x512xbf16>
    %c56_280 = arith.constant 56 : index
    %c0_281 = arith.constant 0 : index
    %355 = vector.load %arg11[%c56_280, %c0_281] : memref<72x512xbf16, #tpu.memory_space<vmem>>, vector<8x512xbf16>
    tpu.vector_store %arg11[%c56_280, %c0_281], %354 {strides = array<i32>} : memref<72x512xbf16, #tpu.memory_space<vmem>>, vector<8x512xbf16>,
    %c0_282 = arith.constant 0 : index
    %c201_283 = arith.constant 201 : index
    %356 = vector.load %arg10[%c0_282, %c201_283] : memref<8x768xbf16, #tpu.memory_space<vmem>>, vector<8x512xbf16>
    %cst_284 = arith.constant 0.000000e+00 : bf16
    %357 = vector.broadcast %cst_284 : bf16 to vector<8x512xbf16>
    %358 = vector.shape_cast %13 : vector<1x512xi1> to vector<1x512xi1>
    %359 = vector.broadcast %358 : vector<1x512xi1> to vector<8x512xi1>
    %360 = arith.select %359, %356, %357 : vector<8x512xi1>, vector<8x512xbf16>
    %c64_285 = arith.constant 64 : index
    %c0_286 = arith.constant 0 : index
    %361 = vector.load %arg11[%c64_285, %c0_286] : memref<72x512xbf16, #tpu.memory_space<vmem>>, vector<8x512xbf16>
    tpu.vector_store %arg11[%c64_285, %c0_286], %360 {strides = array<i32>} : memref<72x512xbf16, #tpu.memory_space<vmem>>, vector<8x512xbf16>,
    %c2_287 = arith.constant 2 : index
    %c0_288 = arith.constant 0 : index
    %c0_289 = arith.constant 0 : index
    %362 = vector.load %arg6[%c2_287, %c0_288, %c0_289] : memref<3x8x72xbf16, #tpu.memory_space<vmem>>, vector<1x8x72xbf16>
    %363 = vector.shape_cast %362 : vector<1x8x72xbf16> to vector<8x72xbf16>
    %c0_290 = arith.constant 0 : index
    %c0_291 = arith.constant 0 : index
    %364 = vector.load %arg11[%c0_290, %c0_291] : memref<72x512xbf16, #tpu.memory_space<vmem>>, vector<72x512xbf16>
    %cst_292 = arith.constant dense<0.000000e+00> : vector<8x512xf32>
    %365 = tpu.matmul %363, %364, %cst_292 {dimension_numbers = #tpu.dot_dimension_numbers<[1], [0], [0], [1], [0, 0, 1, 1], [], []>} : vector<8x72xbf16>, vector<72x512xbf16>, vector<8x512xf32> -> vector<8x512xf32>
    %366 = arith.addf %311, %365 : vector<8x512xf32>
    %c0_293 = arith.constant 0 : index
    %c0_294 = arith.constant 0 : index
    %367 = vector.load %arg7[%c0_293, %c0_294] : memref<8x1xf32, #tpu.memory_space<vmem>>, vector<8x1xf32>
    %368 = vector.broadcast %367 : vector<8x1xf32> to vector<8x512xf32>
    %369 = arith.mulf %366, %368 : vector<8x512xf32>
    %c0_295 = arith.constant 0 : index
    %c0_296 = arith.constant 0 : index
    %370 = vector.load %arg8[%c0_295, %c0_296] : memref<8x1xf32, #tpu.memory_space<vmem>>, vector<8x1xf32>
    %371 = vector.broadcast %370 : vector<8x1xf32> to vector<8x512xf32>
    %372 = arith.addf %369, %371 : vector<8x512xf32>
    %cst_297 = arith.constant 0.000000e+00 : f32
    %373 = vector.broadcast %cst_297 : f32 to vector<8x512xf32>
    %374 = arith.cmpf ogt, %372, %373 : vector<8x512xf32>
    %cst_298 = arith.constant 0.00999999977 : f32
    %375 = vector.broadcast %cst_298 : f32 to vector<8x512xf32>
    %376 = arith.mulf %375, %372 : vector<8x512xf32>
    %377 = arith.select %374, %372, %376 : vector<8x512xi1>, vector<8x512xf32>
    %c0_299 = arith.constant 0 : index
    %c0_300 = arith.constant 0 : index
    %c0_301 = arith.constant 0 : index
    %378 = vector.load %arg9[%c0_299, %c0_300, %c0_301] : memref<1x8x512xf32, #tpu.memory_space<vmem>>, vector<1x8x512xf32>
    %379 = vector.shape_cast %378 : vector<1x8x512xf32> to vector<8x512xf32>
    %380 = vector.shape_cast %377 : vector<8x512xf32> to vector<1x8x512xf32>
    tpu.vector_store %arg9[%c0_299, %c0_300, %c0_301], %380 {strides = array<i32>} : memref<1x8x512xf32, #tpu.memory_space<vmem>>, vector<1x8x512xf32>,
    return
  }
  func.func @transform_0(%arg0: i32) -> (i32, i32) {
    %c0_i32 = arith.constant 0 : i32
    %c0_i32_0 = arith.constant 0 : i32
    %c0_i32_1 = arith.constant 0 : i32
    return %c0_i32, %c0_i32_0 : i32, i32
  }
  func.func @transform_1(%arg0: i32) -> (i32, i32, i32) {
    %c0_i32 = arith.constant 0 : i32
    %c0_i32_0 = arith.constant 0 : i32
    %c0_i32_1 = arith.constant 0 : i32
    return %arg0, %c0_i32, %c0_i32_0 : i32, i32, i32
  }
  func.func @transform_2(%arg0: i32) -> (i32, i32, i32) {
    %c0_i32 = arith.constant 0 : i32
    %c0_i32_0 = arith.constant 0 : i32
    %c0_i32_1 = arith.constant 0 : i32
    %c0_i32_2 = arith.constant 0 : i32
    return %c0_i32, %c0_i32_0, %c0_i32_1 : i32, i32, i32
  }
  func.func @transform_3(%arg0: i32) -> (i32, i32) {
    %c0_i32 = arith.constant 0 : i32
    %c0_i32_0 = arith.constant 0 : i32
    %c0_i32_1 = arith.constant 0 : i32
    return %c0_i32, %c0_i32_0 : i32, i32
  }
  func.func @transform_4(%arg0: i32) -> (i32, i32) {
    %c0_i32 = arith.constant 0 : i32
    %c0_i32_0 = arith.constant 0 : i32
    %c0_i32_1 = arith.constant 0 : i32
    return %c0_i32, %c0_i32_0 : i32, i32
  }
  func.func @transform_5(%arg0: i32) -> (i32, i32, i32) {
    %c0_i32 = arith.constant 0 : i32
    %c0_i32_0 = arith.constant 0 : i32
    %c0_i32_1 = arith.constant 0 : i32
    %c0_i32_2 = arith.constant 0 : i32
    return %c0_i32, %c0_i32_0, %c0_i32_1 : i32, i32, i32
  }
  func.func @transform_6(%arg0: i32) -> (i32, i32) {
    %c0_i32 = arith.constant 0 : i32
    %c0_i32_0 = arith.constant 0 : i32
    %c0_i32_1 = arith.constant 0 : i32
    return %c0_i32, %c0_i32_0 : i32, i32
  }
  func.func @transform_7(%arg0: i32) -> (i32, i32) {
    %c0_i32 = arith.constant 0 : i32
    %c0_i32_0 = arith.constant 0 : i32
    %c0_i32_1 = arith.constant 0 : i32
    return %c0_i32, %c0_i32_0 : i32, i32
  }
  func.func @transform_8(%arg0: i32) -> (i32, i32, i32) {
    %c0_i32 = arith.constant 0 : i32
    %c0_i32_0 = arith.constant 0 : i32
    %c0_i32_1 = arith.constant 0 : i32
    return %arg0, %c0_i32, %c0_i32_0 : i32, i32, i32
  }
}

</mosaic_0001>

<llo_original>
// kernel: conv_block_forward.1
$region0: #{conv_block_forward.1}
  #allocation0 [shape = 'u32[]', space=smem, size = 0x4, offset = 0x4, fixed_abs, tag = 'smem constant byte address 0x4 - core index']
  #allocation1 [shape = 'u32[144,128]{1,0:T(1,128)}', space=vmem, size = 0x12000, scoped, tag = 'internal scratch']
  #allocation2 [shape = 'bf16[8,768]{1,0:T(8,128)(2,1)}', space=vmem, size = 0x3000, scoped, tag = 'scratch operand']
  #allocation3 [shape = 'bf16[72,512]{1,0:T(8,128)(2,1)}', space=vmem, size = 0x12000, scoped, tag = 'scratch operand']
  %s0 = inlined_call_operand.vmem [shape: s32[2,512], index: 0, kind: input, shape index: {}]
  %s1 = inlined_call_operand.vmem [shape: f32[2,4,512], index: 1, kind: input, shape index: {}]
  %s2 = inlined_call_operand.vmem [shape: bf16[3,8,72], index: 2, kind: input, shape index: {}]
  %s3 = inlined_call_operand.vmem [shape: f32[8,1], index: 3, kind: input, shape index: {}]
  %s4 = inlined_call_operand.vmem [shape: f32[8,1], index: 4, kind: input, shape index: {}]
  %s5 = inlined_call_operand.vmem [shape: bf16[3,8,72], index: 5, kind: input, shape index: {}]
  %s6 = inlined_call_operand.vmem [shape: f32[8,1], index: 6, kind: input, shape index: {}]
  %s7 = inlined_call_operand.vmem [shape: f32[8,1], index: 7, kind: input, shape index: {}]
  %s8 = inlined_call_operand.vmem [shape: f32[2,8,512], index: 8, kind: output, shape index: {}]
  %s9 = sld [smem:[#allocation0]]
  $region65: #{conv_block_forward.1} parent=0
    _
  %s11 = ssub.s32 1, %s9
  %s12 = scalar_select 0, %s11, %s9
  loop: start=0, step=1, limit=4
  $region2: #{conv_block_forward.1} parent=0 // loop_pre_header
    _
  $region3: #{conv_block_forward.1} parent=0 // loop_header
    %s14 = sphi 0, %s18
    %p15 = scmp.ge.s32.totalorder %s14, 4
    %s22 = sphi 0, %s22
    %s24 = sphi 0, %s22
    %s25 = sphi 0, %s24
    %s39 = sphi 0, %s25
    %s45 = sphi 0, %s47
    %s48 = sphi 0, %s45
    %s49 = sphi 0, %s48
    %s65 = sphi 0, %s49
    %s69 = sphi 0, %s69
    %s71 = sphi 0, %s69
    %s72 = sphi 0, %s71
    %s86 = sphi 0, %s72
    %s90 = sphi 0, %s90
    %s92 = sphi 0, %s90
    %s93 = sphi 0, %s92
    %s107 = sphi 0, %s93
    %s111 = sphi 0, %s111
    %s113 = sphi 0, %s111
    %s114 = sphi 0, %s113
    %s128 = sphi 0, %s114
    %s132 = sphi 0, %s132
    %s134 = sphi 0, %s132
    %s135 = sphi 0, %s134
    %s149 = sphi 0, %s135
    %s153 = sphi 0, %s153
    %s155 = sphi 0, %s153
    %s156 = sphi 0, %s155
    %s170 = sphi 0, %s156
    %s174 = sphi 0, %s174
    %s176 = sphi 0, %s174
    %s177 = sphi 0, %s176
    %s191 = sphi 0, %s177
    %s197 = sphi 0, %s199
    %s200 = sphi 0, %s197
    %s201 = sphi 0, %s200
    %s217 = sphi 0, %s201
  $region4: #{conv_block_forward.1} parent=0 // loop_header_branch
    %17 = sbr.rel (%p15) target = $region8
  $region5: #{conv_block_forward.1} parent=0 // loop_body
    %s19 = ssub.s32 %s14, 1
    %s20 = ssub.s32 %s14, 2
    %s21 = sadd.s32 %s14, 1
    %s23 = sadd.s32 %s22, 1
    %p26 = scmp.eq.s32.totalorder %s14, 1
    %p27 = scmp.ne.s32.totalorder %s22, %s24
    %p28 = scmp.eq.s32.totalorder %s14, 0
    %p29 = por %p27, %p28
    %p30 = scmp.ne.s32.totalorder %s22, %s24
    %p31 = scmp.eq.s32.totalorder %s19, 1
    %p32 = por %p30, %p31
    %p33 = scmp.ne.s32.totalorder %s24, %s25
    %p34 = scmp.eq.s32.totalorder %s19, 0
    %p35 = por %p33, %p34
    %p36 = scmp.ne.s32.totalorder %s24, %s25
    %p37 = scmp.eq.s32.totalorder %s20, 1
    %p38 = por %p36, %p37
    %p40 = scmp.ne.s32.totalorder %s25, %s39
    %p41 = scmp.eq.s32.totalorder %s20, 0
    %p42 = por %p40, %p41
    %s43 = ssub.s32 %s14, %s21
    %p44 = scmp.eq.s32.totalorder %s43, 0
    %s46 = sadd.s32 %s45, 1
    %s47 = scalar_select %p44, %s45, %s46
    %p50 = pneg %p44
    %p51 = scmp.eq.s32.totalorder %s14, 1
    %p52 = por %p50, %p51
    %p53 = scmp.ne.s32.totalorder %s45, %s48
    %p54 = scmp.eq.s32.totalorder %s14, 0
    %p55 = por %p53, %p54
    %p56 = scmp.ne.s32.totalorder %s45, %s48
    %p57 = scmp.eq.s32.totalorder %s19, 1
    %p58 = por %p56, %p57
    %p59 = scmp.ne.s32.totalorder %s48, %s49
    %p60 = scmp.eq.s32.totalorder %s19, 0
    %p61 = por %p59, %p60
    %p62 = scmp.ne.s32.totalorder %s48, %s49
    %p63 = scmp.eq.s32.totalorder %s20, 1
    %p64 = por %p62, %p63
    %p66 = scmp.ne.s32.totalorder %s49, %s65
    %p67 = scmp.eq.s32.totalorder %s20, 0
    %p68 = por %p66, %p67
    %s70 = sadd.s32 %s69, 1
    %p73 = scmp.eq.s32.totalorder %s14, 1
    %p74 = scmp.ne.s32.totalorder %s69, %s71
    %p75 = scmp.eq.s32.totalorder %s14, 0
    %p76 = por %p74, %p75
    %p77 = scmp.ne.s32.totalorder %s69, %s71
    %p78 = scmp.eq.s32.totalorder %s19, 1
    %p79 = por %p77, %p78
    %p80 = scmp.ne.s32.totalorder %s71, %s72
    %p81 = scmp.eq.s32.totalorder %s19, 0
    %p82 = por %p80, %p81
    %p83 = scmp.ne.s32.totalorder %s71, %s72
    %p84 = scmp.eq.s32.totalorder %s20, 1
    %p85 = por %p83, %p84
    %p87 = scmp.ne.s32.totalorder %s72, %s86
    %p88 = scmp.eq.s32.totalorder %s20, 0
    %p89 = por %p87, %p88
    %s91 = sadd.s32 %s90, 1
    %p94 = scmp.eq.s32.totalorder %s14, 1
    %p95 = scmp.ne.s32.totalorder %s90, %s92
    %p96 = scmp.eq.s32.totalorder %s14, 0
    %p97 = por %p95, %p96
    %p98 = scmp.ne.s32.totalorder %s90, %s92
    %p99 = scmp.eq.s32.totalorder %s19, 1
    %p100 = por %p98, %p99
    %p101 = scmp.ne.s32.totalorder %s92, %s93
    %p102 = scmp.eq.s32.totalorder %s19, 0
    %p103 = por %p101, %p102
    %p104 = scmp.ne.s32.totalorder %s92, %s93
    %p105 = scmp.eq.s32.totalorder %s20, 1
    %p106 = por %p104, %p105
    %p108 = scmp.ne.s32.totalorder %s93, %s107
    %p109 = scmp.eq.s32.totalorder %s20, 0
    %p110 = por %p108, %p109
    %s112 = sadd.s32 %s111, 1
    %p115 = scmp.eq.s32.totalorder %s14, 1
    %p116 = scmp.ne.s32.totalorder %s111, %s113
    %p117 = scmp.eq.s32.totalorder %s14, 0
    %p118 = por %p116, %p117
    %p119 = scmp.ne.s32.totalorder %s111, %s113
    %p120 = scmp.eq.s32.totalorder %s19, 1
    %p121 = por %p119, %p120
    %p122 = scmp.ne.s32.totalorder %s113, %s114
    %p123 = scmp.eq.s32.totalorder %s19, 0
    %p124 = por %p122, %p123
    %p125 = scmp.ne.s32.totalorder %s113, %s114
    %p126 = scmp.eq.s32.totalorder %s20, 1
    %p127 = por %p125, %p126
    %p129 = scmp.ne.s32.totalorder %s114, %s128
    %p130 = scmp.eq.s32.totalorder %s20, 0
    %p131 = por %p129, %p130
    %s133 = sadd.s32 %s132, 1
    %p136 = scmp.eq.s32.totalorder %s14, 1
    %p137 = scmp.ne.s32.totalorder %s132, %s134
    %p138 = scmp.eq.s32.totalorder %s14, 0
    %p139 = por %p137, %p138
    %p140 = scmp.ne.s32.totalorder %s132, %s134
    %p141 = scmp.eq.s32.totalorder %s19, 1
    %p142 = por %p140, %p141
    %p143 = scmp.ne.s32.totalorder %s134, %s135
    %p144 = scmp.eq.s32.totalorder %s19, 0
    %p145 = por %p143, %p144
    %p146 = scmp.ne.s32.totalorder %s134, %s135
    %p147 = scmp.eq.s32.totalorder %s20, 1
    %p148 = por %p146, %p147
    %p150 = scmp.ne.s32.totalorder %s135, %s149
    %p151 = scmp.eq.s32.totalorder %s20, 0
    %p152 = por %p150, %p151
    %s154 = sadd.s32 %s153, 1
    %p157 = scmp.eq.s32.totalorder %s14, 1
    %p158 = scmp.ne.s32.totalorder %s153, %s155
    %p159 = scmp.eq.s32.totalorder %s14, 0
    %p160 = por %p158, %p159
    %p161 = scmp.ne.s32.totalorder %s153, %s155
    %p162 = scmp.eq.s32.totalorder %s19, 1
    %p163 = por %p161, %p162
    %p164 = scmp.ne.s32.totalorder %s155, %s156
    %p165 = scmp.eq.s32.totalorder %s19, 0
    %p166 = por %p164, %p165
    %p167 = scmp.ne.s32.totalorder %s155, %s156
    %p168 = scmp.eq.s32.totalorder %s20, 1
    %p169 = por %p167, %p168
    %p171 = scmp.ne.s32.totalorder %s156, %s170
    %p172 = scmp.eq.s32.totalorder %s20, 0
    %p173 = por %p171, %p172
    %s175 = sadd.s32 %s174, 1
    %p178 = scmp.eq.s32.totalorder %s14, 1
    %p179 = scmp.ne.s32.totalorder %s174, %s176
    %p180 = scmp.eq.s32.totalorder %s14, 0
    %p181 = por %p179, %p180
    %p182 = scmp.ne.s32.totalorder %s174, %s176
    %p183 = scmp.eq.s32.totalorder %s19, 1
    %p184 = por %p182, %p183
    %p185 = scmp.ne.s32.totalorder %s176, %s177
    %p186 = scmp.eq.s32.totalorder %s19, 0
    %p187 = por %p185, %p186
    %p188 = scmp.ne.s32.totalorder %s176, %s177
    %p189 = scmp.eq.s32.totalorder %s20, 1
    %p190 = por %p188, %p189
    %p192 = scmp.ne.s32.totalorder %s177, %s191
    %p193 = scmp.eq.s32.totalorder %s20, 0
    %p194 = por %p192, %p193
    %s195 = ssub.s32 %s14, %s21
    %p196 = scmp.eq.s32.totalorder %s195, 0
    %s198 = sadd.s32 %s197, 1
    %s199 = scalar_select %p196, %s197, %s198
    %p202 = pneg %p196
    %p203 = scmp.eq.s32.totalorder %s14, 1
    %p204 = por %p202, %p203
    %p205 = scmp.ne.s32.totalorder %s197, %s200
    %p206 = scmp.eq.s32.totalorder %s14, 0
    %p207 = por %p205, %p206
    %p208 = scmp.ne.s32.totalorder %s197, %s200
    %p209 = scmp.eq.s32.totalorder %s19, 1
    %p210 = por %p208, %p209
    %p211 = scmp.ne.s32.totalorder %s200, %s201
    %p212 = scmp.eq.s32.totalorder %s19, 0
    %p213 = por %p211, %p212
    %p214 = scmp.ne.s32.totalorder %s200, %s201
    %p215 = scmp.eq.s32.totalorder %s20, 1
    %p216 = por %p214, %p215
    %p218 = scmp.ne.s32.totalorder %s201, %s217
    %p219 = scmp.eq.s32.totalorder %s20, 0
    %p220 = por %p218, %p219
    %p221 = scmp.le.s32.totalorder 1, %s14
    %p222 = scmp.lt.s32.totalorder %s14, 3
    %p223 = pnand %p221, %p222
    %p224 = pneg %p223
    // Predicated region
    $region9: #{conv_block_forward.1} parent=5 // pred_check
      _
    $region10: #{conv_block_forward.1} parent=5 // pred_check_branch
      %226 = sbr.rel (%p223) target = $region12
    $region11: #{conv_block_forward.1} parent=5 // pred_region
      %s227 = ssub.s32 %s14, 1
      // Predicated region
      $region13: #{conv_block_forward.1} parent=11 // pred_check
        %p228 = pneg %p35
      $region14: #{conv_block_forward.1} parent=11 // pred_check_branch
        %230 = sbr.rel (%p228) target = $region16
      $region15: #{conv_block_forward.1} parent=11 // pred_region
        _
      $region16: #{conv_block_forward.1} parent=11 // pred_fallthru
        _
      // Predicated region
      $region17: #{conv_block_forward.1} parent=11 // pred_check
        %p231 = pneg %p82
      $region18: #{conv_block_forward.1} parent=11 // pred_check_branch
        %233 = sbr.rel (%p231) target = $region20
      $region19: #{conv_block_forward.1} parent=11 // pred_region
        _
      $region20: #{conv_block_forward.1} parent=11 // pred_fallthru
        _
      // Predicated region
      $region21: #{conv_block_forward.1} parent=11 // pred_check
        %p234 = pneg %p103
      $region22: #{conv_block_forward.1} parent=11 // pred_check_branch
        %236 = sbr.rel (%p234) target = $region24
      $region23: #{conv_block_forward.1} parent=11 // pred_region
        _
      $region24: #{conv_block_forward.1} parent=11 // pred_fallthru
        _
      // Predicated region
      $region25: #{conv_block_forward.1} parent=11 // pred_check
        %p237 = pneg %p124
      $region26: #{conv_block_forward.1} parent=11 // pred_check_branch
        %239 = sbr.rel (%p237) target = $region28
      $region27: #{conv_block_forward.1} parent=11 // pred_region
        _
      $region28: #{conv_block_forward.1} parent=11 // pred_fallthru
        _
      // Predicated region
      $region29: #{conv_block_forward.1} parent=11 // pred_check
        %p240 = pneg %p145
      $region30: #{conv_block_forward.1} parent=11 // pred_check_branch
        %242 = sbr.rel (%p240) target = $region32
      $region31: #{conv_block_forward.1} parent=11 // pred_region
        _
      $region32: #{conv_block_forward.1} parent=11 // pred_fallthru
        _
      // Predicated region
      $region33: #{conv_block_forward.1} parent=11 // pred_check
        %p243 = pneg %p166
      $region34: #{conv_block_forward.1} parent=11 // pred_check_branch
        %245 = sbr.rel (%p243) target = $region36
      $region35: #{conv_block_forward.1} parent=11 // pred_region
        _
      $region36: #{conv_block_forward.1} parent=11 // pred_fallthru
        _
      // Predicated region
      $region37: #{conv_block_forward.1} parent=11 // pred_check
        %p246 = pneg %p187
      $region38: #{conv_block_forward.1} parent=11 // pred_check_branch
        %248 = sbr.rel (%p246) target = $region40
      $region39: #{conv_block_forward.1} parent=11 // pred_region
        _
      $region40: #{conv_block_forward.1} parent=11 // pred_fallthru
        _
    $region12: #{conv_block_forward.1} parent=5 // pred_fallthru
      _
    %p249 = scmp.lt.s32.totalorder %s14, 2
    // Predicated region
    $region41: #{conv_block_forward.1} parent=5 // pred_check
      %p250 = pneg %p249
    $region42: #{conv_block_forward.1} parent=5 // pred_check_branch
      %252 = sbr.rel (%p250) target = $region44
    $region43: #{conv_block_forward.1} parent=5 // pred_region
      // Predicated region
      $region45: #{conv_block_forward.1} parent=43 // pred_check
        %p253 = pneg %p55
      $region46: #{conv_block_forward.1} parent=43 // pred_check_branch
        %255 = sbr.rel (%p253) target = $region48
      $region47: #{conv_block_forward.1} parent=43 // pred_region
        %p256 = scmp.lt.s32.totalorder %s14, 1
        %s257 = scalar_select %p256, %s14, 1
        %s258 = smul.addr %s257, 4
        %s259 = smul.addr %s258, 4
        %s260 = scalar_lea.vmem %s1, %s259
      $region48: #{conv_block_forward.1} parent=43 // pred_fallthru
        _
    $region44: #{conv_block_forward.1} parent=5 // pred_fallthru
      _
    %p261 = scmp.le.s32.totalorder 1, %s14
    %p262 = scmp.lt.s32.totalorder %s14, 3
    %p263 = pnand %p261, %p262
    %p264 = pneg %p263
    // Predicated region
    $region49: #{conv_block_forward.1} parent=5 // pred_check
      _
    $region50: #{conv_block_forward.1} parent=5 // pred_check_branch
      %266 = sbr.rel (%p263) target = $region52
    $region51: #{conv_block_forward.1} parent=5 // pred_region
      %s267 = ssub.s32 %s14, 1
      %p268 = pneg %p35
      %p269 = pneg %p32
      %p270 = scmp.lt.s32.totalorder %s19, 1
      %s271 = scalar_select %p270, %s19, 1
      %s272 = smul.addr %s271, 4
      %s273 = smul.addr %s272, 4
      %s274 = scalar_lea.vmem %s1, %s273
      %p275 = pneg %p61
      %p276 = pneg %p58
      %p277 = pneg %p82
      %p278 = pneg %p79
      %p279 = pneg %p103
      %p280 = pneg %p100
      %p281 = pneg %p124
      %p282 = pneg %p121
      %p283 = pneg %p145
      %p284 = pneg %p142
      %p285 = pneg %p166
      %p286 = pneg %p163
      %p287 = pneg %p187
      %p288 = pneg %p184
      %p289 = pneg %p213
      %p290 = pneg %p210
      %p291 = scmp.lt.s32.totalorder %s19, 1
      %s292 = scalar_select %p291, %s19, 1
      %s293 = smul.addr %s292, 4
      %s294 = smul.addr %s293, 8
      %s295 = scalar_lea.vmem %s8, %s294
      %p296 = scmp.lt.s32.totalorder %s19, 1
      %s297 = scalar_select %p296, %s19, 1
      %s298 = smul.addr %s297, 4
      %s299 = smul.addr %s298, 4
      %s300 = scalar_lea.vmem %s1, %s299
      %p301 = scmp.lt.s32.totalorder %s19, 1
      %s302 = scalar_select %p301, %s19, 1
      %s303 = smul.addr %s302, 4
      %s304 = smul.addr %s303, 8
      %s305 = scalar_lea.vmem %s8, %s304
      %v309 = vld [vmem:[%s0] ss:$2 sm:$0xf]
      %s310 = scalar_lea.vmem %s0, 1
      %v311 = vld [vmem:[%s310] ss:$2 sm:$0xf]
      %vm312 = vcmp.ge.s32.totalorder %v309, 1
      %vm313 = vcmp.le.s32.totalorder %v309, 6
      %vm314 = vcmp.ge.s32.totalorder %v311, 1
      %vm315 = vcmp.le.s32.totalorder %v311, 6
      %vm316 = vmand %vm312, %vm314
      %vm317 = vmand %vm312, %vm315
      %vm318 = vmand %vm313, %vm314
      %vm319 = vmand %vm313, %vm315
      %v320 = vld [vmem:[%s300] sm:$0xff]
      %v321 = vld [vmem:[%s300 + $0x8] sm:$0xff]
      %v324 = vcombine.high %v320, %v320
      %v325 = vcombine.high %v321, %v321
      %v328 = vpack.c.bf16 %v320, %v320
      %v329 = vpack.c.bf16 %v324, %v324
      %v330 = vpack.c.bf16 %v321, %v321
      %v331 = vpack.c.bf16 %v325, %v325
      %332 = vst [vmem:[#allocation2] sm:$0xf] 0
      %333 = vst [vmem:[#allocation2 + $0x14] sm:$0xf] 0
      %v338 = vunpack.c.l.b16 %v328
      %v339 = vunpack.c.l.b16 %v329
      %v340 = vunpack.c.l.b16 %v330
      %v341 = vunpack.c.l.b16 %v331
      %v342 = vpack.c.b16 %v339, %v338
      %v343 = vpack.c.b16 %v341, %v340
      %346 = vst [vmem:[#allocation2 + $0x4] sm:$0x33] %v342
      %347 = vst [vmem:[#allocation2 + $0xc] sm:$0x33] %v343
      %348 = vst [vmem:[#allocation2 + $0x4] sm:$0xcc] 0
      %349 = vst [vmem:[#allocation2 + $0xc] sm:$0xcc] 0
      %v350 = vld [vmem:[#allocation2] sm:$0xff]
      %v351 = vld [vmem:[#allocation2 + $0x8] sm:$0xff]
      %v352 = vld [vmem:[#allocation2 + $0x10] sm:$0xf]
      %v353 = vsel %vm316, 1, 0
      %v354 = vlaneseq
      %v355 = vshrl.u32 %v354, 7
      %v356 = vsub.s32 0, %v355
      %v357 = vrot.slane %v353, %v356
      %v358 = vlaneseq
      %v359 = vshrl.u32 %v358, 7
      %v360 = vsub.s32 1, %v359
      %v361 = vrot.slane %v353, %v360
      %v362 = vlaneseq
      %v363 = vshrl.u32 %v362, 7
      %v364 = vsub.s32 2, %v363
      %v365 = vrot.slane %v353, %v364
      %v366 = vlaneseq
      %v367 = vshrl.u32 %v366, 7
      %v368 = vsub.s32 3, %v367
      %v369 = vrot.slane %v353, %v368
      %vm370 = vcmp.eq.s32.totalorder %v357, 1
      %vm371 = vcmp.eq.s32.totalorder %v361, 1
      %vm372 = vcmp.eq.s32.totalorder %v365, 1
      %vm373 = vcmp.eq.s32.totalorder %v369, 1
      %vm374 = vmpackc.low %vm371, %vm370
      %vm375 = vmpackc.low %vm373, %vm372
      %v376 = vsel %vm374, 65537, 0
      %v377 = vsel %vm375, 65537, 0
      %378 = vrot.lane.b32.xlu0 %v376, 55
      %v379 = vpop.permute.xlu0 %378
      %380 = vrot.lane.b32.xlu0 %v377, 55
      %v381 = vpop.permute.xlu0 %380
      %v382 = vrot.slane %v379, 4
      %v383 = vrot.slane %v381, 4
      %vm384 = vcmask 449536
      %v385 = vsel %vm384, %v382, %v379
      %vm386 = vcmask 1043456
      %v387 = vsel %vm386, %v382, %v383
      %v388 = vsel %vm384, %v387, %v381
      %vm389 = vcmp.ne.s16.totalorder %v385, 0
      %vm390 = vcmp.ne.s16.totalorder %v388, 0
      %vm391 = vcmp.ne.s16.totalorder %v383, 0
      %v392 = vsel %vm389, %v350, 0
      %v393 = vsel %vm390, %v351, 0
      %v394 = vsel %vm391, %v352, 0
      %398 = vrot.lane.b32.xlu0 %v392, 73
      %v399 = vpop.permute.xlu0 %398
      %400 = vrot.lane.b32.xlu0 %v393, 73
      %v401 = vpop.permute.xlu0 %400
      %402 = vrot.lane.b32.xlu0 %v394, 73
      %v403 = vpop.permute.xlu0 %402
      %v404 = vrot.slane %v399, 4
      %v405 = vrot.slane %v401, 4
      %v406 = vrot.slane %v403, 4
      %v407 = vsel %vm386, %v404, %v405
      %vm408 = vcmask 596992
      %v409 = vsel %vm408, %v399, %v407
      %v410 = vsel %vm386, %v405, %v406
      %v411 = vsel %vm408, %v401, %v410
      %414 = vst [vmem:[#allocation3] sm:$0xff] %v409
      %415 = vst [vmem:[#allocation3 + $0x8] sm:$0xff] %v411
      %v416 = vld [vmem:[#allocation2] sm:$0xff]
      %v417 = vld [vmem:[#allocation2 + $0x8] sm:$0xff]
      %v418 = vld [vmem:[#allocation2 + $0x10] sm:$0xf]
      %v419 = vsel %vm312, 1, 0
      %v420 = vlaneseq
      %v421 = vshrl.u32 %v420, 7
      %v422 = vsub.s32 0, %v421
      %v423 = vrot.slane %v419, %v422
      %v424 = vlaneseq
      %v425 = vshrl.u32 %v424, 7
      %v426 = vsub.s32 1, %v425
      %v427 = vrot.slane %v419, %v426
      %v428 = vlaneseq
      %v429 = vshrl.u32 %v428, 7
      %v430 = vsub.s32 2, %v429
      %v431 = vrot.slane %v419, %v430
      %v432 = vlaneseq
      %v433 = vshrl.u32 %v432, 7
      %v434 = vsub.s32 3, %v433
      %v435 = vrot.slane %v419, %v434
      %vm436 = vcmp.eq.s32.totalorder %v423, 1
      %vm437 = vcmp.eq.s32.totalorder %v427, 1
      %vm438 = vcmp.eq.s32.totalorder %v431, 1
      %vm439 = vcmp.eq.s32.totalorder %v435, 1
      %vm440 = vmpackc.low %vm437, %vm436
      %vm441 = vmpackc.low %vm439, %vm438
      %v442 = vsel %vm440, 65537, 0
      %v443 = vsel %vm441, 65537, 0
      %444 = vrot.lane.b32.xlu0 %v442, 56
      %v445 = vpop.permute.xlu0 %444
      %446 = vrot.lane.b32.xlu0 %v443, 56
      %v447 = vpop.permute.xlu0 %446
      %v448 = vrot.slane %v445, 4
      %v449 = vrot.slane %v447, 4
      %vm450 = vcmask 457728
      %v451 = vsel %vm450, %v448, %v445
      %v452 = vsel %vm386, %v448, %v449
      %v453 = vsel %vm450, %v452, %v447
      %vm454 = vcmp.ne.s16.totalorder %v451, 0
      %vm455 = vcmp.ne.s16.totalorder %v453, 0
      %vm456 = vcmp.ne.s16.totalorder %v449, 0
      %v457 = vsel %vm454, %v416, 0
      %v458 = vsel %vm455, %v417, 0
      %v459 = vsel %vm456, %v418, 0
      %463 = vrot.lane.b32.xlu0 %v457, 72
      %v464 = vpop.permute.xlu0 %463
      %465 = vrot.lane.b32.xlu0 %v458, 72
      %v466 = vpop.permute.xlu0 %465
      %467 = vrot.lane.b32.xlu0 %v459, 72
      %v468 = vpop.permute.xlu0 %467
      %v469 = vrot.slane %v464, 4
      %v470 = vrot.slane %v466, 4
      %v471 = vrot.slane %v468, 4
      %v472 = vsel %vm386, %v469, %v470
      %vm473 = vcmask 588800
      %v474 = vsel %vm473, %v464, %v472
      %v475 = vsel %vm386, %v470, %v471
      %v476 = vsel %vm473, %v466, %v475
      %479 = vst [vmem:[#allocation3 + $0x10] sm:$0xff] %v474
      %480 = vst [vmem:[#allocation3 + $0x18] sm:$0xff] %v476
      %v481 = vld [vmem:[#allocation2] sm:$0xff]
      %v482 = vld [vmem:[#allocation2 + $0x8] sm:$0xff]
      %v483 = vld [vmem:[#allocation2 + $0x10] sm:$0xf]
      %v484 = vsel %vm317, 1, 0
      %v485 = vlaneseq
      %v486 = vshrl.u32 %v485, 7
      %v487 = vsub.s32 0, %v486
      %v488 = vrot.slane %v484, %v487
      %v489 = vlaneseq
      %v490 = vshrl.u32 %v489, 7
      %v491 = vsub.s32 1, %v490
      %v492 = vrot.slane %v484, %v491
      %v493 = vlaneseq
      %v494 = vshrl.u32 %v493, 7
      %v495 = vsub.s32 2, %v494
      %v496 = vrot.slane %v484, %v495
      %v497 = vlaneseq
      %v498 = vshrl.u32 %v497, 7
      %v499 = vsub.s32 3, %v498
      %v500 = vrot.slane %v484, %v499
      %vm501 = vcmp.eq.s32.totalorder %v488, 1
      %vm502 = vcmp.eq.s32.totalorder %v492, 1
      %vm503 = vcmp.eq.s32.totalorder %v496, 1
      %vm504 = vcmp.eq.s32.totalorder %v500, 1
      %vm505 = vmpackc.low %vm502, %vm501
      %vm506 = vmpackc.low %vm504, %vm503
      %v507 = vsel %vm505, 65537, 0
      %v508 = vsel %vm506, 65537, 0
      %509 = vrot.lane.b32.xlu0 %v507, 57
      %v510 = vpop.permute.xlu0 %509
      %511 = vrot.lane.b32.xlu0 %v508, 57
      %v512 = vpop.permute.xlu0 %511
      %v513 = vrot.slane %v510, 4
      %v514 = vrot.slane %v512, 4
      %vm515 = vcmask 465920
      %v516 = vsel %vm515, %v513, %v510
      %v517 = vsel %vm386, %v513, %v514
      %v518 = vsel %vm515, %v517, %v512
      %vm519 = vcmp.ne.s16.totalorder %v516, 0
      %vm520 = vcmp.ne.s16.totalorder %v518, 0
      %vm521 = vcmp.ne.s16.totalorder %v514, 0
      %v522 = vsel %vm519, %v481, 0
      %v523 = vsel %vm520, %v482, 0
      %v524 = vsel %vm521, %v483, 0
      %528 = vrot.lane.b32.xlu0 %v522, 71
      %v529 = vpop.permute.xlu0 %528
      %530 = vrot.lane.b32.xlu0 %v523, 71
      %v531 = vpop.permute.xlu0 %530
      %532 = vrot.lane.b32.xlu0 %v524, 71
      %v533 = vpop.permute.xlu0 %532
      %v534 = vrot.slane %v529, 4
      %v535 = vrot.slane %v531, 4
      %v536 = vrot.slane %v533, 4
      %v537 = vsel %vm386, %v534, %v535
      %vm538 = vcmask 580608
      %v539 = vsel %vm538, %v529, %v537
      %v540 = vsel %vm386, %v535, %v536
      %v541 = vsel %vm538, %v531, %v540
      %544 = vst [vmem:[#allocation3 + $0x20] sm:$0xff] %v539
      %545 = vst [vmem:[#allocation3 + $0x28] sm:$0xff] %v541
      %v546 = vld [vmem:[#allocation2] sm:$0xff]
      %v547 = vld [vmem:[#allocation2 + $0x8] sm:$0xff]
      %v548 = vld [vmem:[#allocation2 + $0x10] sm:$0xf]
      %v549 = vsel %vm314, 1, 0
      %v550 = vlaneseq
      %v551 = vshrl.u32 %v550, 7
      %v552 = vsub.s32 0, %v551
      %v553 = vrot.slane %v549, %v552
      %v554 = vlaneseq
      %v555 = vshrl.u32 %v554, 7
      %v556 = vsub.s32 1, %v555
      %v557 = vrot.slane %v549, %v556
      %v558 = vlaneseq
      %v559 = vshrl.u32 %v558, 7
      %v560 = vsub.s32 2, %v559
      %v561 = vrot.slane %v549, %v560
      %v562 = vlaneseq
      %v563 = vshrl.u32 %v562, 7
      %v564 = vsub.s32 3, %v563
      %v565 = vrot.slane %v549, %v564
      %vm566 = vcmp.eq.s32.totalorder %v553, 1
      %vm567 = vcmp.eq.s32.totalorder %v557, 1
      %vm568 = vcmp.eq.s32.totalorder %v561, 1
      %vm569 = vcmp.eq.s32.totalorder %v565, 1
      %vm570 = vmpackc.low %vm567, %vm566
      %vm571 = vmpackc.low %vm569, %vm568
      %v572 = vsel %vm570, 65537, 0
      %v573 = vsel %vm571, 65537, 0
      %574 = vrot.lane.b32.xlu0 %v572, 63
      %v575 = vpop.permute.xlu0 %574
      %576 = vrot.lane.b32.xlu0 %v573, 63
      %v577 = vpop.permute.xlu0 %576
      %v578 = vrot.slane %v575, 4
      %v579 = vrot.slane %v577, 4
      %vm580 = vcmask 515072
      %v581 = vsel %vm580, %v578, %v575
      %v582 = vsel %vm386, %v578, %v579
      %v583 = vsel %vm580, %v582, %v577
      %vm584 = vcmp.ne.s16.totalorder %v581, 0
      %vm585 = vcmp.ne.s16.totalorder %v583, 0
      %vm586 = vcmp.ne.s16.totalorder %v579, 0
      %v587 = vsel %vm584, %v546, 0
      %v588 = vsel %vm585, %v547, 0
      %v589 = vsel %vm586, %v548, 0
      %593 = vrot.lane.b32.xlu0 %v587, 65
      %v594 = vpop.permute.xlu0 %593
      %595 = vrot.lane.b32.xlu0 %v588, 65
      %v596 = vpop.permute.xlu0 %595
      %597 = vrot.lane.b32.xlu0 %v589, 65
      %v598 = vpop.permute.xlu0 %597
      %v599 = vrot.slane %v594, 4
      %v600 = vrot.slane %v596, 4
      %v601 = vrot.slane %v598, 4
      %v602 = vsel %vm386, %v599, %v600
      %vm603 = vcmask 531456
      %v604 = vsel %vm603, %v594, %v602
      %v605 = vsel %vm386, %v600, %v601
      %v606 = vsel %vm603, %v596, %v605
      %609 = vst [vmem:[#allocation3 + $0x30] sm:$0xff] %v604
      %610 = vst [vmem:[#allocation3 + $0x38] sm:$0xff] %v606
      %v611 = vld [vmem:[#allocation2] sm:$0xff]
      %v612 = vld [vmem:[#allocation2 + $0x8] sm:$0xff]
      %v613 = vld [vmem:[#allocation2 + $0x10] sm:$0xf]
      %617 = vrot.lane.b32.xlu0 %v611, 64
      %v618 = vpop.permute.xlu0 %617
      %619 = vrot.lane.b32.xlu0 %v612, 64
      %v620 = vpop.permute.xlu0 %619
      %621 = vrot.lane.b32.xlu0 %v613, 64
      %v622 = vpop.permute.xlu0 %621
      %v623 = vrot.slane %v618, 4
      %v624 = vrot.slane %v620, 4
      %v625 = vrot.slane %v622, 4
      %v626 = vsel %vm386, %v623, %v624
      %vm627 = vcmask 523264
      %v628 = vsel %vm627, %v618, %v626
      %v629 = vsel %vm386, %v624, %v625
      %v630 = vsel %vm627, %v620, %v629
      %633 = vst [vmem:[#allocation3 + $0x40] sm:$0xff] %v628
      %634 = vst [vmem:[#allocation3 + $0x48] sm:$0xff] %v630
      %v635 = vld [vmem:[#allocation2] sm:$0xff]
      %v636 = vld [vmem:[#allocation2 + $0x8] sm:$0xff]
      %v637 = vld [vmem:[#allocation2 + $0x10] sm:$0xf]
      %v638 = vsel %vm315, 1, 0
      %v639 = vlaneseq
      %v640 = vshrl.u32 %v639, 7
      %v641 = vsub.s32 0, %v640
      %v642 = vrot.slane %v638, %v641
      %v643 = vlaneseq
      %v644 = vshrl.u32 %v643, 7
      %v645 = vsub.s32 1, %v644
      %v646 = vrot.slane %v638, %v645
      %v647 = vlaneseq
      %v648 = vshrl.u32 %v647, 7
      %v649 = vsub.s32 2, %v648
      %v650 = vrot.slane %v638, %v649
      %v651 = vlaneseq
      %v652 = vshrl.u32 %v651, 7
      %v653 = vsub.s32 3, %v652
      %v654 = vrot.slane %v638, %v653
      %vm655 = vcmp.eq.s32.totalorder %v642, 1
      %vm656 = vcmp.eq.s32.totalorder %v646, 1
      %vm657 = vcmp.eq.s32.totalorder %v650, 1
      %vm658 = vcmp.eq.s32.totalorder %v654, 1
      %vm659 = vmpackc.low %vm656, %vm655
      %vm660 = vmpackc.low %vm658, %vm657
      %v661 = vsel %vm659, 65537, 0
      %v662 = vsel %vm660, 65537, 0
      %663 = vrot.lane.b32.xlu0 %v661, 65
      %v664 = vpop.permute.xlu0 %663
      %665 = vrot.lane.b32.xlu0 %v662, 65
      %v666 = vpop.permute.xlu0 %665
      %v667 = vrot.slane %v664, 4
      %v668 = vrot.slane %v666, 4
      %v669 = vsel %vm603, %v667, %v664
      %v670 = vsel %vm386, %v667, %v668
      %v671 = vsel %vm603, %v670, %v666
      %vm672 = vcmp.ne.s16.totalorder %v669, 0
      %vm673 = vcmp.ne.s16.totalorder %v671, 0
      %vm674 = vcmp.ne.s16.totalorder %v668, 0
      %v675 = vsel %vm672, %v635, 0
      %v676 = vsel %vm673, %v636, 0
      %v677 = vsel %vm674, %v637, 0
      %681 = vrot.lane.b32.xlu0 %v675, 63
      %v682 = vpop.permute.xlu0 %681
      %683 = vrot.lane.b32.xlu0 %v676, 63
      %v684 = vpop.permute.xlu0 %683
      %685 = vrot.lane.b32.xlu0 %v677, 63
      %v686 = vpop.permute.xlu0 %685
      %v687 = vrot.slane %v682, 4
      %v688 = vrot.slane %v684, 4
      %v689 = vrot.slane %v686, 4
      %v690 = vsel %vm386, %v687, %v688
      %v691 = vsel %vm580, %v682, %v690
      %v692 = vsel %vm386, %v688, %v689
      %v693 = vsel %vm580, %v684, %v692
      %696 = vst [vmem:[#allocation3 + $0x50] sm:$0xff] %v691
      %697 = vst [vmem:[#allocation3 + $0x58] sm:$0xff] %v693
      %v698 = vld [vmem:[#allocation2] sm:$0xff]
      %v699 = vld [vmem:[#allocation2 + $0x8] sm:$0xff]
      %v700 = vld [vmem:[#allocation2 + $0x10] sm:$0xf]
      %v701 = vsel %vm318, 1, 0
      %v702 = vlaneseq
      %v703 = vshrl.u32 %v702, 7
      %v704 = vsub.s32 0, %v703
      %v705 = vrot.slane %v701, %v704
      %v706 = vlaneseq
      %v707 = vshrl.u32 %v706, 7
      %v708 = vsub.s32 1, %v707
      %v709 = vrot.slane %v701, %v708
      %v710 = vlaneseq
      %v711 = vshrl.u32 %v710, 7
      %v712 = vsub.s32 2, %v711
      %v713 = vrot.slane %v701, %v712
      %v714 = vlaneseq
      %v715 = vshrl.u32 %v714, 7
      %v716 = vsub.s32 3, %v715
      %v717 = vrot.slane %v701, %v716
      %vm718 = vcmp.eq.s32.totalorder %v705, 1
      %vm719 = vcmp.eq.s32.totalorder %v709, 1
      %vm720 = vcmp.eq.s32.totalorder %v713, 1
      %vm721 = vcmp.eq.s32.totalorder %v717, 1
      %vm722 = vmpackc.low %vm719, %vm718
      %vm723 = vmpackc.low %vm721, %vm720
      %v724 = vsel %vm722, 65537, 0
      %v725 = vsel %vm723, 65537, 0
      %726 = vrot.lane.b32.xlu0 %v724, 71
      %v727 = vpop.permute.xlu0 %726
      %728 = vrot.lane.b32.xlu0 %v725, 71
      %v729 = vpop.permute.xlu0 %728
      %v730 = vrot.slane %v727, 4
      %v731 = vrot.slane %v729, 4
      %v732 = vsel %vm538, %v730, %v727
      %v733 = vsel %vm386, %v730, %v731
      %v734 = vsel %vm538, %v733, %v729
      %vm735 = vcmp.ne.s16.totalorder %v732, 0
      %vm736 = vcmp.ne.s16.totalorder %v734, 0
      %vm737 = vcmp.ne.s16.totalorder %v731, 0
      %v738 = vsel %vm735, %v698, 0
      %v739 = vsel %vm736, %v699, 0
      %v740 = vsel %vm737, %v700, 0
      %744 = vrot.lane.b32.xlu0 %v738, 57
      %v745 = vpop.permute.xlu0 %744
      %746 = vrot.lane.b32.xlu0 %v739, 57
      %v747 = vpop.permute.xlu0 %746
      %748 = vrot.lane.b32.xlu0 %v740, 57
      %v749 = vpop.permute.xlu0 %748
      %v750 = vrot.slane %v745, 4
      %v751 = vrot.slane %v747, 4
      %v752 = vrot.slane %v749, 4
      %v753 = vsel %vm386, %v750, %v751
      %v754 = vsel %vm515, %v745, %v753
      %v755 = vsel %vm386, %v751, %v752
      %v756 = vsel %vm515, %v747, %v755
      %759 = vst [vmem:[#allocation3 + $0x60] sm:$0xff] %v754
      %760 = vst [vmem:[#allocation3 + $0x68] sm:$0xff] %v756
      %v761 = vld [vmem:[#allocation2] sm:$0xff]
      %v762 = vld [vmem:[#allocation2 + $0x8] sm:$0xff]
      %v763 = vld [vmem:[#allocation2 + $0x10] sm:$0xf]
      %v764 = vsel %vm313, 1, 0
      %v765 = vlaneseq
      %v766 = vshrl.u32 %v765, 7
      %v767 = vsub.s32 0, %v766
      %v768 = vrot.slane %v764, %v767
      %v769 = vlaneseq
      %v770 = vshrl.u32 %v769, 7
      %v771 = vsub.s32 1, %v770
      %v772 = vrot.slane %v764, %v771
      %v773 = vlaneseq
      %v774 = vshrl.u32 %v773, 7
      %v775 = vsub.s32 2, %v774
      %v776 = vrot.slane %v764, %v775
      %v777 = vlaneseq
      %v778 = vshrl.u32 %v777, 7
      %v779 = vsub.s32 3, %v778
      %v780 = vrot.slane %v764, %v779
      %vm781 = vcmp.eq.s32.totalorder %v768, 1
      %vm782 = vcmp.eq.s32.totalorder %v772, 1
      %vm783 = vcmp.eq.s32.totalorder %v776, 1
      %vm784 = vcmp.eq.s32.totalorder %v780, 1
      %vm785 = vmpackc.low %vm782, %vm781
      %vm786 = vmpackc.low %vm784, %vm783
      %v787 = vsel %vm785, 65537, 0
      %v788 = vsel %vm786, 65537, 0
      %789 = vrot.lane.b32.xlu0 %v787, 72
      %v790 = vpop.permute.xlu0 %789
      %791 = vrot.lane.b32.xlu0 %v788, 72
      %v792 = vpop.permute.xlu0 %791
      %v793 = vrot.slane %v790, 4
      %v794 = vrot.slane %v792, 4
      %v795 = vsel %vm473, %v793, %v790
      %v796 = vsel %vm386, %v793, %v794
      %v797 = vsel %vm473, %v796, %v792
      %vm798 = vcmp.ne.s16.totalorder %v795, 0
      %vm799 = vcmp.ne.s16.totalorder %v797, 0
      %vm800 = vcmp.ne.s16.totalorder %v794, 0
      %v801 = vsel %vm798, %v761, 0
      %v802 = vsel %vm799, %v762, 0
      %v803 = vsel %vm800, %v763, 0
      %807 = vrot.lane.b32.xlu0 %v801, 56
      %v808 = vpop.permute.xlu0 %807
      %809 = vrot.lane.b32.xlu0 %v802, 56
      %v810 = vpop.permute.xlu0 %809
      %811 = vrot.lane.b32.xlu0 %v803, 56
      %v812 = vpop.permute.xlu0 %811
      %v813 = vrot.slane %v808, 4
      %v814 = vrot.slane %v810, 4
      %v815 = vrot.slane %v812, 4
      %v816 = vsel %vm386, %v813, %v814
      %v817 = vsel %vm450, %v808, %v816
      %v818 = vsel %vm386, %v814, %v815
      %v819 = vsel %vm450, %v810, %v818
      %822 = vst [vmem:[#allocation3 + $0x70] sm:$0xff] %v817
      %823 = vst [vmem:[#allocation3 + $0x78] sm:$0xff] %v819
      %v824 = vld [vmem:[#allocation2] sm:$0xff]
      %v825 = vld [vmem:[#allocation2 + $0x8] sm:$0xff]
      %v826 = vld [vmem:[#allocation2 + $0x10] sm:$0xf]
      %v827 = vsel %vm319, 1, 0
      %v828 = vlaneseq
      %v829 = vshrl.u32 %v828, 7
      %v830 = vsub.s32 0, %v829
      %v831 = vrot.slane %v827, %v830
      %v832 = vlaneseq
      %v833 = vshrl.u32 %v832, 7
      %v834 = vsub.s32 1, %v833
      %v835 = vrot.slane %v827, %v834
      %v836 = vlaneseq
      %v837 = vshrl.u32 %v836, 7
      %v838 = vsub.s32 2, %v837
      %v839 = vrot.slane %v827, %v838
      %v840 = vlaneseq
      %v841 = vshrl.u32 %v840, 7
      %v842 = vsub.s32 3, %v841
      %v843 = vrot.slane %v827, %v842
      %vm844 = vcmp.eq.s32.totalorder %v831, 1
      %vm845 = vcmp.eq.s32.totalorder %v835, 1
      %vm846 = vcmp.eq.s32.totalorder %v839, 1
      %vm847 = vcmp.eq.s32.totalorder %v843, 1
      %vm848 = vmpackc.low %vm845, %vm844
      %vm849 = vmpackc.low %vm847, %vm846
      %v850 = vsel %vm848, 65537, 0
      %v851 = vsel %vm849, 65537, 0
      %852 = vrot.lane.b32.xlu0 %v850, 73
      %v853 = vpop.permute.xlu0 %852
      %854 = vrot.lane.b32.xlu0 %v851, 73
      %v855 = vpop.permute.xlu0 %854
      %v856 = vrot.slane %v853, 4
      %v857 = vrot.slane %v855, 4
      %v858 = vsel %vm408, %v856, %v853
      %v859 = vsel %vm386, %v856, %v857
      %v860 = vsel %vm408, %v859, %v855
      %vm861 = vcmp.ne.s16.totalorder %v858, 0
      %vm862 = vcmp.ne.s16.totalorder %v860, 0
      %vm863 = vcmp.ne.s16.totalorder %v857, 0
      %v864 = vsel %vm861, %v824, 0
      %v865 = vsel %vm862, %v825, 0
      %v866 = vsel %vm863, %v826, 0
      %870 = vrot.lane.b32.xlu0 %v864, 55
      %v871 = vpop.permute.xlu0 %870
      %872 = vrot.lane.b32.xlu0 %v865, 55
      %v873 = vpop.permute.xlu0 %872
      %874 = vrot.lane.b32.xlu0 %v866, 55
      %v875 = vpop.permute.xlu0 %874
      %v876 = vrot.slane %v871, 4
      %v877 = vrot.slane %v873, 4
      %v878 = vrot.slane %v875, 4
      %v879 = vsel %vm386, %v876, %v877
      %v880 = vsel %vm384, %v871, %v879
      %v881 = vsel %vm386, %v877, %v878
      %v882 = vsel %vm384, %v873, %v881
      %885 = vst [vmem:[#allocation3 + $0x80] sm:$0xff] %v880
      %886 = vst [vmem:[#allocation3 + $0x88] sm:$0xff] %v882
      %v887 = vld [vmem:[%s2] sm:$0xf]
      %v888 = vld [vmem:[#allocation3] sm:$0xff]
      %v889 = vld [vmem:[#allocation3 + $0x8] sm:$0xff]
      %v890 = vld [vmem:[#allocation3 + $0x10] sm:$0xff]
      %v891 = vld [vmem:[#allocation3 + $0x18] sm:$0xff]
      %v892 = vld [vmem:[#allocation3 + $0x20] sm:$0xff]
      %v893 = vld [vmem:[#allocation3 + $0x28] sm:$0xff]
      %v894 = vld [vmem:[#allocation3 + $0x30] sm:$0xff]
      %v895 = vld [vmem:[#allocation3 + $0x38] sm:$0xff]
      %v896 = vld [vmem:[#allocation3 + $0x40] sm:$0xff]
      %v897 = vld [vmem:[#allocation3 + $0x48] sm:$0xff]
      %v898 = vld [vmem:[#allocation3 + $0x50] sm:$0xff]
      %v899 = vld [vmem:[#allocation3 + $0x58] sm:$0xff]
      %v900 = vld [vmem:[#allocation3 + $0x60] sm:$0xff]
      %v901 = vld [vmem:[#allocation3 + $0x68] sm:$0xff]
      %v902 = vld [vmem:[#allocation3 + $0x70] sm:$0xff]
      %v903 = vld [vmem:[#allocation3 + $0x78] sm:$0xff]
      %v904 = vld [vmem:[#allocation3 + $0x80] sm:$0xff]
      %v905 = vld [vmem:[#allocation3 + $0x88] sm:$0xff]
      %v906 = vld [vmem:[#allocation2] sm:$0xff]
      %v907 = vld [vmem:[#allocation2 + $0x8] sm:$0xff]
      %v908 = vld [vmem:[#allocation2 + $0x10] sm:$0xf]
      %909 = vrot.lane.b32.xlu0 %v376, 119
      %v910 = vpop.permute.xlu0 %909
      %911 = vrot.lane.b32.xlu0 %v377, 119
      %v912 = vpop.permute.xlu0 %911
      %v913 = vrot.slane %v910, 4
      %v914 = vrot.slane %v912, 4
      %vm915 = vcmask 973824
      %v916 = vsel %vm915, %v913, %v910
      %v917 = vsel %vm386, %v913, %v914
      %v918 = vsel %vm915, %v917, %v912
      %vm919 = vcmp.ne.s16.totalorder %v916, 0
      %vm920 = vcmp.ne.s16.totalorder %v918, 0
      %vm921 = vcmp.ne.s16.totalorder %v914, 0
      %v922 = vsel %vm919, %v906, 0
      %v923 = vsel %vm920, %v907, 0
      %v924 = vsel %vm921, %v908, 0
      %928 = vrot.lane.b32.xlu0 %v922, 9
      %v929 = vpop.permute.xlu0 %928
      %930 = vrot.lane.b32.xlu0 %v923, 9
      %v931 = vpop.permute.xlu0 %930
      %932 = vrot.lane.b32.xlu0 %v924, 9
      %v933 = vpop.permute.xlu0 %932
      %v934 = vrot.slane %v929, 4
      %v935 = vrot.slane %v931, 4
      %v936 = vrot.slane %v933, 4
      %v937 = vsel %vm386, %v934, %v935
      %vm938 = vcmask 72704
      %v939 = vsel %vm938, %v929, %v937
      %v940 = vsel %vm386, %v935, %v936
      %v941 = vsel %vm938, %v931, %v940
      %944 = vst [vmem:[#allocation3] sm:$0xff] %v939
      %945 = vst [vmem:[#allocation3 + $0x8] sm:$0xff] %v941
      %v946 = vld [vmem:[#allocation2] sm:$0xff]
      %v947 = vld [vmem:[#allocation2 + $0x8] sm:$0xff]
      %v948 = vld [vmem:[#allocation2 + $0x10] sm:$0xf]
      %949 = vrot.lane.b32.xlu0 %v442, 120
      %v950 = vpop.permute.xlu0 %949
      %951 = vrot.lane.b32.xlu0 %v443, 120
      %v952 = vpop.permute.xlu0 %951
      %v953 = vrot.slane %v950, 4
      %v954 = vrot.slane %v952, 4
      %vm955 = vcmask 982016
      %v956 = vsel %vm955, %v953, %v950
      %v957 = vsel %vm386, %v953, %v954
      %v958 = vsel %vm955, %v957, %v952
      %vm959 = vcmp.ne.s16.totalorder %v956, 0
      %vm960 = vcmp.ne.s16.totalorder %v958, 0
      %vm961 = vcmp.ne.s16.totalorder %v954, 0
      %v962 = vsel %vm959, %v946, 0
      %v963 = vsel %vm960, %v947, 0
      %v964 = vsel %vm961, %v948, 0
      %968 = vrot.lane.b32.xlu0 %v962, 8
      %v969 = vpop.permute.xlu0 %968
      %970 = vrot.lane.b32.xlu0 %v963, 8
      %v971 = vpop.permute.xlu0 %970
      %972 = vrot.lane.b32.xlu0 %v964, 8
      %v973 = vpop.permute.xlu0 %972
      %v974 = vrot.slane %v969, 4
      %v975 = vrot.slane %v971, 4
      %v976 = vrot.slane %v973, 4
      %v977 = vsel %vm386, %v974, %v975
      %vm978 = vcmask 64512
      %v979 = vsel %vm978, %v969, %v977
      %v980 = vsel %vm386, %v975, %v976
      %v981 = vsel %vm978, %v971, %v980
      %984 = vst [vmem:[#allocation3 + $0x10] sm:$0xff] %v979
      %985 = vst [vmem:[#allocation3 + $0x18] sm:$0xff] %v981
      %v986 = vld [vmem:[#allocation2] sm:$0xff]
      %v987 = vld [vmem:[#allocation2 + $0x8] sm:$0xff]
      %v988 = vld [vmem:[#allocation2 + $0x10] sm:$0xf]
      %989 = vrot.lane.b32.xlu0 %v507, 121
      %v990 = vpop.permute.xlu0 %989
      %991 = vrot.lane.b32.xlu0 %v508, 121
      %v992 = vpop.permute.xlu0 %991
      %v993 = vrot.slane %v990, 4
      %v994 = vrot.slane %v992, 4
      %vm995 = vcmask 990208
      %v996 = vsel %vm995, %v993, %v990
      %v997 = vsel %vm386, %v993, %v994
      %v998 = vsel %vm995, %v997, %v992
      %vm999 = vcmp.ne.s16.totalorder %v996, 0
      %vm1000 = vcmp.ne.s16.totalorder %v998, 0
      %vm1001 = vcmp.ne.s16.totalorder %v994, 0
      %v1002 = vsel %vm999, %v986, 0
      %v1003 = vsel %vm1000, %v987, 0
      %v1004 = vsel %vm1001, %v988, 0
      %1008 = vrot.lane.b32.xlu0 %v1002, 7
      %v1009 = vpop.permute.xlu0 %1008
      %1010 = vrot.lane.b32.xlu0 %v1003, 7
      %v1011 = vpop.permute.xlu0 %1010
      %1012 = vrot.lane.b32.xlu0 %v1004, 7
      %v1013 = vpop.permute.xlu0 %1012
      %v1014 = vrot.slane %v1009, 4
      %v1015 = vrot.slane %v1011, 4
      %v1016 = vrot.slane %v1013, 4
      %v1017 = vsel %vm386, %v1014, %v1015
      %vm1018 = vcmask 56320
      %v1019 = vsel %vm1018, %v1009, %v1017
      %v1020 = vsel %vm386, %v1015, %v1016
      %v1021 = vsel %vm1018, %v1011, %v1020
      %1024 = vst [vmem:[#allocation3 + $0x20] sm:$0xff] %v1019
      %1025 = vst [vmem:[#allocation3 + $0x28] sm:$0xff] %v1021
      %v1026 = vld [vmem:[#allocation2] sm:$0xff]
      %v1027 = vld [vmem:[#allocation2 + $0x8] sm:$0xff]
      %v1028 = vld [vmem:[#allocation2 + $0x10] sm:$0xf]
      %1029 = vrot.lane.b32.xlu0 %v572, 127
      %v1030 = vpop.permute.xlu0 %1029
      %1031 = vrot.lane.b32.xlu0 %v573, 127
      %v1032 = vpop.permute.xlu0 %1031
      %v1033 = vrot.slane %v1030, 4
      %v1034 = vrot.slane %v1032, 4
      %vm1035 = vcmask 1039360
      %v1036 = vsel %vm1035, %v1033, %v1030
      %v1037 = vsel %vm386, %v1033, %v1034
      %v1038 = vsel %vm1035, %v1037, %v1032
      %vm1039 = vcmp.ne.s16.totalorder %v1036, 0
      %vm1040 = vcmp.ne.s16.totalorder %v1038, 0
      %vm1041 = vcmp.ne.s16.totalorder %v1034, 0
      %v1042 = vsel %vm1039, %v1026, 0
      %v1043 = vsel %vm1040, %v1027, 0
      %v1044 = vsel %vm1041, %v1028, 0
      %1048 = vrot.lane.b32.xlu0 %v1042, 1
      %v1049 = vpop.permute.xlu0 %1048
      %1050 = vrot.lane.b32.xlu0 %v1043, 1
      %v1051 = vpop.permute.xlu0 %1050
      %1052 = vrot.lane.b32.xlu0 %v1044, 1
      %v1053 = vpop.permute.xlu0 %1052
      %v1054 = vrot.slane %v1049, 4
      %v1055 = vrot.slane %v1051, 4
      %v1056 = vrot.slane %v1053, 4
      %v1057 = vsel %vm386, %v1054, %v1055
      %vm1058 = vcmask 7168
      %v1059 = vsel %vm1058, %v1049, %v1057
      %v1060 = vsel %vm386, %v1055, %v1056
      %v1061 = vsel %vm1058, %v1051, %v1060
      %1064 = vst [vmem:[#allocation3 + $0x30] sm:$0xff] %v1059
      %1065 = vst [vmem:[#allocation3 + $0x38] sm:$0xff] %v1061
      %v1066 = vld [vmem:[#allocation2 + $0x4] sm:$0xff]
      %v1067 = vld [vmem:[#allocation2 + $0xc] sm:$0xff]
      %1068 = vst [vmem:[#allocation3 + $0x40] sm:$0xff] %v1066
      %1069 = vst [vmem:[#allocation3 + $0x48] sm:$0xff] %v1067
      %v1070 = vld [vmem:[#allocation2 + $0x4] sm:$0xff]
      %v1071 = vld [vmem:[#allocation2 + $0xc] sm:$0xff]
      %v1072 = vld [vmem:[#allocation2 + $0x14] sm:$0xf]
      %1073 = vrot.lane.b32.xlu0 %v661, 1
      %v1074 = vpop.permute.xlu0 %1073
      %1075 = vrot.lane.b32.xlu0 %v662, 1
      %v1076 = vpop.permute.xlu0 %1075
      %v1077 = vrot.slane %v1074, 4
      %v1078 = vrot.slane %v1076, 4
      %v1079 = vsel %vm1058, %v1077, %v1074
      %v1080 = vsel %vm386, %v1077, %v1078
      %v1081 = vsel %vm1058, %v1080, %v1076
      %vm1082 = vcmp.ne.s16.totalorder %v1079, 0
      %vm1083 = vcmp.ne.s16.totalorder %v1081, 0
      %vm1084 = vcmp.ne.s16.totalorder %v1078, 0
      %v1085 = vsel %vm1082, %v1070, 0
      %v1086 = vsel %vm1083, %v1071, 0
      %v1087 = vsel %vm1084, %v1072, 0
      %1091 = vrot.lane.b32.xlu0 %v1085, 127
      %v1092 = vpop.permute.xlu0 %1091
      %1093 = vrot.lane.b32.xlu0 %v1086, 127
      %v1094 = vpop.permute.xlu0 %1093
      %1095 = vrot.lane.b32.xlu0 %v1087, 127
      %v1096 = vpop.permute.xlu0 %1095
      %v1097 = vrot.slane %v1092, 4
      %v1098 = vrot.slane %v1094, 4
      %v1099 = vrot.slane %v1096, 4
      %v1100 = vsel %vm386, %v1097, %v1098
      %v1101 = vsel %vm1035, %v1092, %v1100
      %v1102 = vsel %vm386, %v1098, %v1099
      %v1103 = vsel %vm1035, %v1094, %v1102
      %1106 = vst [vmem:[#allocation3 + $0x50] sm:$0xff] %v1101
      %1107 = vst [vmem:[#allocation3 + $0x58] sm:$0xff] %v1103
      %v1108 = vld [vmem:[#allocation2 + $0x4] sm:$0xff]
      %v1109 = vld [vmem:[#allocation2 + $0xc] sm:$0xff]
      %v1110 = vld [vmem:[#allocation2 + $0x14] sm:$0xf]
      %1111 = vrot.lane.b32.xlu0 %v724, 7
      %v1112 = vpop.permute.xlu0 %1111
      %1113 = vrot.lane.b32.xlu0 %v725, 7
      %v1114 = vpop.permute.xlu0 %1113
      %v1115 = vrot.slane %v1112, 4
      %v1116 = vrot.slane %v1114, 4
      %v1117 = vsel %vm1018, %v1115, %v1112
      %v1118 = vsel %vm386, %v1115, %v1116
      %v1119 = vsel %vm1018, %v1118, %v1114
      %vm1120 = vcmp.ne.s16.totalorder %v1117, 0
      %vm1121 = vcmp.ne.s16.totalorder %v1119, 0
      %vm1122 = vcmp.ne.s16.totalorder %v1116, 0
      %v1123 = vsel %vm1120, %v1108, 0
      %v1124 = vsel %vm1121, %v1109, 0
      %v1125 = vsel %vm1122, %v1110, 0
      %1129 = vrot.lane.b32.xlu0 %v1123, 121
      %v1130 = vpop.permute.xlu0 %1129
      %1131 = vrot.lane.b32.xlu0 %v1124, 121
      %v1132 = vpop.permute.xlu0 %1131
      %1133 = vrot.lane.b32.xlu0 %v1125, 121
      %v1134 = vpop.permute.xlu0 %1133
      %v1135 = vrot.slane %v1130, 4
      %v1136 = vrot.slane %v1132, 4
      %v1137 = vrot.slane %v1134, 4
      %v1138 = vsel %vm386, %v1135, %v1136
      %v1139 = vsel %vm995, %v1130, %v1138
      %v1140 = vsel %vm386, %v1136, %v1137
      %v1141 = vsel %vm995, %v1132, %v1140
      %1144 = vst [vmem:[#allocation3 + $0x60] sm:$0xff] %v1139
      %1145 = vst [vmem:[#allocation3 + $0x68] sm:$0xff] %v1141
      %v1146 = vld [vmem:[#allocation2 + $0x4] sm:$0xff]
      %v1147 = vld [vmem:[#allocation2 + $0xc] sm:$0xff]
      %v1148 = vld [vmem:[#allocation2 + $0x14] sm:$0xf]
      %1149 = vrot.lane.b32.xlu0 %v787, 8
      %v1150 = vpop.permute.xlu0 %1149
      %1151 = vrot.lane.b32.xlu0 %v788, 8
      %v1152 = vpop.permute.xlu0 %1151
      %v1153 = vrot.slane %v1150, 4
      %v1154 = vrot.slane %v1152, 4
      %v1155 = vsel %vm978, %v1153, %v1150
      %v1156 = vsel %vm386, %v1153, %v1154
      %v1157 = vsel %vm978, %v1156, %v1152
      %vm1158 = vcmp.ne.s16.totalorder %v1155, 0
      %vm1159 = vcmp.ne.s16.totalorder %v1157, 0
      %vm1160 = vcmp.ne.s16.totalorder %v1154, 0
      %v1161 = vsel %vm1158, %v1146, 0
      %v1162 = vsel %vm1159, %v1147, 0
      %v1163 = vsel %vm1160, %v1148, 0
      %1167 = vrot.lane.b32.xlu0 %v1161, 120
      %v1168 = vpop.permute.xlu0 %1167
      %1169 = vrot.lane.b32.xlu0 %v1162, 120
      %v1170 = vpop.permute.xlu0 %1169
      %1171 = vrot.lane.b32.xlu0 %v1163, 120
      %v1172 = vpop.permute.xlu0 %1171
      %v1173 = vrot.slane %v1168, 4
      %v1174 = vrot.slane %v1170, 4
      %v1175 = vrot.slane %v1172, 4
      %v1176 = vsel %vm386, %v1173, %v1174
      %v1177 = vsel %vm955, %v1168, %v1176
      %v1178 = vsel %vm386, %v1174, %v1175
      %v1179 = vsel %vm955, %v1170, %v1178
      %1182 = vst [vmem:[#allocation3 + $0x70] sm:$0xff] %v1177
      %1183 = vst [vmem:[#allocation3 + $0x78] sm:$0xff] %v1179
      %v1184 = vld [vmem:[#allocation2 + $0x4] sm:$0xff]
      %v1185 = vld [vmem:[#allocation2 + $0xc] sm:$0xff]
      %v1186 = vld [vmem:[#allocation2 + $0x14] sm:$0xf]
      %1187 = vrot.lane.b32.xlu0 %v850, 9
      %v1188 = vpop.permute.xlu0 %1187
      %1189 = vrot.lane.b32.xlu0 %v851, 9
      %v1190 = vpop.permute.xlu0 %1189
      %v1191 = vrot.slane %v1188, 4
      %v1192 = vrot.slane %v1190, 4
      %v1193 = vsel %vm938, %v1191, %v1188
      %v1194 = vsel %vm386, %v1191, %v1192
      %v1195 = vsel %vm938, %v1194, %v1190
      %vm1196 = vcmp.ne.s16.totalorder %v1193, 0
      %vm1197 = vcmp.ne.s16.totalorder %v1195, 0
      %vm1198 = vcmp.ne.s16.totalorder %v1192, 0
      %v1199 = vsel %vm1196, %v1184, 0
      %v1200 = vsel %vm1197, %v1185, 0
      %v1201 = vsel %vm1198, %v1186, 0
      %1205 = vrot.lane.b32.xlu0 %v1199, 119
      %v1206 = vpop.permute.xlu0 %1205
      %1207 = vrot.lane.b32.xlu0 %v1200, 119
      %v1208 = vpop.permute.xlu0 %1207
      %1209 = vrot.lane.b32.xlu0 %v1201, 119
      %v1210 = vpop.permute.xlu0 %1209
      %v1211 = vrot.slane %v1206, 4
      %v1212 = vrot.slane %v1208, 4
      %v1213 = vrot.slane %v1210, 4
      %v1214 = vsel %vm386, %v1211, %v1212
      %v1215 = vsel %vm915, %v1206, %v1214
      %v1216 = vsel %vm386, %v1212, %v1213
      %v1217 = vsel %vm915, %v1208, %v1216
      %1220 = vst [vmem:[#allocation3 + $0x80] sm:$0xff] %v1215
      %1221 = vst [vmem:[#allocation3 + $0x88] sm:$0xff] %v1217
      %s1222 = scalar_lea.vmem %s2, 4
      %v1223 = vld [vmem:[%s1222] sm:$0xf]
      %v1224 = vld [vmem:[#allocation3] sm:$0xff]
      %v1225 = vld [vmem:[#allocation3 + $0x8] sm:$0xff]
      %v1226 = vld [vmem:[#allocation3 + $0x10] sm:$0xff]
      %v1227 = vld [vmem:[#allocation3 + $0x18] sm:$0xff]
      %v1228 = vld [vmem:[#allocation3 + $0x20] sm:$0xff]
      %v1229 = vld [vmem:[#allocation3 + $0x28] sm:$0xff]
      %v1230 = vld [vmem:[#allocation3 + $0x30] sm:$0xff]
      %v1231 = vld [vmem:[#allocation3 + $0x38] sm:$0xff]
      %v1232 = vld [vmem:[#allocation3 + $0x40] sm:$0xff]
      %v1233 = vld [vmem:[#allocation3 + $0x48] sm:$0xff]
      %v1234 = vld [vmem:[#allocation3 + $0x50] sm:$0xff]
      %v1235 = vld [vmem:[#allocation3 + $0x58] sm:$0xff]
      %v1236 = vld [vmem:[#allocation3 + $0x60] sm:$0xff]
      %v1237 = vld [vmem:[#allocation3 + $0x68] sm:$0xff]
      %v1238 = vld [vmem:[#allocation3 + $0x70] sm:$0xff]
      %v1239 = vld [vmem:[#allocation3 + $0x78] sm:$0xff]
      %v1240 = vld [vmem:[#allocation3 + $0x80] sm:$0xff]
      %v1241 = vld [vmem:[#allocation3 + $0x88] sm:$0xff]
      %v1260 = vunpack.c.l.b16 %v1224
      %v1261 = vunpack.c.h.b16 %v1224
      %v1262 = vunpack.c.l.b16 %v1225
      %v1263 = vunpack.c.h.b16 %v1225
      %v1264 = vunpack.c.l.b16 %v1226
      %v1265 = vunpack.c.h.b16 %v1226
      %v1266 = vunpack.c.l.b16 %v1227
      %v1267 = vunpack.c.h.b16 %v1227
      %v1268 = vunpack.c.l.b16 %v1228
      %v1269 = vunpack.c.h.b16 %v1228
      %v1270 = vunpack.c.l.b16 %v1229
      %v1271 = vunpack.c.h.b16 %v1229
      %v1272 = vunpack.c.l.b16 %v1230
      %v1273 = vunpack.c.h.b16 %v1230
      %v1274 = vunpack.c.l.b16 %v1231
      %v1275 = vunpack.c.h.b16 %v1231
      %v1276 = vunpack.c.l.b16 %v1232
      %v1277 = vunpack.c.h.b16 %v1232
      %v1278 = vunpack.c.l.b16 %v1233
      %v1279 = vunpack.c.h.b16 %v1233
      %v1280 = vunpack.c.l.b16 %v1234
      %v1281 = vunpack.c.h.b16 %v1234
      %v1282 = vunpack.c.l.b16 %v1235
      %v1283 = vunpack.c.h.b16 %v1235
      %v1284 = vunpack.c.l.b16 %v1236
      %v1285 = vunpack.c.h.b16 %v1236
      %v1286 = vunpack.c.l.b16 %v1237
      %v1287 = vunpack.c.h.b16 %v1237
      %v1288 = vunpack.c.l.b16 %v1238
      %v1289 = vunpack.c.h.b16 %v1238
      %v1290 = vunpack.c.l.b16 %v1239
      %v1291 = vunpack.c.h.b16 %v1239
      %v1292 = vunpack.c.l.b16 %v1240
      %v1293 = vunpack.c.h.b16 %v1240
      %v1294 = vunpack.c.l.b16 %v1241
      %v1295 = vunpack.c.h.b16 %v1241
      %v1296 = vpack.c.b16 %v1264, %v1260
      %v1297 = vpack.c.b16 %v1265, %v1261
      %v1298 = vpack.c.b16 %v1266, %v1262
      %v1299 = vpack.c.b16 %v1267, %v1263
      %v1300 = vpack.c.b16 %v1272, %v1268
      %v1301 = vpack.c.b16 %v1273, %v1269
      %v1302 = vpack.c.b16 %v1274, %v1270
      %v1303 = vpack.c.b16 %v1275, %v1271
      %v1304 = vpack.c.b16 %v1280, %v1276
      %v1305 = vpack.c.b16 %v1281, %v1277
      %v1306 = vpack.c.b16 %v1282, %v1278
      %v1307 = vpack.c.b16 %v1283, %v1279
      %v1308 = vpack.c.b16 %v1288, %v1284
      %v1309 = vpack.c.b16 %v1289, %v1285
      %v1310 = vpack.c.b16 %v1290, %v1286
      %v1311 = vpack.c.b16 %v1291, %v1287
      %v1312 = vpack.c.b16 %v1292, %v1292
      %v1313 = vpack.c.b16 %v1293, %v1293
      %v1314 = vpack.c.b16 %v1294, %v1294
      %v1315 = vpack.c.b16 %v1295, %v1295
      %vm1332 = vcmask 588800
      %v1334 = vsel %vm1332, %v1223, 0
      %vm1336 = vcmask 1043456
      %v1338 = vsel %vm1336, %v1312, 0
      %v1341 = vsel %vm1336, %v1313, 0
      %v1344 = vsel %vm1336, %v1314, 0
      %v1347 = vsel %vm1336, %v1315, 0
      %1349 = vmatprep.subr.bf16.mxu0 %v1297
      %1350 = vmatpush1.bf16.msra.mxu0 %v1296
      %1351 = vmatprep.subr.bf16.mxu0 %v1301
      %1352 = vmatpush1.bf16.msra.mxu0 %v1300
      %1353 = vmatprep.subr.bf16.mxu0 %v1305
      %1354 = vmatpush1.bf16.msra.mxu0 %v1304
      %1355 = vmatprep.subr.bf16.mxu0 %v1309
      %1356 = vmatpush1.bf16.msra.mxu0 %v1308
      %1357 = vmatprep.subr.bf16.mxu0 %v1341
      %1358 = vmatpush1.bf16.msra.mxu0 %v1338
      %1359 = vmatprep.subr.bf16.mxu0 0
      %1360 = vmatpush1.bf16.msra.mxu0 0
      %1361 = vmatprep.subr.bf16.mxu0 0
      %1362 = vmatpush1.bf16.msra.mxu0 0
      %1363 = vmatprep.subr.bf16.mxu0 0
      %1364 = vmatpush1.bf16.msra.mxu0 0
      %1365 = vmatprep.subr.bf16.mxu0 0
      %1366 = vmatpush1.bf16.msra.mxu0 0
      %1367 = vmatprep.subr.bf16.mxu0 0
      %1368 = vmatpush1.bf16.msra.mxu0 0
      %1369 = vmatprep.subr.bf16.mxu0 0
      %1370 = vmatpush1.bf16.msra.mxu0 0
      %1371 = vmatprep.subr.bf16.mxu0 0
      %1372 = vmatpush1.bf16.msra.mxu0 0
      %1373 = vmatprep.subr.bf16.mxu0 0
      %1374 = vmatpush1.bf16.msra.mxu0 0
      %1375 = vmatprep.subr.bf16.mxu0 0
      %1376 = vmatpush1.bf16.msra.mxu0 0
      %1377 = vmatprep.subr.bf16.mxu0 0
      %1378 = vmatpush1.bf16.msra.mxu0 0
      %1379 = vmatprep.subr.bf16.mxu0 0
      %1380 = vmatpush1.bf16.msra.mxu0 0
      %1381 = vmatprep.mubr.bf16.mxu0 0
      %1382 = vmatmul.mubr.bf16.gmra.mrb[0].mxu0 %v1334
      %v1383 = vpop.f32.mrb[0].mxu0
      %v1384 = vadd.f32 0.0, %v1383
      %v1385 = vpop.f32.mrb[0].mxu0
      %v1386 = vadd.f32 0.0, %v1385
      %v1387 = vpop.f32.mrb[0].mxu0
      %v1388 = vpop.f32.mrb[0].mxu0
      %1389 = vdwg.mxu0
      %1390 = vmatprep.subr.bf16.mxu0 %v1299
      %1391 = vmatpush1.bf16.msra.mxu0 %v1298
      %1392 = vmatprep.subr.bf16.mxu0 %v1303
      %1393 = vmatpush1.bf16.msra.mxu0 %v1302
      %1394 = vmatprep.subr.bf16.mxu0 %v1307
      %1395 = vmatpush1.bf16.msra.mxu0 %v1306
      %1396 = vmatprep.subr.bf16.mxu0 %v1311
      %1397 = vmatpush1.bf16.msra.mxu0 %v1310
      %1398 = vmatprep.subr.bf16.mxu0 %v1347
      %1399 = vmatpush1.bf16.msra.mxu0 %v1344
      %1400 = vmatprep.subr.bf16.mxu0 0
      %1401 = vmatpush1.bf16.msra.mxu0 0
      %1402 = vmatprep.subr.bf16.mxu0 0
      %1403 = vmatpush1.bf16.msra.mxu0 0
      %1404 = vmatprep.subr.bf16.mxu0 0
      %1405 = vmatpush1.bf16.msra.mxu0 0
      %1406 = vmatprep.subr.bf16.mxu0 0
      %1407 = vmatpush1.bf16.msra.mxu0 0
      %1408 = vmatprep.subr.bf16.mxu0 0
      %1409 = vmatpush1.bf16.msra.mxu0 0
      %1410 = vmatprep.subr.bf16.mxu0 0
      %1411 = vmatpush1.bf16.msra.mxu0 0
      %1412 = vmatprep.subr.bf16.mxu0 0
      %1413 = vmatpush1.bf16.msra.mxu0 0
      %1414 = vmatprep.subr.bf16.mxu0 0
      %1415 = vmatpush1.bf16.msra.mxu0 0
      %1416 = vmatprep.subr.bf16.mxu0 0
      %1417 = vmatpush1.bf16.msra.mxu0 0
      %1418 = vmatprep.subr.bf16.mxu0 0
      %1419 = vmatpush1.bf16.msra.mxu0 0
      %1420 = vmatprep.subr.bf16.mxu0 0
      %1421 = vmatpush1.bf16.msra.mxu0 0
      %1422 = vmatprep.mubr.bf16.mxu0 0
      %1423 = vmatmul.mubr.bf16.gmra.mrb[0].mxu0 %v1334
      %v1424 = vpop.f32.mrb[0].mxu0
      %v1425 = vadd.f32 0.0, %v1424
      %v1426 = vpop.f32.mrb[0].mxu0
      %v1427 = vadd.f32 0.0, %v1426
      %v1428 = vpop.f32.mrb[0].mxu0
      %v1429 = vpop.f32.mrb[0].mxu0
      %1430 = vdwg.mxu0
      %v1449 = vunpack.c.l.b16 %v888
      %v1450 = vunpack.c.h.b16 %v888
      %v1451 = vunpack.c.l.b16 %v889
      %v1452 = vunpack.c.h.b16 %v889
      %v1453 = vunpack.c.l.b16 %v890
      %v1454 = vunpack.c.h.b16 %v890
      %v1455 = vunpack.c.l.b16 %v891
      %v1456 = vunpack.c.h.b16 %v891
      %v1457 = vunpack.c.l.b16 %v892
      %v1458 = vunpack.c.h.b16 %v892
      %v1459 = vunpack.c.l.b16 %v893
      %v1460 = vunpack.c.h.b16 %v893
      %v1461 = vunpack.c.l.b16 %v894
      %v1462 = vunpack.c.h.b16 %v894
      %v1463 = vunpack.c.l.b16 %v895
      %v1464 = vunpack.c.h.b16 %v895
      %v1465 = vunpack.c.l.b16 %v896
      %v1466 = vunpack.c.h.b16 %v896
      %v1467 = vunpack.c.l.b16 %v897
      %v1468 = vunpack.c.h.b16 %v897
      %v1469 = vunpack.c.l.b16 %v898
      %v1470 = vunpack.c.h.b16 %v898
      %v1471 = vunpack.c.l.b16 %v899
      %v1472 = vunpack.c.h.b16 %v899
      %v1473 = vunpack.c.l.b16 %v900
      %v1474 = vunpack.c.h.b16 %v900
      %v1475 = vunpack.c.l.b16 %v901
      %v1476 = vunpack.c.h.b16 %v901
      %v1477 = vunpack.c.l.b16 %v902
      %v1478 = vunpack.c.h.b16 %v902
      %v1479 = vunpack.c.l.b16 %v903
      %v1480 = vunpack.c.h.b16 %v903
      %v1481 = vunpack.c.l.b16 %v904
      %v1482 = vunpack.c.h.b16 %v904
      %v1483 = vunpack.c.l.b16 %v905
      %v1484 = vunpack.c.h.b16 %v905
      %v1485 = vpack.c.b16 %v1453, %v1449
      %v1486 = vpack.c.b16 %v1454, %v1450
      %v1487 = vpack.c.b16 %v1455, %v1451
      %v1488 = vpack.c.b16 %v1456, %v1452
      %v1489 = vpack.c.b16 %v1461, %v1457
      %v1490 = vpack.c.b16 %v1462, %v1458
      %v1491 = vpack.c.b16 %v1463, %v1459
      %v1492 = vpack.c.b16 %v1464, %v1460
      %v1493 = vpack.c.b16 %v1469, %v1465
      %v1494 = vpack.c.b16 %v1470, %v1466
      %v1495 = vpack.c.b16 %v1471, %v1467
      %v1496 = vpack.c.b16 %v1472, %v1468
      %v1497 = vpack.c.b16 %v1477, %v1473
      %v1498 = vpack.c.b16 %v1478, %v1474
      %v1499 = vpack.c.b16 %v1479, %v1475
      %v1500 = vpack.c.b16 %v1480, %v1476
      %v1501 = vpack.c.b16 %v1481, %v1481
      %v1502 = vpack.c.b16 %v1482, %v1482
      %v1503 = vpack.c.b16 %v1483, %v1483
      %v1504 = vpack.c.b16 %v1484, %v1484
      %v1522 = vsel %vm1332, %v887, 0
      %v1525 = vsel %vm1336, %v1501, 0
      %v1528 = vsel %vm1336, %v1502, 0
      %v1531 = vsel %vm1336, %v1503, 0
      %v1534 = vsel %vm1336, %v1504, 0
      %1536 = vmatprep.subr.bf16.mxu0 %v1486
      %1537 = vmatpush1.bf16.msra.mxu0 %v1485
      %1538 = vmatprep.subr.bf16.mxu0 %v1490
      %1539 = vmatpush1.bf16.msra.mxu0 %v1489
      %1540 = vmatprep.subr.bf16.mxu0 %v1494
      %1541 = vmatpush1.bf16.msra.mxu0 %v1493
      %1542 = vmatprep.subr.bf16.mxu0 %v1498
      %1543 = vmatpush1.bf16.msra.mxu0 %v1497
      %1544 = vmatprep.subr.bf16.mxu0 %v1528
      %1545 = vmatpush1.bf16.msra.mxu0 %v1525
      %1546 = vmatprep.subr.bf16.mxu0 0
      %1547 = vmatpush1.bf16.msra.mxu0 0
      %1548 = vmatprep.subr.bf16.mxu0 0
      %1549 = vmatpush1.bf16.msra.mxu0 0
      %1550 = vmatprep.subr.bf16.mxu0 0
      %1551 = vmatpush1.bf16.msra.mxu0 0
      %1552 = vmatprep.subr.bf16.mxu0 0
      %1553 = vmatpush1.bf16.msra.mxu0 0
      %1554 = vmatprep.subr.bf16.mxu0 0
      %1555 = vmatpush1.bf16.msra.mxu0 0
      %1556 = vmatprep.subr.bf16.mxu0 0
      %1557 = vmatpush1.bf16.msra.mxu0 0
      %1558 = vmatprep.subr.bf16.mxu0 0
      %1559 = vmatpush1.bf16.msra.mxu0 0
      %1560 = vmatprep.subr.bf16.mxu0 0
      %1561 = vmatpush1.bf16.msra.mxu0 0
      %1562 = vmatprep.subr.bf16.mxu0 0
      %1563 = vmatpush1.bf16.msra.mxu0 0
      %1564 = vmatprep.subr.bf16.mxu0 0
      %1565 = vmatpush1.bf16.msra.mxu0 0
      %1566 = vmatprep.subr.bf16.mxu0 0
      %1567 = vmatpush1.bf16.msra.mxu0 0
      %1568 = vmatprep.mubr.bf16.mxu0 0
      %1569 = vmatmul.mubr.bf16.gmra.mrb[0].mxu0 %v1522
      %v1570 = vpop.f32.mrb[0].mxu0
      %v1571 = vadd.f32 %v1384, %v1570
      %v1572 = vpop.f32.mrb[0].mxu0
      %v1573 = vadd.f32 %v1386, %v1572
      %v1574 = vpop.f32.mrb[0].mxu0
      %v1575 = vpop.f32.mrb[0].mxu0
      %1576 = vdwg.mxu0
      %1577 = vmatprep.subr.bf16.mxu0 %v1488
      %1578 = vmatpush1.bf16.msra.mxu0 %v1487
      %1579 = vmatprep.subr.bf16.mxu0 %v1492
      %1580 = vmatpush1.bf16.msra.mxu0 %v1491
      %1581 = vmatprep.subr.bf16.mxu0 %v1496
      %1582 = vmatpush1.bf16.msra.mxu0 %v1495
      %1583 = vmatprep.subr.bf16.mxu0 %v1500
      %1584 = vmatpush1.bf16.msra.mxu0 %v1499
      %1585 = vmatprep.subr.bf16.mxu0 %v1534
      %1586 = vmatpush1.bf16.msra.mxu0 %v1531
      %1587 = vmatprep.subr.bf16.mxu0 0
      %1588 = vmatpush1.bf16.msra.mxu0 0
      %1589 = vmatprep.subr.bf16.mxu0 0
      %1590 = vmatpush1.bf16.msra.mxu0 0
      %1591 = vmatprep.subr.bf16.mxu0 0
      %1592 = vmatpush1.bf16.msra.mxu0 0
      %1593 = vmatprep.subr.bf16.mxu0 0
      %1594 = vmatpush1.bf16.msra.mxu0 0
      %1595 = vmatprep.subr.bf16.mxu0 0
      %1596 = vmatpush1.bf16.msra.mxu0 0
      %1597 = vmatprep.subr.bf16.mxu0 0
      %1598 = vmatpush1.bf16.msra.mxu0 0
      %1599 = vmatprep.subr.bf16.mxu0 0
      %1600 = vmatpush1.bf16.msra.mxu0 0
      %1601 = vmatprep.subr.bf16.mxu0 0
      %1602 = vmatpush1.bf16.msra.mxu0 0
      %1603 = vmatprep.subr.bf16.mxu0 0
      %1604 = vmatpush1.bf16.msra.mxu0 0
      %1605 = vmatprep.subr.bf16.mxu0 0
      %1606 = vmatpush1.bf16.msra.mxu0 0
      %1607 = vmatprep.subr.bf16.mxu0 0
      %1608 = vmatpush1.bf16.msra.mxu0 0
      %1609 = vmatprep.mubr.bf16.mxu0 0
      %1610 = vmatmul.mubr.bf16.gmra.mrb[0].mxu0 %v1522
      %v1611 = vpop.f32.mrb[0].mxu0
      %v1612 = vadd.f32 %v1425, %v1611
      %v1613 = vpop.f32.mrb[0].mxu0
      %v1614 = vadd.f32 %v1427, %v1613
      %v1615 = vpop.f32.mrb[0].mxu0
      %v1616 = vpop.f32.mrb[0].mxu0
      %1617 = vdwg.mxu0
      %v1618 = vld [vmem:[#allocation2 + $0x4] sm:$0xff]
      %v1619 = vld [vmem:[#allocation2 + $0xc] sm:$0xff]
      %v1620 = vld [vmem:[#allocation2 + $0x14] sm:$0xf]
      %v1621 = vsel %vm389, %v1618, 0
      %v1622 = vsel %vm390, %v1619, 0
      %v1623 = vsel %vm391, %v1620, 0
      %1627 = vrot.lane.b32.xlu0 %v1621, 73
      %v1628 = vpop.permute.xlu0 %1627
      %1629 = vrot.lane.b32.xlu0 %v1622, 73
      %v1630 = vpop.permute.xlu0 %1629
      %1631 = vrot.lane.b32.xlu0 %v1623, 73
      %v1632 = vpop.permute.xlu0 %1631
      %v1633 = vrot.slane %v1628, 4
      %v1634 = vrot.slane %v1630, 4
      %v1635 = vrot.slane %v1632, 4
      %v1636 = vsel %vm386, %v1633, %v1634
      %v1637 = vsel %vm408, %v1628, %v1636
      %v1638 = vsel %vm386, %v1634, %v1635
      %v1639 = vsel %vm408, %v1630, %v1638
      %1642 = vst [vmem:[#allocation3] sm:$0xff] %v1637
      %1643 = vst [vmem:[#allocation3 + $0x8] sm:$0xff] %v1639
      %v1644 = vld [vmem:[#allocation2 + $0x4] sm:$0xff]
      %v1645 = vld [vmem:[#allocation2 + $0xc] sm:$0xff]
      %v1646 = vld [vmem:[#allocation2 + $0x14] sm:$0xf]
      %v1647 = vsel %vm454, %v1644, 0
      %v1648 = vsel %vm455, %v1645, 0
      %v1649 = vsel %vm456, %v1646, 0
      %1653 = vrot.lane.b32.xlu0 %v1647, 72
      %v1654 = vpop.permute.xlu0 %1653
      %1655 = vrot.lane.b32.xlu0 %v1648, 72
      %v1656 = vpop.permute.xlu0 %1655
      %1657 = vrot.lane.b32.xlu0 %v1649, 72
      %v1658 = vpop.permute.xlu0 %1657
      %v1659 = vrot.slane %v1654, 4
      %v1660 = vrot.slane %v1656, 4
      %v1661 = vrot.slane %v1658, 4
      %v1662 = vsel %vm386, %v1659, %v1660
      %v1663 = vsel %vm473, %v1654, %v1662
      %v1664 = vsel %vm386, %v1660, %v1661
      %v1665 = vsel %vm473, %v1656, %v1664
      %1668 = vst [vmem:[#allocation3 + $0x10] sm:$0xff] %v1663
      %1669 = vst [vmem:[#allocation3 + $0x18] sm:$0xff] %v1665
      %v1670 = vld [vmem:[#allocation2 + $0x4] sm:$0xff]
      %v1671 = vld [vmem:[#allocation2 + $0xc] sm:$0xff]
      %v1672 = vld [vmem:[#allocation2 + $0x14] sm:$0xf]
      %v1673 = vsel %vm519, %v1670, 0
      %v1674 = vsel %vm520, %v1671, 0
      %v1675 = vsel %vm521, %v1672, 0
      %1679 = vrot.lane.b32.xlu0 %v1673, 71
      %v1680 = vpop.permute.xlu0 %1679
      %1681 = vrot.lane.b32.xlu0 %v1674, 71
      %v1682 = vpop.permute.xlu0 %1681
      %1683 = vrot.lane.b32.xlu0 %v1675, 71
      %v1684 = vpop.permute.xlu0 %1683
      %v1685 = vrot.slane %v1680, 4
      %v1686 = vrot.slane %v1682, 4
      %v1687 = vrot.slane %v1684, 4
      %v1688 = vsel %vm386, %v1685, %v1686
      %v1689 = vsel %vm538, %v1680, %v1688
      %v1690 = vsel %vm386, %v1686, %v1687
      %v1691 = vsel %vm538, %v1682, %v1690
      %1694 = vst [vmem:[#allocation3 + $0x20] sm:$0xff] %v1689
      %1695 = vst [vmem:[#allocation3 + $0x28] sm:$0xff] %v1691
      %v1696 = vld [vmem:[#allocation2 + $0x4] sm:$0xff]
      %v1697 = vld [vmem:[#allocation2 + $0xc] sm:$0xff]
      %v1698 = vld [vmem:[#allocation2 + $0x14] sm:$0xf]
      %v1699 = vsel %vm584, %v1696, 0
      %v1700 = vsel %vm585, %v1697, 0
      %v1701 = vsel %vm586, %v1698, 0
      %1705 = vrot.lane.b32.xlu0 %v1699, 65
      %v1706 = vpop.permute.xlu0 %1705
      %1707 = vrot.lane.b32.xlu0 %v1700, 65
      %v1708 = vpop.permute.xlu0 %1707
      %1709 = vrot.lane.b32.xlu0 %v1701, 65
      %v1710 = vpop.permute.xlu0 %1709
      %v1711 = vrot.slane %v1706, 4
      %v1712 = vrot.slane %v1708, 4
      %v1713 = vrot.slane %v1710, 4
      %v1714 = vsel %vm386, %v1711, %v1712
      %v1715 = vsel %vm603, %v1706, %v1714
      %v1716 = vsel %vm386, %v1712, %v1713
      %v1717 = vsel %vm603, %v1708, %v1716
      %1720 = vst [vmem:[#allocation3 + $0x30] sm:$0xff] %v1715
      %1721 = vst [vmem:[#allocation3 + $0x38] sm:$0xff] %v1717
      %v1722 = vld [vmem:[#allocation2 + $0x4] sm:$0xff]
      %v1723 = vld [vmem:[#allocation2 + $0xc] sm:$0xff]
      %v1724 = vld [vmem:[#allocation2 + $0x14] sm:$0xf]
      %1728 = vrot.lane.b32.xlu0 %v1722, 64
      %v1729 = vpop.permute.xlu0 %1728
      %1730 = vrot.lane.b32.xlu0 %v1723, 64
      %v1731 = vpop.permute.xlu0 %1730
      %1732 = vrot.lane.b32.xlu0 %v1724, 64
      %v1733 = vpop.permute.xlu0 %1732
      %v1734 = vrot.slane %v1729, 4
      %v1735 = vrot.slane %v1731, 4
      %v1736 = vrot.slane %v1733, 4
      %v1737 = vsel %vm386, %v1734, %v1735
      %v1738 = vsel %vm627, %v1729, %v1737
      %v1739 = vsel %vm386, %v1735, %v1736
      %v1740 = vsel %vm627, %v1731, %v1739
      %1743 = vst [vmem:[#allocation3 + $0x40] sm:$0xff] %v1738
      %1744 = vst [vmem:[#allocation3 + $0x48] sm:$0xff] %v1740
      %v1745 = vld [vmem:[#allocation2 + $0x4] sm:$0xff]
      %v1746 = vld [vmem:[#allocation2 + $0xc] sm:$0xff]
      %v1747 = vld [vmem:[#allocation2 + $0x14] sm:$0xf]
      %v1748 = vsel %vm672, %v1745, 0
      %v1749 = vsel %vm673, %v1746, 0
      %v1750 = vsel %vm674, %v1747, 0
      %1754 = vrot.lane.b32.xlu0 %v1748, 63
      %v1755 = vpop.permute.xlu0 %1754
      %1756 = vrot.lane.b32.xlu0 %v1749, 63
      %v1757 = vpop.permute.xlu0 %1756
      %1758 = vrot.lane.b32.xlu0 %v1750, 63
      %v1759 = vpop.permute.xlu0 %1758
      %v1760 = vrot.slane %v1755, 4
      %v1761 = vrot.slane %v1757, 4
      %v1762 = vrot.slane %v1759, 4
      %v1763 = vsel %vm386, %v1760, %v1761
      %v1764 = vsel %vm580, %v1755, %v1763
      %v1765 = vsel %vm386, %v1761, %v1762
      %v1766 = vsel %vm580, %v1757, %v1765
      %1769 = vst [vmem:[#allocation3 + $0x50] sm:$0xff] %v1764
      %1770 = vst [vmem:[#allocation3 + $0x58] sm:$0xff] %v1766
      %v1771 = vld [vmem:[#allocation2 + $0x4] sm:$0xff]
      %v1772 = vld [vmem:[#allocation2 + $0xc] sm:$0xff]
      %v1773 = vld [vmem:[#allocation2 + $0x14] sm:$0xf]
      %v1774 = vsel %vm735, %v1771, 0
      %v1775 = vsel %vm736, %v1772, 0
      %v1776 = vsel %vm737, %v1773, 0
      %1780 = vrot.lane.b32.xlu0 %v1774, 57
      %v1781 = vpop.permute.xlu0 %1780
      %1782 = vrot.lane.b32.xlu0 %v1775, 57
      %v1783 = vpop.permute.xlu0 %1782
      %1784 = vrot.lane.b32.xlu0 %v1776, 57
      %v1785 = vpop.permute.xlu0 %1784
      %v1786 = vrot.slane %v1781, 4
      %v1787 = vrot.slane %v1783, 4
      %v1788 = vrot.slane %v1785, 4
      %v1789 = vsel %vm386, %v1786, %v1787
      %v1790 = vsel %vm515, %v1781, %v1789
      %v1791 = vsel %vm386, %v1787, %v1788
      %v1792 = vsel %vm515, %v1783, %v1791
      %1795 = vst [vmem:[#allocation3 + $0x60] sm:$0xff] %v1790
      %1796 = vst [vmem:[#allocation3 + $0x68] sm:$0xff] %v1792
      %v1797 = vld [vmem:[#allocation2 + $0x4] sm:$0xff]
      %v1798 = vld [vmem:[#allocation2 + $0xc] sm:$0xff]
      %v1799 = vld [vmem:[#allocation2 + $0x14] sm:$0xf]
      %v1800 = vsel %vm798, %v1797, 0
      %v1801 = vsel %vm799, %v1798, 0
      %v1802 = vsel %vm800, %v1799, 0
      %1806 = vrot.lane.b32.xlu0 %v1800, 56
      %v1807 = vpop.permute.xlu0 %1806
      %1808 = vrot.lane.b32.xlu0 %v1801, 56
      %v1809 = vpop.permute.xlu0 %1808
      %1810 = vrot.lane.b32.xlu0 %v1802, 56
      %v1811 = vpop.permute.xlu0 %1810
      %v1812 = vrot.slane %v1807, 4
      %v1813 = vrot.slane %v1809, 4
      %v1814 = vrot.slane %v1811, 4
      %v1815 = vsel %vm386, %v1812, %v1813
      %v1816 = vsel %vm450, %v1807, %v1815
      %v1817 = vsel %vm386, %v1813, %v1814
      %v1818 = vsel %vm450, %v1809, %v1817
      %1821 = vst [vmem:[#allocation3 + $0x70] sm:$0xff] %v1816
      %1822 = vst [vmem:[#allocation3 + $0x78] sm:$0xff] %v1818
      %v1823 = vld [vmem:[#allocation2 + $0x4] sm:$0xff]
      %v1824 = vld [vmem:[#allocation2 + $0xc] sm:$0xff]
      %v1825 = vld [vmem:[#allocation2 + $0x14] sm:$0xf]
      %v1826 = vsel %vm861, %v1823, 0
      %v1827 = vsel %vm862, %v1824, 0
      %v1828 = vsel %vm863, %v1825, 0
      %1832 = vrot.lane.b32.xlu0 %v1826, 55
      %v1833 = vpop.permute.xlu0 %1832
      %1834 = vrot.lane.b32.xlu0 %v1827, 55
      %v1835 = vpop.permute.xlu0 %1834
      %1836 = vrot.lane.b32.xlu0 %v1828, 55
      %v1837 = vpop.permute.xlu0 %1836
      %v1838 = vrot.slane %v1833, 4
      %v1839 = vrot.slane %v1835, 4
      %v1840 = vrot.slane %v1837, 4
      %v1841 = vsel %vm386, %v1838, %v1839
      %v1842 = vsel %vm384, %v1833, %v1841
      %v1843 = vsel %vm386, %v1839, %v1840
      %v1844 = vsel %vm384, %v1835, %v1843
      %1847 = vst [vmem:[#allocation3 + $0x80] sm:$0xff] %v1842
      %1848 = vst [vmem:[#allocation3 + $0x88] sm:$0xff] %v1844
      %s1849 = scalar_lea.vmem %s2, 8
      %v1850 = vld [vmem:[%s1849] sm:$0xf]
      %v1851 = vld [vmem:[#allocation3] sm:$0xff]
      %v1852 = vld [vmem:[#allocation3 + $0x8] sm:$0xff]
      %v1853 = vld [vmem:[#allocation3 + $0x10] sm:$0xff]
      %v1854 = vld [vmem:[#allocation3 + $0x18] sm:$0xff]
      %v1855 = vld [vmem:[#allocation3 + $0x20] sm:$0xff]
      %v1856 = vld [vmem:[#allocation3 + $0x28] sm:$0xff]
      %v1857 = vld [vmem:[#allocation3 + $0x30] sm:$0xff]
      %v1858 = vld [vmem:[#allocation3 + $0x38] sm:$0xff]
      %v1859 = vld [vmem:[#allocation3 + $0x40] sm:$0xff]
      %v1860 = vld [vmem:[#allocation3 + $0x48] sm:$0xff]
      %v1861 = vld [vmem:[#allocation3 + $0x50] sm:$0xff]
      %v1862 = vld [vmem:[#allocation3 + $0x58] sm:$0xff]
      %v1863 = vld [vmem:[#allocation3 + $0x60] sm:$0xff]
      %v1864 = vld [vmem:[#allocation3 + $0x68] sm:$0xff]
      %v1865 = vld [vmem:[#allocation3 + $0x70] sm:$0xff]
      %v1866 = vld [vmem:[#allocation3 + $0x78] sm:$0xff]
      %v1867 = vld [vmem:[#allocation3 + $0x80] sm:$0xff]
      %v1868 = vld [vmem:[#allocation3 + $0x88] sm:$0xff]
      %v1887 = vunpack.c.l.b16 %v1851
      %v1888 = vunpack.c.h.b16 %v1851
      %v1889 = vunpack.c.l.b16 %v1852
      %v1890 = vunpack.c.h.b16 %v1852
      %v1891 = vunpack.c.l.b16 %v1853
      %v1892 = vunpack.c.h.b16 %v1853
      %v1893 = vunpack.c.l.b16 %v1854
      %v1894 = vunpack.c.h.b16 %v1854
      %v1895 = vunpack.c.l.b16 %v1855
      %v1896 = vunpack.c.h.b16 %v1855
      %v1897 = vunpack.c.l.b16 %v1856
      %v1898 = vunpack.c.h.b16 %v1856
      %v1899 = vunpack.c.l.b16 %v1857
      %v1900 = vunpack.c.h.b16 %v1857
      %v1901 = vunpack.c.l.b16 %v1858
      %v1902 = vunpack.c.h.b16 %v1858
      %v1903 = vunpack.c.l.b16 %v1859
      %v1904 = vunpack.c.h.b16 %v1859
      %v1905 = vunpack.c.l.b16 %v1860
      %v1906 = vunpack.c.h.b16 %v1860
      %v1907 = vunpack.c.l.b16 %v1861
      %v1908 = vunpack.c.h.b16 %v1861
      %v1909 = vunpack.c.l.b16 %v1862
      %v1910 = vunpack.c.h.b16 %v1862
      %v1911 = vunpack.c.l.b16 %v1863
      %v1912 = vunpack.c.h.b16 %v1863
      %v1913 = vunpack.c.l.b16 %v1864
      %v1914 = vunpack.c.h.b16 %v1864
      %v1915 = vunpack.c.l.b16 %v1865
      %v1916 = vunpack.c.h.b16 %v1865
      %v1917 = vunpack.c.l.b16 %v1866
      %v1918 = vunpack.c.h.b16 %v1866
      %v1919 = vunpack.c.l.b16 %v1867
      %v1920 = vunpack.c.h.b16 %v1867
      %v1921 = vunpack.c.l.b16 %v1868
      %v1922 = vunpack.c.h.b16 %v1868
      %v1923 = vpack.c.b16 %v1891, %v1887
      %v1924 = vpack.c.b16 %v1892, %v1888
      %v1925 = vpack.c.b16 %v1893, %v1889
      %v1926 = vpack.c.b16 %v1894, %v1890
      %v1927 = vpack.c.b16 %v1899, %v1895
      %v1928 = vpack.c.b16 %v1900, %v1896
      %v1929 = vpack.c.b16 %v1901, %v1897
      %v1930 = vpack.c.b16 %v1902, %v1898
      %v1931 = vpack.c.b16 %v1907, %v1903
      %v1932 = vpack.c.b16 %v1908, %v1904
      %v1933 = vpack.c.b16 %v1909, %v1905
      %v1934 = vpack.c.b16 %v1910, %v1906
      %v1935 = vpack.c.b16 %v1915, %v1911
      %v1936 = vpack.c.b16 %v1916, %v1912
      %v1937 = vpack.c.b16 %v1917, %v1913
      %v1938 = vpack.c.b16 %v1918, %v1914
      %v1939 = vpack.c.b16 %v1919, %v1919
      %v1940 = vpack.c.b16 %v1920, %v1920
      %v1941 = vpack.c.b16 %v1921, %v1921
      %v1942 = vpack.c.b16 %v1922, %v1922
      %v1960 = vsel %vm1332, %v1850, 0
      %v1963 = vsel %vm1336, %v1939, 0
      %v1966 = vsel %vm1336, %v1940, 0
      %v1969 = vsel %vm1336, %v1941, 0
      %v1972 = vsel %vm1336, %v1942, 0
      %1974 = vmatprep.subr.bf16.mxu0 %v1924
      %1975 = vmatpush1.bf16.msra.mxu0 %v1923
      %1976 = vmatprep.subr.bf16.mxu0 %v1928
      %1977 = vmatpush1.bf16.msra.mxu0 %v1927
      %1978 = vmatprep.subr.bf16.mxu0 %v1932
      %1979 = vmatpush1.bf16.msra.mxu0 %v1931
      %1980 = vmatprep.subr.bf16.mxu0 %v1936
      %1981 = vmatpush1.bf16.msra.mxu0 %v1935
      %1982 = vmatprep.subr.bf16.mxu0 %v1966
      %1983 = vmatpush1.bf16.msra.mxu0 %v1963
      %1984 = vmatprep.subr.bf16.mxu0 0
      %1985 = vmatpush1.bf16.msra.mxu0 0
      %1986 = vmatprep.subr.bf16.mxu0 0
      %1987 = vmatpush1.bf16.msra.mxu0 0
      %1988 = vmatprep.subr.bf16.mxu0 0
      %1989 = vmatpush1.bf16.msra.mxu0 0
      %1990 = vmatprep.subr.bf16.mxu0 0
      %1991 = vmatpush1.bf16.msra.mxu0 0
      %1992 = vmatprep.subr.bf16.mxu0 0
      %1993 = vmatpush1.bf16.msra.mxu0 0
      %1994 = vmatprep.subr.bf16.mxu0 0
      %1995 = vmatpush1.bf16.msra.mxu0 0
      %1996 = vmatprep.subr.bf16.mxu0 0
      %1997 = vmatpush1.bf16.msra.mxu0 0
      %1998 = vmatprep.subr.bf16.mxu0 0
      %1999 = vmatpush1.bf16.msra.mxu0 0
      %2000 = vmatprep.subr.bf16.mxu0 0
      %2001 = vmatpush1.bf16.msra.mxu0 0
      %2002 = vmatprep.subr.bf16.mxu0 0
      %2003 = vmatpush1.bf16.msra.mxu0 0
      %2004 = vmatprep.subr.bf16.mxu0 0
      %2005 = vmatpush1.bf16.msra.mxu0 0
      %2006 = vmatprep.mubr.bf16.mxu0 0
      %2007 = vmatmul.mubr.bf16.gmra.mrb[0].mxu0 %v1960
      %v2008 = vpop.f32.mrb[0].mxu0
      %v2009 = vadd.f32 0.0, %v2008
      %v2010 = vpop.f32.mrb[0].mxu0
      %v2011 = vadd.f32 0.0, %v2010
      %v2012 = vpop.f32.mrb[0].mxu0
      %v2013 = vpop.f32.mrb[0].mxu0
      %2014 = vdwg.mxu0
      %2015 = vmatprep.subr.bf16.mxu0 %v1926
      %2016 = vmatpush1.bf16.msra.mxu0 %v1925
      %2017 = vmatprep.subr.bf16.mxu0 %v1930
      %2018 = vmatpush1.bf16.msra.mxu0 %v1929
      %2019 = vmatprep.subr.bf16.mxu0 %v1934
      %2020 = vmatpush1.bf16.msra.mxu0 %v1933
      %2021 = vmatprep.subr.bf16.mxu0 %v1938
      %2022 = vmatpush1.bf16.msra.mxu0 %v1937
      %2023 = vmatprep.subr.bf16.mxu0 %v1972
      %2024 = vmatpush1.bf16.msra.mxu0 %v1969
      %2025 = vmatprep.subr.bf16.mxu0 0
      %2026 = vmatpush1.bf16.msra.mxu0 0
      %2027 = vmatprep.subr.bf16.mxu0 0
      %2028 = vmatpush1.bf16.msra.mxu0 0
      %2029 = vmatprep.subr.bf16.mxu0 0
      %2030 = vmatpush1.bf16.msra.mxu0 0
      %2031 = vmatprep.subr.bf16.mxu0 0
      %2032 = vmatpush1.bf16.msra.mxu0 0
      %2033 = vmatprep.subr.bf16.mxu0 0
      %2034 = vmatpush1.bf16.msra.mxu0 0
      %2035 = vmatprep.subr.bf16.mxu0 0
      %2036 = vmatpush1.bf16.msra.mxu0 0
      %2037 = vmatprep.subr.bf16.mxu0 0
      %2038 = vmatpush1.bf16.msra.mxu0 0
      %2039 = vmatprep.subr.bf16.mxu0 0
      %2040 = vmatpush1.bf16.msra.mxu0 0
      %2041 = vmatprep.subr.bf16.mxu0 0
      %2042 = vmatpush1.bf16.msra.mxu0 0
      %2043 = vmatprep.subr.bf16.mxu0 0
      %2044 = vmatpush1.bf16.msra.mxu0 0
      %2045 = vmatprep.subr.bf16.mxu0 0
      %2046 = vmatpush1.bf16.msra.mxu0 0
      %2047 = vmatprep.mubr.bf16.mxu0 0
      %2048 = vmatmul.mubr.bf16.gmra.mrb[0].mxu0 %v1960
      %v2049 = vpop.f32.mrb[0].mxu0
      %v2050 = vadd.f32 0.0, %v2049
      %v2051 = vpop.f32.mrb[0].mxu0
      %v2052 = vadd.f32 0.0, %v2051
      %v2053 = vpop.f32.mrb[0].mxu0
      %v2054 = vpop.f32.mrb[0].mxu0
      %2055 = vdwg.mxu0
      %v2056 = vadd.f32 %v1571, %v2009
      %v2057 = vadd.f32 %v1573, %v2011
      %v2058 = vadd.f32 %v1612, %v2050
      %v2059 = vadd.f32 %v1614, %v2052
      %v2060 = vld [vmem:[%s3] sm:$0xff]
      %2062 = vset.pattern.permute.xlu0 0
      %2063 = vperm.xlu0 %2062, %v2060
      %v2064 = vpop.permute.xlu0 %2063
      %v2066 = vmul.f32 %v2056, %v2064
      %v2067 = vmul.f32 %v2057, %v2064
      %v2068 = vmul.f32 %v2058, %v2064
      %v2069 = vmul.f32 %v2059, %v2064
      %v2070 = vld [vmem:[%s4] sm:$0xff]
      %2072 = vset.pattern.permute.xlu0 0
      %2073 = vperm.xlu0 %2072, %v2070
      %v2074 = vpop.permute.xlu0 %2073
      %v2076 = vadd.f32 %v2066, %v2074
      %v2077 = vadd.f32 %v2067, %v2074
      %v2078 = vadd.f32 %v2068, %v2074
      %v2079 = vadd.f32 %v2069, %v2074
      %vm2080 = vcmp.gt.f32.partialorder %v2076, 0.0
      %vm2081 = vcmp.gt.f32.partialorder %v2077, 0.0
      %vm2082 = vcmp.gt.f32.partialorder %v2078, 0.0
      %vm2083 = vcmp.gt.f32.partialorder %v2079, 0.0
      %v2084 = vmul.f32 %v2076, 0.01
      %v2085 = vmul.f32 %v2077, 0.01
      %v2086 = vmul.f32 %v2078, 0.01
      %v2087 = vmul.f32 %v2079, 0.01
      %v2088 = vsel %vm2080, %v2076, %v2084
      %v2089 = vsel %vm2081, %v2077, %v2085
      %v2090 = vsel %vm2082, %v2078, %v2086
      %v2091 = vsel %vm2083, %v2079, %v2087
      %v2092 = vpack.c.bf16 %v2088, %v2088
      %v2093 = vpack.c.bf16 %v2089, %v2089
      %v2094 = vpack.c.bf16 %v2090, %v2090
      %v2095 = vpack.c.bf16 %v2091, %v2091
      %2096 = vst [vmem:[#allocation2] sm:$0xf] 0
      %2097 = vst [vmem:[#allocation2 + $0x14] sm:$0xf] 0
      %v2102 = vunpack.c.l.b16 %v2092
      %v2103 = vunpack.c.l.b16 %v2093
      %v2104 = vunpack.c.l.b16 %v2094
      %v2105 = vunpack.c.l.b16 %v2095
      %v2106 = vpack.c.b16 %v2103, %v2102
      %v2107 = vpack.c.b16 %v2105, %v2104
      %2110 = vst [vmem:[#allocation2 + $0x4] sm:$0xff] %v2106
      %2111 = vst [vmem:[#allocation2 + $0xc] sm:$0xff] %v2107
      %v2112 = vld [vmem:[#allocation2] sm:$0xff]
      %v2113 = vld [vmem:[#allocation2 + $0x8] sm:$0xff]
      %v2114 = vld [vmem:[#allocation2 + $0x10] sm:$0xf]
      %v2115 = vsel %vm389, %v2112, 0
      %v2116 = vsel %vm390, %v2113, 0
      %v2117 = vsel %vm391, %v2114, 0
      %2121 = vrot.lane.b32.xlu0 %v2115, 73
      %v2122 = vpop.permute.xlu0 %2121
      %2123 = vrot.lane.b32.xlu0 %v2116, 73
      %v2124 = vpop.permute.xlu0 %2123
      %2125 = vrot.lane.b32.xlu0 %v2117, 73
      %v2126 = vpop.permute.xlu0 %2125
      %v2127 = vrot.slane %v2122, 4
      %v2128 = vrot.slane %v2124, 4
      %v2129 = vrot.slane %v2126, 4
      %v2130 = vsel %vm386, %v2127, %v2128
      %v2131 = vsel %vm408, %v2122, %v2130
      %v2132 = vsel %vm386, %v2128, %v2129
      %v2133 = vsel %vm408, %v2124, %v2132
      %2136 = vst [vmem:[#allocation3] sm:$0xff] %v2131
      %2137 = vst [vmem:[#allocation3 + $0x8] sm:$0xff] %v2133
      %v2138 = vld [vmem:[#allocation2] sm:$0xff]
      %v2139 = vld [vmem:[#allocation2 + $0x8] sm:$0xff]
      %v2140 = vld [vmem:[#allocation2 + $0x10] sm:$0xf]
      %v2141 = vsel %vm454, %v2138, 0
      %v2142 = vsel %vm455, %v2139, 0
      %v2143 = vsel %vm456, %v2140, 0
      %2147 = vrot.lane.b32.xlu0 %v2141, 72
      %v2148 = vpop.permute.xlu0 %2147
      %2149 = vrot.lane.b32.xlu0 %v2142, 72
      %v2150 = vpop.permute.xlu0 %2149
      %2151 = vrot.lane.b32.xlu0 %v2143, 72
      %v2152 = vpop.permute.xlu0 %2151
      %v2153 = vrot.slane %v2148, 4
      %v2154 = vrot.slane %v2150, 4
      %v2155 = vrot.slane %v2152, 4
      %v2156 = vsel %vm386, %v2153, %v2154
      %v2157 = vsel %vm473, %v2148, %v2156
      %v2158 = vsel %vm386, %v2154, %v2155
      %v2159 = vsel %vm473, %v2150, %v2158
      %2162 = vst [vmem:[#allocation3 + $0x10] sm:$0xff] %v2157
      %2163 = vst [vmem:[#allocation3 + $0x18] sm:$0xff] %v2159
      %v2164 = vld [vmem:[#allocation2] sm:$0xff]
      %v2165 = vld [vmem:[#allocation2 + $0x8] sm:$0xff]
      %v2166 = vld [vmem:[#allocation2 + $0x10] sm:$0xf]
      %v2167 = vsel %vm519, %v2164, 0
      %v2168 = vsel %vm520, %v2165, 0
      %v2169 = vsel %vm521, %v2166, 0
      %2173 = vrot.lane.b32.xlu0 %v2167, 71
      %v2174 = vpop.permute.xlu0 %2173
      %2175 = vrot.lane.b32.xlu0 %v2168, 71
      %v2176 = vpop.permute.xlu0 %2175
      %2177 = vrot.lane.b32.xlu0 %v2169, 71
      %v2178 = vpop.permute.xlu0 %2177
      %v2179 = vrot.slane %v2174, 4
      %v2180 = vrot.slane %v2176, 4
      %v2181 = vrot.slane %v2178, 4
      %v2182 = vsel %vm386, %v2179, %v2180
      %v2183 = vsel %vm538, %v2174, %v2182
      %v2184 = vsel %vm386, %v2180, %v2181
      %v2185 = vsel %vm538, %v2176, %v2184
      %2188 = vst [vmem:[#allocation3 + $0x20] sm:$0xff] %v2183
      %2189 = vst [vmem:[#allocation3 + $0x28] sm:$0xff] %v2185
      %v2190 = vld [vmem:[#allocation2] sm:$0xff]
      %v2191 = vld [vmem:[#allocation2 + $0x8] sm:$0xff]
      %v2192 = vld [vmem:[#allocation2 + $0x10] sm:$0xf]
      %v2193 = vsel %vm584, %v2190, 0
      %v2194 = vsel %vm585, %v2191, 0
      %v2195 = vsel %vm586, %v2192, 0
      %2199 = vrot.lane.b32.xlu0 %v2193, 65
      %v2200 = vpop.permute.xlu0 %2199
      %2201 = vrot.lane.b32.xlu0 %v2194, 65
      %v2202 = vpop.permute.xlu0 %2201
      %2203 = vrot.lane.b32.xlu0 %v2195, 65
      %v2204 = vpop.permute.xlu0 %2203
      %v2205 = vrot.slane %v2200, 4
      %v2206 = vrot.slane %v2202, 4
      %v2207 = vrot.slane %v2204, 4
      %v2208 = vsel %vm386, %v2205, %v2206
      %v2209 = vsel %vm603, %v2200, %v2208
      %v2210 = vsel %vm386, %v2206, %v2207
      %v2211 = vsel %vm603, %v2202, %v2210
      %2214 = vst [vmem:[#allocation3 + $0x30] sm:$0xff] %v2209
      %2215 = vst [vmem:[#allocation3 + $0x38] sm:$0xff] %v2211
      %v2216 = vld [vmem:[#allocation2] sm:$0xff]
      %v2217 = vld [vmem:[#allocation2 + $0x8] sm:$0xff]
      %v2218 = vld [vmem:[#allocation2 + $0x10] sm:$0xf]
      %2222 = vrot.lane.b32.xlu0 %v2216, 64
      %v2223 = vpop.permute.xlu0 %2222
      %2224 = vrot.lane.b32.xlu0 %v2217, 64
      %v2225 = vpop.permute.xlu0 %2224
      %2226 = vrot.lane.b32.xlu0 %v2218, 64
      %v2227 = vpop.permute.xlu0 %2226
      %v2228 = vrot.slane %v2223, 4
      %v2229 = vrot.slane %v2225, 4
      %v2230 = vrot.slane %v2227, 4
      %v2231 = vsel %vm386, %v2228, %v2229
      %v2232 = vsel %vm627, %v2223, %v2231
      %v2233 = vsel %vm386, %v2229, %v2230
      %v2234 = vsel %vm627, %v2225, %v2233
      %2237 = vst [vmem:[#allocation3 + $0x40] sm:$0xff] %v2232
      %2238 = vst [vmem:[#allocation3 + $0x48] sm:$0xff] %v2234
      %v2239 = vld [vmem:[#allocation2] sm:$0xff]
      %v2240 = vld [vmem:[#allocation2 + $0x8] sm:$0xff]
      %v2241 = vld [vmem:[#allocation2 + $0x10] sm:$0xf]
      %v2242 = vsel %vm672, %v2239, 0
      %v2243 = vsel %vm673, %v2240, 0
      %v2244 = vsel %vm674, %v2241, 0
      %2248 = vrot.lane.b32.xlu0 %v2242, 63
      %v2249 = vpop.permute.xlu0 %2248
      %2250 = vrot.lane.b32.xlu0 %v2243, 63
      %v2251 = vpop.permute.xlu0 %2250
      %2252 = vrot.lane.b32.xlu0 %v2244, 63
      %v2253 = vpop.permute.xlu0 %2252
      %v2254 = vrot.slane %v2249, 4
      %v2255 = vrot.slane %v2251, 4
      %v2256 = vrot.slane %v2253, 4
      %v2257 = vsel %vm386, %v2254, %v2255
      %v2258 = vsel %vm580, %v2249, %v2257
      %v2259 = vsel %vm386, %v2255, %v2256
      %v2260 = vsel %vm580, %v2251, %v2259
      %2263 = vst [vmem:[#allocation3 + $0x50] sm:$0xff] %v2258
      %2264 = vst [vmem:[#allocation3 + $0x58] sm:$0xff] %v2260
      %v2265 = vld [vmem:[#allocation2] sm:$0xff]
      %v2266 = vld [vmem:[#allocation2 + $0x8] sm:$0xff]
      %v2267 = vld [vmem:[#allocation2 + $0x10] sm:$0xf]
      %v2268 = vsel %vm735, %v2265, 0
      %v2269 = vsel %vm736, %v2266, 0
      %v2270 = vsel %vm737, %v2267, 0
      %2274 = vrot.lane.b32.xlu0 %v2268, 57
      %v2275 = vpop.permute.xlu0 %2274
      %2276 = vrot.lane.b32.xlu0 %v2269, 57
      %v2277 = vpop.permute.xlu0 %2276
      %2278 = vrot.lane.b32.xlu0 %v2270, 57
      %v2279 = vpop.permute.xlu0 %2278
      %v2280 = vrot.slane %v2275, 4
      %v2281 = vrot.slane %v2277, 4
      %v2282 = vrot.slane %v2279, 4
      %v2283 = vsel %vm386, %v2280, %v2281
      %v2284 = vsel %vm515, %v2275, %v2283
      %v2285 = vsel %vm386, %v2281, %v2282
      %v2286 = vsel %vm515, %v2277, %v2285
      %2289 = vst [vmem:[#allocation3 + $0x60] sm:$0xff] %v2284
      %2290 = vst [vmem:[#allocation3 + $0x68] sm:$0xff] %v2286
      %v2291 = vld [vmem:[#allocation2] sm:$0xff]
      %v2292 = vld [vmem:[#allocation2 + $0x8] sm:$0xff]
      %v2293 = vld [vmem:[#allocation2 + $0x10] sm:$0xf]
      %v2294 = vsel %vm798, %v2291, 0
      %v2295 = vsel %vm799, %v2292, 0
      %v2296 = vsel %vm800, %v2293, 0
      %2300 = vrot.lane.b32.xlu0 %v2294, 56
      %v2301 = vpop.permute.xlu0 %2300
      %2302 = vrot.lane.b32.xlu0 %v2295, 56
      %v2303 = vpop.permute.xlu0 %2302
      %2304 = vrot.lane.b32.xlu0 %v2296, 56
      %v2305 = vpop.permute.xlu0 %2304
      %v2306 = vrot.slane %v2301, 4
      %v2307 = vrot.slane %v2303, 4
      %v2308 = vrot.slane %v2305, 4
      %v2309 = vsel %vm386, %v2306, %v2307
      %v2310 = vsel %vm450, %v2301, %v2309
      %v2311 = vsel %vm386, %v2307, %v2308
      %v2312 = vsel %vm450, %v2303, %v2311
      %2315 = vst [vmem:[#allocation3 + $0x70] sm:$0xff] %v2310
      %2316 = vst [vmem:[#allocation3 + $0x78] sm:$0xff] %v2312
      %v2317 = vld [vmem:[#allocation2] sm:$0xff]
      %v2318 = vld [vmem:[#allocation2 + $0x8] sm:$0xff]
      %v2319 = vld [vmem:[#allocation2 + $0x10] sm:$0xf]
      %v2320 = vsel %vm861, %v2317, 0
      %v2321 = vsel %vm862, %v2318, 0
      %v2322 = vsel %vm863, %v2319, 0
      %2326 = vrot.lane.b32.xlu0 %v2320, 55
      %v2327 = vpop.permute.xlu0 %2326
      %2328 = vrot.lane.b32.xlu0 %v2321, 55
      %v2329 = vpop.permute.xlu0 %2328
      %2330 = vrot.lane.b32.xlu0 %v2322, 55
      %v2331 = vpop.permute.xlu0 %2330
      %v2332 = vrot.slane %v2327, 4
      %v2333 = vrot.slane %v2329, 4
      %v2334 = vrot.slane %v2331, 4
      %v2335 = vsel %vm386, %v2332, %v2333
      %v2336 = vsel %vm384, %v2327, %v2335
      %v2337 = vsel %vm386, %v2333, %v2334
      %v2338 = vsel %vm384, %v2329, %v2337
      %2341 = vst [vmem:[#allocation3 + $0x80] sm:$0xff] %v2336
      %2342 = vst [vmem:[#allocation3 + $0x88] sm:$0xff] %v2338
      %v2343 = vld [vmem:[%s5] sm:$0xf]
      %v2344 = vld [vmem:[#allocation3] sm:$0xff]
      %v2345 = vld [vmem:[#allocation3 + $0x8] sm:$0xff]
      %v2346 = vld [vmem:[#allocation3 + $0x10] sm:$0xff]
      %v2347 = vld [vmem:[#allocation3 + $0x18] sm:$0xff]
      %v2348 = vld [vmem:[#allocation3 + $0x20] sm:$0xff]
      %v2349 = vld [vmem:[#allocation3 + $0x28] sm:$0xff]
      %v2350 = vld [vmem:[#allocation3 + $0x30] sm:$0xff]
      %v2351 = vld [vmem:[#allocation3 + $0x38] sm:$0xff]
      %v2352 = vld [vmem:[#allocation3 + $0x40] sm:$0xff]
      %v2353 = vld [vmem:[#allocation3 + $0x48] sm:$0xff]
      %v2354 = vld [vmem:[#allocation3 + $0x50] sm:$0xff]
      %v2355 = vld [vmem:[#allocation3 + $0x58] sm:$0xff]
      %v2356 = vld [vmem:[#allocation3 + $0x60] sm:$0xff]
      %v2357 = vld [vmem:[#allocation3 + $0x68] sm:$0xff]
      %v2358 = vld [vmem:[#allocation3 + $0x70] sm:$0xff]
      %v2359 = vld [vmem:[#allocation3 + $0x78] sm:$0xff]
      %v2360 = vld [vmem:[#allocation3 + $0x80] sm:$0xff]
      %v2361 = vld [vmem:[#allocation3 + $0x88] sm:$0xff]
      %v2362 = vld [vmem:[#allocation2] sm:$0xff]
      %v2363 = vld [vmem:[#allocation2 + $0x8] sm:$0xff]
      %v2364 = vld [vmem:[#allocation2 + $0x10] sm:$0xf]
      %v2365 = vsel %vm919, %v2362, 0
      %v2366 = vsel %vm920, %v2363, 0
      %v2367 = vsel %vm921, %v2364, 0
      %2371 = vrot.lane.b32.xlu0 %v2365, 9
      %v2372 = vpop.permute.xlu0 %2371
      %2373 = vrot.lane.b32.xlu0 %v2366, 9
      %v2374 = vpop.permute.xlu0 %2373
      %2375 = vrot.lane.b32.xlu0 %v2367, 9
      %v2376 = vpop.permute.xlu0 %2375
      %v2377 = vrot.slane %v2372, 4
      %v2378 = vrot.slane %v2374, 4
      %v2379 = vrot.slane %v2376, 4
      %v2380 = vsel %vm386, %v2377, %v2378
      %v2381 = vsel %vm938, %v2372, %v2380
      %v2382 = vsel %vm386, %v2378, %v2379
      %v2383 = vsel %vm938, %v2374, %v2382
      %2386 = vst [vmem:[#allocation3] sm:$0xff] %v2381
      %2387 = vst [vmem:[#allocation3 + $0x8] sm:$0xff] %v2383
      %v2388 = vld [vmem:[#allocation2] sm:$0xff]
      %v2389 = vld [vmem:[#allocation2 + $0x8] sm:$0xff]
      %v2390 = vld [vmem:[#allocation2 + $0x10] sm:$0xf]
      %v2391 = vsel %vm959, %v2388, 0
      %v2392 = vsel %vm960, %v2389, 0
      %v2393 = vsel %vm961, %v2390, 0
      %2397 = vrot.lane.b32.xlu0 %v2391, 8
      %v2398 = vpop.permute.xlu0 %2397
      %2399 = vrot.lane.b32.xlu0 %v2392, 8
      %v2400 = vpop.permute.xlu0 %2399
      %2401 = vrot.lane.b32.xlu0 %v2393, 8
      %v2402 = vpop.permute.xlu0 %2401
      %v2403 = vrot.slane %v2398, 4
      %v2404 = vrot.slane %v2400, 4
      %v2405 = vrot.slane %v2402, 4
      %v2406 = vsel %vm386, %v2403, %v2404
      %v2407 = vsel %vm978, %v2398, %v2406
      %v2408 = vsel %vm386, %v2404, %v2405
      %v2409 = vsel %vm978, %v2400, %v2408
      %2412 = vst [vmem:[#allocation3 + $0x10] sm:$0xff] %v2407
      %2413 = vst [vmem:[#allocation3 + $0x18] sm:$0xff] %v2409
      %v2414 = vld [vmem:[#allocation2] sm:$0xff]
      %v2415 = vld [vmem:[#allocation2 + $0x8] sm:$0xff]
      %v2416 = vld [vmem:[#allocation2 + $0x10] sm:$0xf]
      %v2417 = vsel %vm999, %v2414, 0
      %v2418 = vsel %vm1000, %v2415, 0
      %v2419 = vsel %vm1001, %v2416, 0
      %2423 = vrot.lane.b32.xlu0 %v2417, 7
      %v2424 = vpop.permute.xlu0 %2423
      %2425 = vrot.lane.b32.xlu0 %v2418, 7
      %v2426 = vpop.permute.xlu0 %2425
      %2427 = vrot.lane.b32.xlu0 %v2419, 7
      %v2428 = vpop.permute.xlu0 %2427
      %v2429 = vrot.slane %v2424, 4
      %v2430 = vrot.slane %v2426, 4
      %v2431 = vrot.slane %v2428, 4
      %v2432 = vsel %vm386, %v2429, %v2430
      %v2433 = vsel %vm1018, %v2424, %v2432
      %v2434 = vsel %vm386, %v2430, %v2431
      %v2435 = vsel %vm1018, %v2426, %v2434
      %2438 = vst [vmem:[#allocation3 + $0x20] sm:$0xff] %v2433
      %2439 = vst [vmem:[#allocation3 + $0x28] sm:$0xff] %v2435
      %v2440 = vld [vmem:[#allocation2] sm:$0xff]
      %v2441 = vld [vmem:[#allocation2 + $0x8] sm:$0xff]
      %v2442 = vld [vmem:[#allocation2 + $0x10] sm:$0xf]
      %v2443 = vsel %vm1039, %v2440, 0
      %v2444 = vsel %vm1040, %v2441, 0
      %v2445 = vsel %vm1041, %v2442, 0
      %2449 = vrot.lane.b32.xlu0 %v2443, 1
      %v2450 = vpop.permute.xlu0 %2449
      %2451 = vrot.lane.b32.xlu0 %v2444, 1
      %v2452 = vpop.permute.xlu0 %2451
      %2453 = vrot.lane.b32.xlu0 %v2445, 1
      %v2454 = vpop.permute.xlu0 %2453
      %v2455 = vrot.slane %v2450, 4
      %v2456 = vrot.slane %v2452, 4
      %v2457 = vrot.slane %v2454, 4
      %v2458 = vsel %vm386, %v2455, %v2456
      %v2459 = vsel %vm1058, %v2450, %v2458
      %v2460 = vsel %vm386, %v2456, %v2457
      %v2461 = vsel %vm1058, %v2452, %v2460
      %2464 = vst [vmem:[#allocation3 + $0x30] sm:$0xff] %v2459
      %2465 = vst [vmem:[#allocation3 + $0x38] sm:$0xff] %v2461
      %v2466 = vld [vmem:[#allocation2 + $0x4] sm:$0xff]
      %v2467 = vld [vmem:[#allocation2 + $0xc] sm:$0xff]
      %2468 = vst [vmem:[#allocation3 + $0x40] sm:$0xff] %v2466
      %2469 = vst [vmem:[#allocation3 + $0x48] sm:$0xff] %v2467
      %v2470 = vld [vmem:[#allocation2 + $0x4] sm:$0xff]
      %v2471 = vld [vmem:[#allocation2 + $0xc] sm:$0xff]
      %v2472 = vld [vmem:[#allocation2 + $0x14] sm:$0xf]
      %v2473 = vsel %vm1082, %v2470, 0
      %v2474 = vsel %vm1083, %v2471, 0
      %v2475 = vsel %vm1084, %v2472, 0
      %2479 = vrot.lane.b32.xlu0 %v2473, 127
      %v2480 = vpop.permute.xlu0 %2479
      %2481 = vrot.lane.b32.xlu0 %v2474, 127
      %v2482 = vpop.permute.xlu0 %2481
      %2483 = vrot.lane.b32.xlu0 %v2475, 127
      %v2484 = vpop.permute.xlu0 %2483
      %v2485 = vrot.slane %v2480, 4
      %v2486 = vrot.slane %v2482, 4
      %v2487 = vrot.slane %v2484, 4
      %v2488 = vsel %vm386, %v2485, %v2486
      %v2489 = vsel %vm1035, %v2480, %v2488
      %v2490 = vsel %vm386, %v2486, %v2487
      %v2491 = vsel %vm1035, %v2482, %v2490
      %2494 = vst [vmem:[#allocation3 + $0x50] sm:$0xff] %v2489
      %2495 = vst [vmem:[#allocation3 + $0x58] sm:$0xff] %v2491
      %v2496 = vld [vmem:[#allocation2 + $0x4] sm:$0xff]
      %v2497 = vld [vmem:[#allocation2 + $0xc] sm:$0xff]
      %v2498 = vld [vmem:[#allocation2 + $0x14] sm:$0xf]
      %v2499 = vsel %vm1120, %v2496, 0
      %v2500 = vsel %vm1121, %v2497, 0
      %v2501 = vsel %vm1122, %v2498, 0
      %2505 = vrot.lane.b32.xlu0 %v2499, 121
      %v2506 = vpop.permute.xlu0 %2505
      %2507 = vrot.lane.b32.xlu0 %v2500, 121
      %v2508 = vpop.permute.xlu0 %2507
      %2509 = vrot.lane.b32.xlu0 %v2501, 121
      %v2510 = vpop.permute.xlu0 %2509
      %v2511 = vrot.slane %v2506, 4
      %v2512 = vrot.slane %v2508, 4
      %v2513 = vrot.slane %v2510, 4
      %v2514 = vsel %vm386, %v2511, %v2512
      %v2515 = vsel %vm995, %v2506, %v2514
      %v2516 = vsel %vm386, %v2512, %v2513
      %v2517 = vsel %vm995, %v2508, %v2516
      %2520 = vst [vmem:[#allocation3 + $0x60] sm:$0xff] %v2515
      %2521 = vst [vmem:[#allocation3 + $0x68] sm:$0xff] %v2517
      %v2522 = vld [vmem:[#allocation2 + $0x4] sm:$0xff]
      %v2523 = vld [vmem:[#allocation2 + $0xc] sm:$0xff]
      %v2524 = vld [vmem:[#allocation2 + $0x14] sm:$0xf]
      %v2525 = vsel %vm1158, %v2522, 0
      %v2526 = vsel %vm1159, %v2523, 0
      %v2527 = vsel %vm1160, %v2524, 0
      %2531 = vrot.lane.b32.xlu0 %v2525, 120
      %v2532 = vpop.permute.xlu0 %2531
      %2533 = vrot.lane.b32.xlu0 %v2526, 120
      %v2534 = vpop.permute.xlu0 %2533
      %2535 = vrot.lane.b32.xlu0 %v2527, 120
      %v2536 = vpop.permute.xlu0 %2535
      %v2537 = vrot.slane %v2532, 4
      %v2538 = vrot.slane %v2534, 4
      %v2539 = vrot.slane %v2536, 4
      %v2540 = vsel %vm386, %v2537, %v2538
      %v2541 = vsel %vm955, %v2532, %v2540
      %v2542 = vsel %vm386, %v2538, %v2539
      %v2543 = vsel %vm955, %v2534, %v2542
      %2546 = vst [vmem:[#allocation3 + $0x70] sm:$0xff] %v2541
      %2547 = vst [vmem:[#allocation3 + $0x78] sm:$0xff] %v2543
      %v2548 = vld [vmem:[#allocation2 + $0x4] sm:$0xff]
      %v2549 = vld [vmem:[#allocation2 + $0xc] sm:$0xff]
      %v2550 = vld [vmem:[#allocation2 + $0x14] sm:$0xf]
      %v2551 = vsel %vm1196, %v2548, 0
      %v2552 = vsel %vm1197, %v2549, 0
      %v2553 = vsel %vm1198, %v2550, 0
      %2557 = vrot.lane.b32.xlu0 %v2551, 119
      %v2558 = vpop.permute.xlu0 %2557
      %2559 = vrot.lane.b32.xlu0 %v2552, 119
      %v2560 = vpop.permute.xlu0 %2559
      %2561 = vrot.lane.b32.xlu0 %v2553, 119
      %v2562 = vpop.permute.xlu0 %2561
      %v2563 = vrot.slane %v2558, 4
      %v2564 = vrot.slane %v2560, 4
      %v2565 = vrot.slane %v2562, 4
      %v2566 = vsel %vm386, %v2563, %v2564
      %v2567 = vsel %vm915, %v2558, %v2566
      %v2568 = vsel %vm386, %v2564, %v2565
      %v2569 = vsel %vm915, %v2560, %v2568
      %2572 = vst [vmem:[#allocation3 + $0x80] sm:$0xff] %v2567
      %2573 = vst [vmem:[#allocation3 + $0x88] sm:$0xff] %v2569
      %s2574 = scalar_lea.vmem %s5, 4
      %v2575 = vld [vmem:[%s2574] sm:$0xf]
      %v2576 = vld [vmem:[#allocation3] sm:$0xff]
      %v2577 = vld [vmem:[#allocation3 + $0x8] sm:$0xff]
      %v2578 = vld [vmem:[#allocation3 + $0x10] sm:$0xff]
      %v2579 = vld [vmem:[#allocation3 + $0x18] sm:$0xff]
      %v2580 = vld [vmem:[#allocation3 + $0x20] sm:$0xff]
      %v2581 = vld [vmem:[#allocation3 + $0x28] sm:$0xff]
      %v2582 = vld [vmem:[#allocation3 + $0x30] sm:$0xff]
      %v2583 = vld [vmem:[#allocation3 + $0x38] sm:$0xff]
      %v2584 = vld [vmem:[#allocation3 + $0x40] sm:$0xff]
      %v2585 = vld [vmem:[#allocation3 + $0x48] sm:$0xff]
      %v2586 = vld [vmem:[#allocation3 + $0x50] sm:$0xff]
      %v2587 = vld [vmem:[#allocation3 + $0x58] sm:$0xff]
      %v2588 = vld [vmem:[#allocation3 + $0x60] sm:$0xff]
      %v2589 = vld [vmem:[#allocation3 + $0x68] sm:$0xff]
      %v2590 = vld [vmem:[#allocation3 + $0x70] sm:$0xff]
      %v2591 = vld [vmem:[#allocation3 + $0x78] sm:$0xff]
      %v2592 = vld [vmem:[#allocation3 + $0x80] sm:$0xff]
      %v2593 = vld [vmem:[#allocation3 + $0x88] sm:$0xff]
      %v2612 = vunpack.c.l.b16 %v2576
      %v2613 = vunpack.c.h.b16 %v2576
      %v2614 = vunpack.c.l.b16 %v2577
      %v2615 = vunpack.c.h.b16 %v2577
      %v2616 = vunpack.c.l.b16 %v2578
      %v2617 = vunpack.c.h.b16 %v2578
      %v2618 = vunpack.c.l.b16 %v2579
      %v2619 = vunpack.c.h.b16 %v2579
      %v2620 = vunpack.c.l.b16 %v2580
      %v2621 = vunpack.c.h.b16 %v2580
      %v2622 = vunpack.c.l.b16 %v2581
      %v2623 = vunpack.c.h.b16 %v2581
      %v2624 = vunpack.c.l.b16 %v2582
      %v2625 = vunpack.c.h.b16 %v2582
      %v2626 = vunpack.c.l.b16 %v2583
      %v2627 = vunpack.c.h.b16 %v2583
      %v2628 = vunpack.c.l.b16 %v2584
      %v2629 = vunpack.c.h.b16 %v2584
      %v2630 = vunpack.c.l.b16 %v2585
      %v2631 = vunpack.c.h.b16 %v2585
      %v2632 = vunpack.c.l.b16 %v2586
      %v2633 = vunpack.c.h.b16 %v2586
      %v2634 = vunpack.c.l.b16 %v2587
      %v2635 = vunpack.c.h.b16 %v2587
      %v2636 = vunpack.c.l.b16 %v2588
      %v2637 = vunpack.c.h.b16 %v2588
      %v2638 = vunpack.c.l.b16 %v2589
      %v2639 = vunpack.c.h.b16 %v2589
      %v2640 = vunpack.c.l.b16 %v2590
      %v2641 = vunpack.c.h.b16 %v2590
      %v2642 = vunpack.c.l.b16 %v2591
      %v2643 = vunpack.c.h.b16 %v2591
      %v2644 = vunpack.c.l.b16 %v2592
      %v2645 = vunpack.c.h.b16 %v2592
      %v2646 = vunpack.c.l.b16 %v2593
      %v2647 = vunpack.c.h.b16 %v2593
      %v2648 = vpack.c.b16 %v2616, %v2612
      %v2649 = vpack.c.b16 %v2617, %v2613
      %v2650 = vpack.c.b16 %v2618, %v2614
      %v2651 = vpack.c.b16 %v2619, %v2615
      %v2652 = vpack.c.b16 %v2624, %v2620
      %v2653 = vpack.c.b16 %v2625, %v2621
      %v2654 = vpack.c.b16 %v2626, %v2622
      %v2655 = vpack.c.b16 %v2627, %v2623
      %v2656 = vpack.c.b16 %v2632, %v2628
      %v2657 = vpack.c.b16 %v2633, %v2629
      %v2658 = vpack.c.b16 %v2634, %v2630
      %v2659 = vpack.c.b16 %v2635, %v2631
      %v2660 = vpack.c.b16 %v2640, %v2636
      %v2661 = vpack.c.b16 %v2641, %v2637
      %v2662 = vpack.c.b16 %v2642, %v2638
      %v2663 = vpack.c.b16 %v2643, %v2639
      %v2664 = vpack.c.b16 %v2644, %v2644
      %v2665 = vpack.c.b16 %v2645, %v2645
      %v2666 = vpack.c.b16 %v2646, %v2646
      %v2667 = vpack.c.b16 %v2647, %v2647
      %v2685 = vsel %vm1332, %v2575, 0
      %v2688 = vsel %vm1336, %v2664, 0
      %v2691 = vsel %vm1336, %v2665, 0
      %v2694 = vsel %vm1336, %v2666, 0
      %v2697 = vsel %vm1336, %v2667, 0
      %2699 = vmatprep.subr.bf16.mxu0 %v2649
      %2700 = vmatpush1.bf16.msra.mxu0 %v2648
      %2701 = vmatprep.subr.bf16.mxu0 %v2653
      %2702 = vmatpush1.bf16.msra.mxu0 %v2652
      %2703 = vmatprep.subr.bf16.mxu0 %v2657
      %2704 = vmatpush1.bf16.msra.mxu0 %v2656
      %2705 = vmatprep.subr.bf16.mxu0 %v2661
      %2706 = vmatpush1.bf16.msra.mxu0 %v2660
      %2707 = vmatprep.subr.bf16.mxu0 %v2691
      %2708 = vmatpush1.bf16.msra.mxu0 %v2688
      %2709 = vmatprep.subr.bf16.mxu0 0
      %2710 = vmatpush1.bf16.msra.mxu0 0
      %2711 = vmatprep.subr.bf16.mxu0 0
      %2712 = vmatpush1.bf16.msra.mxu0 0
      %2713 = vmatprep.subr.bf16.mxu0 0
      %2714 = vmatpush1.bf16.msra.mxu0 0
      %2715 = vmatprep.subr.bf16.mxu0 0
      %2716 = vmatpush1.bf16.msra.mxu0 0
      %2717 = vmatprep.subr.bf16.mxu0 0
      %2718 = vmatpush1.bf16.msra.mxu0 0
      %2719 = vmatprep.subr.bf16.mxu0 0
      %2720 = vmatpush1.bf16.msra.mxu0 0
      %2721 = vmatprep.subr.bf16.mxu0 0
      %2722 = vmatpush1.bf16.msra.mxu0 0
      %2723 = vmatprep.subr.bf16.mxu0 0
      %2724 = vmatpush1.bf16.msra.mxu0 0
      %2725 = vmatprep.subr.bf16.mxu0 0
      %2726 = vmatpush1.bf16.msra.mxu0 0
      %2727 = vmatprep.subr.bf16.mxu0 0
      %2728 = vmatpush1.bf16.msra.mxu0 0
      %2729 = vmatprep.subr.bf16.mxu0 0
      %2730 = vmatpush1.bf16.msra.mxu0 0
      %2731 = vmatprep.mubr.bf16.mxu0 0
      %2732 = vmatmul.mubr.bf16.gmra.mrb[0].mxu0 %v2685
      %v2733 = vpop.f32.mrb[0].mxu0
      %v2734 = vadd.f32 0.0, %v2733
      %v2735 = vpop.f32.mrb[0].mxu0
      %v2736 = vadd.f32 0.0, %v2735
      %v2737 = vpop.f32.mrb[0].mxu0
      %v2738 = vpop.f32.mrb[0].mxu0
      %2739 = vdwg.mxu0
      %2740 = vmatprep.subr.bf16.mxu0 %v2651
      %2741 = vmatpush1.bf16.msra.mxu0 %v2650
      %2742 = vmatprep.subr.bf16.mxu0 %v2655
      %2743 = vmatpush1.bf16.msra.mxu0 %v2654
      %2744 = vmatprep.subr.bf16.mxu0 %v2659
      %2745 = vmatpush1.bf16.msra.mxu0 %v2658
      %2746 = vmatprep.subr.bf16.mxu0 %v2663
      %2747 = vmatpush1.bf16.msra.mxu0 %v2662
      %2748 = vmatprep.subr.bf16.mxu0 %v2697
      %2749 = vmatpush1.bf16.msra.mxu0 %v2694
      %2750 = vmatprep.subr.bf16.mxu0 0
      %2751 = vmatpush1.bf16.msra.mxu0 0
      %2752 = vmatprep.subr.bf16.mxu0 0
      %2753 = vmatpush1.bf16.msra.mxu0 0
      %2754 = vmatprep.subr.bf16.mxu0 0
      %2755 = vmatpush1.bf16.msra.mxu0 0
      %2756 = vmatprep.subr.bf16.mxu0 0
      %2757 = vmatpush1.bf16.msra.mxu0 0
      %2758 = vmatprep.subr.bf16.mxu0 0
      %2759 = vmatpush1.bf16.msra.mxu0 0
      %2760 = vmatprep.subr.bf16.mxu0 0
      %2761 = vmatpush1.bf16.msra.mxu0 0
      %2762 = vmatprep.subr.bf16.mxu0 0
      %2763 = vmatpush1.bf16.msra.mxu0 0
      %2764 = vmatprep.subr.bf16.mxu0 0
      %2765 = vmatpush1.bf16.msra.mxu0 0
      %2766 = vmatprep.subr.bf16.mxu0 0
      %2767 = vmatpush1.bf16.msra.mxu0 0
      %2768 = vmatprep.subr.bf16.mxu0 0
      %2769 = vmatpush1.bf16.msra.mxu0 0
      %2770 = vmatprep.subr.bf16.mxu0 0
      %2771 = vmatpush1.bf16.msra.mxu0 0
      %2772 = vmatprep.mubr.bf16.mxu0 0
      %2773 = vmatmul.mubr.bf16.gmra.mrb[0].mxu0 %v2685
      %v2774 = vpop.f32.mrb[0].mxu0
      %v2775 = vadd.f32 0.0, %v2774
      %v2776 = vpop.f32.mrb[0].mxu0
      %v2777 = vadd.f32 0.0, %v2776
      %v2778 = vpop.f32.mrb[0].mxu0
      %v2779 = vpop.f32.mrb[0].mxu0
      %2780 = vdwg.mxu0
      %v2799 = vunpack.c.l.b16 %v2344
      %v2800 = vunpack.c.h.b16 %v2344
      %v2801 = vunpack.c.l.b16 %v2345
      %v2802 = vunpack.c.h.b16 %v2345
      %v2803 = vunpack.c.l.b16 %v2346
      %v2804 = vunpack.c.h.b16 %v2346
      %v2805 = vunpack.c.l.b16 %v2347
      %v2806 = vunpack.c.h.b16 %v2347
      %v2807 = vunpack.c.l.b16 %v2348
      %v2808 = vunpack.c.h.b16 %v2348
      %v2809 = vunpack.c.l.b16 %v2349
      %v2810 = vunpack.c.h.b16 %v2349
      %v2811 = vunpack.c.l.b16 %v2350
      %v2812 = vunpack.c.h.b16 %v2350
      %v2813 = vunpack.c.l.b16 %v2351
      %v2814 = vunpack.c.h.b16 %v2351
      %v2815 = vunpack.c.l.b16 %v2352
      %v2816 = vunpack.c.h.b16 %v2352
      %v2817 = vunpack.c.l.b16 %v2353
      %v2818 = vunpack.c.h.b16 %v2353
      %v2819 = vunpack.c.l.b16 %v2354
      %v2820 = vunpack.c.h.b16 %v2354
      %v2821 = vunpack.c.l.b16 %v2355
      %v2822 = vunpack.c.h.b16 %v2355
      %v2823 = vunpack.c.l.b16 %v2356
      %v2824 = vunpack.c.h.b16 %v2356
      %v2825 = vunpack.c.l.b16 %v2357
      %v2826 = vunpack.c.h.b16 %v2357
      %v2827 = vunpack.c.l.b16 %v2358
      %v2828 = vunpack.c.h.b16 %v2358
      %v2829 = vunpack.c.l.b16 %v2359
      %v2830 = vunpack.c.h.b16 %v2359
      %v2831 = vunpack.c.l.b16 %v2360
      %v2832 = vunpack.c.h.b16 %v2360
      %v2833 = vunpack.c.l.b16 %v2361
      %v2834 = vunpack.c.h.b16 %v2361
      %v2835 = vpack.c.b16 %v2803, %v2799
      %v2836 = vpack.c.b16 %v2804, %v2800
      %v2837 = vpack.c.b16 %v2805, %v2801
      %v2838 = vpack.c.b16 %v2806, %v2802
      %v2839 = vpack.c.b16 %v2811, %v2807
      %v2840 = vpack.c.b16 %v2812, %v2808
      %v2841 = vpack.c.b16 %v2813, %v2809
      %v2842 = vpack.c.b16 %v2814, %v2810
      %v2843 = vpack.c.b16 %v2819, %v2815
      %v2844 = vpack.c.b16 %v2820, %v2816
      %v2845 = vpack.c.b16 %v2821, %v2817
      %v2846 = vpack.c.b16 %v2822, %v2818
      %v2847 = vpack.c.b16 %v2827, %v2823
      %v2848 = vpack.c.b16 %v2828, %v2824
      %v2849 = vpack.c.b16 %v2829, %v2825
      %v2850 = vpack.c.b16 %v2830, %v2826
      %v2851 = vpack.c.b16 %v2831, %v2831
      %v2852 = vpack.c.b16 %v2832, %v2832
      %v2853 = vpack.c.b16 %v2833, %v2833
      %v2854 = vpack.c.b16 %v2834, %v2834
      %v2872 = vsel %vm1332, %v2343, 0
      %v2875 = vsel %vm1336, %v2851, 0
      %v2878 = vsel %vm1336, %v2852, 0
      %v2881 = vsel %vm1336, %v2853, 0
      %v2884 = vsel %vm1336, %v2854, 0
      %2886 = vmatprep.subr.bf16.mxu0 %v2836
      %2887 = vmatpush1.bf16.msra.mxu0 %v2835
      %2888 = vmatprep.subr.bf16.mxu0 %v2840
      %2889 = vmatpush1.bf16.msra.mxu0 %v2839
      %2890 = vmatprep.subr.bf16.mxu0 %v2844
      %2891 = vmatpush1.bf16.msra.mxu0 %v2843
      %2892 = vmatprep.subr.bf16.mxu0 %v2848
      %2893 = vmatpush1.bf16.msra.mxu0 %v2847
      %2894 = vmatprep.subr.bf16.mxu0 %v2878
      %2895 = vmatpush1.bf16.msra.mxu0 %v2875
      %2896 = vmatprep.subr.bf16.mxu0 0
      %2897 = vmatpush1.bf16.msra.mxu0 0
      %2898 = vmatprep.subr.bf16.mxu0 0
      %2899 = vmatpush1.bf16.msra.mxu0 0
      %2900 = vmatprep.subr.bf16.mxu0 0
      %2901 = vmatpush1.bf16.msra.mxu0 0
      %2902 = vmatprep.subr.bf16.mxu0 0
      %2903 = vmatpush1.bf16.msra.mxu0 0
      %2904 = vmatprep.subr.bf16.mxu0 0
      %2905 = vmatpush1.bf16.msra.mxu0 0
      %2906 = vmatprep.subr.bf16.mxu0 0
      %2907 = vmatpush1.bf16.msra.mxu0 0
      %2908 = vmatprep.subr.bf16.mxu0 0
      %2909 = vmatpush1.bf16.msra.mxu0 0
      %2910 = vmatprep.subr.bf16.mxu0 0
      %2911 = vmatpush1.bf16.msra.mxu0 0
      %2912 = vmatprep.subr.bf16.mxu0 0
      %2913 = vmatpush1.bf16.msra.mxu0 0
      %2914 = vmatprep.subr.bf16.mxu0 0
      %2915 = vmatpush1.bf16.msra.mxu0 0
      %2916 = vmatprep.subr.bf16.mxu0 0
      %2917 = vmatpush1.bf16.msra.mxu0 0
      %2918 = vmatprep.mubr.bf16.mxu0 0
      %2919 = vmatmul.mubr.bf16.gmra.mrb[0].mxu0 %v2872
      %v2920 = vpop.f32.mrb[0].mxu0
      %v2921 = vadd.f32 %v2734, %v2920
      %v2922 = vpop.f32.mrb[0].mxu0
      %v2923 = vadd.f32 %v2736, %v2922
      %v2924 = vpop.f32.mrb[0].mxu0
      %v2925 = vpop.f32.mrb[0].mxu0
      %2926 = vdwg.mxu0
      %2927 = vmatprep.subr.bf16.mxu0 %v2838
      %2928 = vmatpush1.bf16.msra.mxu0 %v2837
      %2929 = vmatprep.subr.bf16.mxu0 %v2842
      %2930 = vmatpush1.bf16.msra.mxu0 %v2841
      %2931 = vmatprep.subr.bf16.mxu0 %v2846
      %2932 = vmatpush1.bf16.msra.mxu0 %v2845
      %2933 = vmatprep.subr.bf16.mxu0 %v2850
      %2934 = vmatpush1.bf16.msra.mxu0 %v2849
      %2935 = vmatprep.subr.bf16.mxu0 %v2884
      %2936 = vmatpush1.bf16.msra.mxu0 %v2881
      %2937 = vmatprep.subr.bf16.mxu0 0
      %2938 = vmatpush1.bf16.msra.mxu0 0
      %2939 = vmatprep.subr.bf16.mxu0 0
      %2940 = vmatpush1.bf16.msra.mxu0 0
      %2941 = vmatprep.subr.bf16.mxu0 0
      %2942 = vmatpush1.bf16.msra.mxu0 0
      %2943 = vmatprep.subr.bf16.mxu0 0
      %2944 = vmatpush1.bf16.msra.mxu0 0
      %2945 = vmatprep.subr.bf16.mxu0 0
      %2946 = vmatpush1.bf16.msra.mxu0 0
      %2947 = vmatprep.subr.bf16.mxu0 0
      %2948 = vmatpush1.bf16.msra.mxu0 0
      %2949 = vmatprep.subr.bf16.mxu0 0
      %2950 = vmatpush1.bf16.msra.mxu0 0
      %2951 = vmatprep.subr.bf16.mxu0 0
      %2952 = vmatpush1.bf16.msra.mxu0 0
      %2953 = vmatprep.subr.bf16.mxu0 0
      %2954 = vmatpush1.bf16.msra.mxu0 0
      %2955 = vmatprep.subr.bf16.mxu0 0
      %2956 = vmatpush1.bf16.msra.mxu0 0
      %2957 = vmatprep.subr.bf16.mxu0 0
      %2958 = vmatpush1.bf16.msra.mxu0 0
      %2959 = vmatprep.mubr.bf16.mxu0 0
      %2960 = vmatmul.mubr.bf16.gmra.mrb[0].mxu0 %v2872
      %v2961 = vpop.f32.mrb[0].mxu0
      %v2962 = vadd.f32 %v2775, %v2961
      %v2963 = vpop.f32.mrb[0].mxu0
      %v2964 = vadd.f32 %v2777, %v2963
      %v2965 = vpop.f32.mrb[0].mxu0
      %v2966 = vpop.f32.mrb[0].mxu0
      %2967 = vdwg.mxu0
      %v2968 = vld [vmem:[#allocation2 + $0x4] sm:$0xff]
      %v2969 = vld [vmem:[#allocation2 + $0xc] sm:$0xff]
      %v2970 = vld [vmem:[#allocation2 + $0x14] sm:$0xf]
      %v2971 = vsel %vm389, %v2968, 0
      %v2972 = vsel %vm390, %v2969, 0
      %v2973 = vsel %vm391, %v2970, 0
      %2977 = vrot.lane.b32.xlu0 %v2971, 73
      %v2978 = vpop.permute.xlu0 %2977
      %2979 = vrot.lane.b32.xlu0 %v2972, 73
      %v2980 = vpop.permute.xlu0 %2979
      %2981 = vrot.lane.b32.xlu0 %v2973, 73
      %v2982 = vpop.permute.xlu0 %2981
      %v2983 = vrot.slane %v2978, 4
      %v2984 = vrot.slane %v2980, 4
      %v2985 = vrot.slane %v2982, 4
      %v2986 = vsel %vm386, %v2983, %v2984
      %v2987 = vsel %vm408, %v2978, %v2986
      %v2988 = vsel %vm386, %v2984, %v2985
      %v2989 = vsel %vm408, %v2980, %v2988
      %2992 = vst [vmem:[#allocation3] sm:$0xff] %v2987
      %2993 = vst [vmem:[#allocation3 + $0x8] sm:$0xff] %v2989
      %v2994 = vld [vmem:[#allocation2 + $0x4] sm:$0xff]
      %v2995 = vld [vmem:[#allocation2 + $0xc] sm:$0xff]
      %v2996 = vld [vmem:[#allocation2 + $0x14] sm:$0xf]
      %v2997 = vsel %vm454, %v2994, 0
      %v2998 = vsel %vm455, %v2995, 0
      %v2999 = vsel %vm456, %v2996, 0
      %3003 = vrot.lane.b32.xlu0 %v2997, 72
      %v3004 = vpop.permute.xlu0 %3003
      %3005 = vrot.lane.b32.xlu0 %v2998, 72
      %v3006 = vpop.permute.xlu0 %3005
      %3007 = vrot.lane.b32.xlu0 %v2999, 72
      %v3008 = vpop.permute.xlu0 %3007
      %v3009 = vrot.slane %v3004, 4
      %v3010 = vrot.slane %v3006, 4
      %v3011 = vrot.slane %v3008, 4
      %v3012 = vsel %vm386, %v3009, %v3010
      %v3013 = vsel %vm473, %v3004, %v3012
      %v3014 = vsel %vm386, %v3010, %v3011
      %v3015 = vsel %vm473, %v3006, %v3014
      %3018 = vst [vmem:[#allocation3 + $0x10] sm:$0xff] %v3013
      %3019 = vst [vmem:[#allocation3 + $0x18] sm:$0xff] %v3015
      %v3020 = vld [vmem:[#allocation2 + $0x4] sm:$0xff]
      %v3021 = vld [vmem:[#allocation2 + $0xc] sm:$0xff]
      %v3022 = vld [vmem:[#allocation2 + $0x14] sm:$0xf]
      %v3023 = vsel %vm519, %v3020, 0
      %v3024 = vsel %vm520, %v3021, 0
      %v3025 = vsel %vm521, %v3022, 0
      %3029 = vrot.lane.b32.xlu0 %v3023, 71
      %v3030 = vpop.permute.xlu0 %3029
      %3031 = vrot.lane.b32.xlu0 %v3024, 71
      %v3032 = vpop.permute.xlu0 %3031
      %3033 = vrot.lane.b32.xlu0 %v3025, 71
      %v3034 = vpop.permute.xlu0 %3033
      %v3035 = vrot.slane %v3030, 4
      %v3036 = vrot.slane %v3032, 4
      %v3037 = vrot.slane %v3034, 4
      %v3038 = vsel %vm386, %v3035, %v3036
      %v3039 = vsel %vm538, %v3030, %v3038
      %v3040 = vsel %vm386, %v3036, %v3037
      %v3041 = vsel %vm538, %v3032, %v3040
      %3044 = vst [vmem:[#allocation3 + $0x20] sm:$0xff] %v3039
      %3045 = vst [vmem:[#allocation3 + $0x28] sm:$0xff] %v3041
      %v3046 = vld [vmem:[#allocation2 + $0x4] sm:$0xff]
      %v3047 = vld [vmem:[#allocation2 + $0xc] sm:$0xff]
      %v3048 = vld [vmem:[#allocation2 + $0x14] sm:$0xf]
      %v3049 = vsel %vm584, %v3046, 0
      %v3050 = vsel %vm585, %v3047, 0
      %v3051 = vsel %vm586, %v3048, 0
      %3055 = vrot.lane.b32.xlu0 %v3049, 65
      %v3056 = vpop.permute.xlu0 %3055
      %3057 = vrot.lane.b32.xlu0 %v3050, 65
      %v3058 = vpop.permute.xlu0 %3057
      %3059 = vrot.lane.b32.xlu0 %v3051, 65
      %v3060 = vpop.permute.xlu0 %3059
      %v3061 = vrot.slane %v3056, 4
      %v3062 = vrot.slane %v3058, 4
      %v3063 = vrot.slane %v3060, 4
      %v3064 = vsel %vm386, %v3061, %v3062
      %v3065 = vsel %vm603, %v3056, %v3064
      %v3066 = vsel %vm386, %v3062, %v3063
      %v3067 = vsel %vm603, %v3058, %v3066
      %3070 = vst [vmem:[#allocation3 + $0x30] sm:$0xff] %v3065
      %3071 = vst [vmem:[#allocation3 + $0x38] sm:$0xff] %v3067
      %v3072 = vld [vmem:[#allocation2 + $0x4] sm:$0xff]
      %v3073 = vld [vmem:[#allocation2 + $0xc] sm:$0xff]
      %v3074 = vld [vmem:[#allocation2 + $0x14] sm:$0xf]
      %3078 = vrot.lane.b32.xlu0 %v3072, 64
      %v3079 = vpop.permute.xlu0 %3078
      %3080 = vrot.lane.b32.xlu0 %v3073, 64
      %v3081 = vpop.permute.xlu0 %3080
      %3082 = vrot.lane.b32.xlu0 %v3074, 64
      %v3083 = vpop.permute.xlu0 %3082
      %v3084 = vrot.slane %v3079, 4
      %v3085 = vrot.slane %v3081, 4
      %v3086 = vrot.slane %v3083, 4
      %v3087 = vsel %vm386, %v3084, %v3085
      %v3088 = vsel %vm627, %v3079, %v3087
      %v3089 = vsel %vm386, %v3085, %v3086
      %v3090 = vsel %vm627, %v3081, %v3089
      %3093 = vst [vmem:[#allocation3 + $0x40] sm:$0xff] %v3088
      %3094 = vst [vmem:[#allocation3 + $0x48] sm:$0xff] %v3090
      %v3095 = vld [vmem:[#allocation2 + $0x4] sm:$0xff]
      %v3096 = vld [vmem:[#allocation2 + $0xc] sm:$0xff]
      %v3097 = vld [vmem:[#allocation2 + $0x14] sm:$0xf]
      %v3098 = vsel %vm672, %v3095, 0
      %v3099 = vsel %vm673, %v3096, 0
      %v3100 = vsel %vm674, %v3097, 0
      %3104 = vrot.lane.b32.xlu0 %v3098, 63
      %v3105 = vpop.permute.xlu0 %3104
      %3106 = vrot.lane.b32.xlu0 %v3099, 63
      %v3107 = vpop.permute.xlu0 %3106
      %3108 = vrot.lane.b32.xlu0 %v3100, 63
      %v3109 = vpop.permute.xlu0 %3108
      %v3110 = vrot.slane %v3105, 4
      %v3111 = vrot.slane %v3107, 4
      %v3112 = vrot.slane %v3109, 4
      %v3113 = vsel %vm386, %v3110, %v3111
      %v3114 = vsel %vm580, %v3105, %v3113
      %v3115 = vsel %vm386, %v3111, %v3112
      %v3116 = vsel %vm580, %v3107, %v3115
      %3119 = vst [vmem:[#allocation3 + $0x50] sm:$0xff] %v3114
      %3120 = vst [vmem:[#allocation3 + $0x58] sm:$0xff] %v3116
      %v3121 = vld [vmem:[#allocation2 + $0x4] sm:$0xff]
      %v3122 = vld [vmem:[#allocation2 + $0xc] sm:$0xff]
      %v3123 = vld [vmem:[#allocation2 + $0x14] sm:$0xf]
      %v3124 = vsel %vm735, %v3121, 0
      %v3125 = vsel %vm736, %v3122, 0
      %v3126 = vsel %vm737, %v3123, 0
      %3130 = vrot.lane.b32.xlu0 %v3124, 57
      %v3131 = vpop.permute.xlu0 %3130
      %3132 = vrot.lane.b32.xlu0 %v3125, 57
      %v3133 = vpop.permute.xlu0 %3132
      %3134 = vrot.lane.b32.xlu0 %v3126, 57
      %v3135 = vpop.permute.xlu0 %3134
      %v3136 = vrot.slane %v3131, 4
      %v3137 = vrot.slane %v3133, 4
      %v3138 = vrot.slane %v3135, 4
      %v3139 = vsel %vm386, %v3136, %v3137
      %v3140 = vsel %vm515, %v3131, %v3139
      %v3141 = vsel %vm386, %v3137, %v3138
      %v3142 = vsel %vm515, %v3133, %v3141
      %3145 = vst [vmem:[#allocation3 + $0x60] sm:$0xff] %v3140
      %3146 = vst [vmem:[#allocation3 + $0x68] sm:$0xff] %v3142
      %v3147 = vld [vmem:[#allocation2 + $0x4] sm:$0xff]
      %v3148 = vld [vmem:[#allocation2 + $0xc] sm:$0xff]
      %v3149 = vld [vmem:[#allocation2 + $0x14] sm:$0xf]
      %v3150 = vsel %vm798, %v3147, 0
      %v3151 = vsel %vm799, %v3148, 0
      %v3152 = vsel %vm800, %v3149, 0
      %3156 = vrot.lane.b32.xlu0 %v3150, 56
      %v3157 = vpop.permute.xlu0 %3156
      %3158 = vrot.lane.b32.xlu0 %v3151, 56
      %v3159 = vpop.permute.xlu0 %3158
      %3160 = vrot.lane.b32.xlu0 %v3152, 56
      %v3161 = vpop.permute.xlu0 %3160
      %v3162 = vrot.slane %v3157, 4
      %v3163 = vrot.slane %v3159, 4
      %v3164 = vrot.slane %v3161, 4
      %v3165 = vsel %vm386, %v3162, %v3163
      %v3166 = vsel %vm450, %v3157, %v3165
      %v3167 = vsel %vm386, %v3163, %v3164
      %v3168 = vsel %vm450, %v3159, %v3167
      %3171 = vst [vmem:[#allocation3 + $0x70] sm:$0xff] %v3166
      %3172 = vst [vmem:[#allocation3 + $0x78] sm:$0xff] %v3168
      %v3173 = vld [vmem:[#allocation2 + $0x4] sm:$0xff]
      %v3174 = vld [vmem:[#allocation2 + $0xc] sm:$0xff]
      %v3175 = vld [vmem:[#allocation2 + $0x14] sm:$0xf]
      %v3176 = vsel %vm861, %v3173, 0
      %v3177 = vsel %vm862, %v3174, 0
      %v3178 = vsel %vm863, %v3175, 0
      %3182 = vrot.lane.b32.xlu0 %v3176, 55
      %v3183 = vpop.permute.xlu0 %3182
      %3184 = vrot.lane.b32.xlu0 %v3177, 55
      %v3185 = vpop.permute.xlu0 %3184
      %3186 = vrot.lane.b32.xlu0 %v3178, 55
      %v3187 = vpop.permute.xlu0 %3186
      %v3188 = vrot.slane %v3183, 4
      %v3189 = vrot.slane %v3185, 4
      %v3190 = vrot.slane %v3187, 4
      %v3191 = vsel %vm386, %v3188, %v3189
      %v3192 = vsel %vm384, %v3183, %v3191
      %v3193 = vsel %vm386, %v3189, %v3190
      %v3194 = vsel %vm384, %v3185, %v3193
      %3197 = vst [vmem:[#allocation3 + $0x80] sm:$0xff] %v3192
      %3198 = vst [vmem:[#allocation3 + $0x88] sm:$0xff] %v3194
      %s3199 = scalar_lea.vmem %s5, 8
      %v3200 = vld [vmem:[%s3199] sm:$0xf]
      %v3201 = vld [vmem:[#allocation3] sm:$0xff]
      %v3202 = vld [vmem:[#allocation3 + $0x8] sm:$0xff]
      %v3203 = vld [vmem:[#allocation3 + $0x10] sm:$0xff]
      %v3204 = vld [vmem:[#allocation3 + $0x18] sm:$0xff]
      %v3205 = vld [vmem:[#allocation3 + $0x20] sm:$0xff]
      %v3206 = vld [vmem:[#allocation3 + $0x28] sm:$0xff]
      %v3207 = vld [vmem:[#allocation3 + $0x30] sm:$0xff]
      %v3208 = vld [vmem:[#allocation3 + $0x38] sm:$0xff]
      %v3209 = vld [vmem:[#allocation3 + $0x40] sm:$0xff]
      %v3210 = vld [vmem:[#allocation3 + $0x48] sm:$0xff]
      %v3211 = vld [vmem:[#allocation3 + $0x50] sm:$0xff]
      %v3212 = vld [vmem:[#allocation3 + $0x58] sm:$0xff]
      %v3213 = vld [vmem:[#allocation3 + $0x60] sm:$0xff]
      %v3214 = vld [vmem:[#allocation3 + $0x68] sm:$0xff]
      %v3215 = vld [vmem:[#allocation3 + $0x70] sm:$0xff]
      %v3216 = vld [vmem:[#allocation3 + $0x78] sm:$0xff]
      %v3217 = vld [vmem:[#allocation3 + $0x80] sm:$0xff]
      %v3218 = vld [vmem:[#allocation3 + $0x88] sm:$0xff]
      %v3237 = vunpack.c.l.b16 %v3201
      %v3238 = vunpack.c.h.b16 %v3201
      %v3239 = vunpack.c.l.b16 %v3202
      %v3240 = vunpack.c.h.b16 %v3202
      %v3241 = vunpack.c.l.b16 %v3203
      %v3242 = vunpack.c.h.b16 %v3203
      %v3243 = vunpack.c.l.b16 %v3204
      %v3244 = vunpack.c.h.b16 %v3204
      %v3245 = vunpack.c.l.b16 %v3205
      %v3246 = vunpack.c.h.b16 %v3205
      %v3247 = vunpack.c.l.b16 %v3206
      %v3248 = vunpack.c.h.b16 %v3206
      %v3249 = vunpack.c.l.b16 %v3207
      %v3250 = vunpack.c.h.b16 %v3207
      %v3251 = vunpack.c.l.b16 %v3208
      %v3252 = vunpack.c.h.b16 %v3208
      %v3253 = vunpack.c.l.b16 %v3209
      %v3254 = vunpack.c.h.b16 %v3209
      %v3255 = vunpack.c.l.b16 %v3210
      %v3256 = vunpack.c.h.b16 %v3210
      %v3257 = vunpack.c.l.b16 %v3211
      %v3258 = vunpack.c.h.b16 %v3211
      %v3259 = vunpack.c.l.b16 %v3212
      %v3260 = vunpack.c.h.b16 %v3212
      %v3261 = vunpack.c.l.b16 %v3213
      %v3262 = vunpack.c.h.b16 %v3213
      %v3263 = vunpack.c.l.b16 %v3214
      %v3264 = vunpack.c.h.b16 %v3214
      %v3265 = vunpack.c.l.b16 %v3215
      %v3266 = vunpack.c.h.b16 %v3215
      %v3267 = vunpack.c.l.b16 %v3216
      %v3268 = vunpack.c.h.b16 %v3216
      %v3269 = vunpack.c.l.b16 %v3217
      %v3270 = vunpack.c.h.b16 %v3217
      %v3271 = vunpack.c.l.b16 %v3218
      %v3272 = vunpack.c.h.b16 %v3218
      %v3273 = vpack.c.b16 %v3241, %v3237
      %v3274 = vpack.c.b16 %v3242, %v3238
      %v3275 = vpack.c.b16 %v3243, %v3239
      %v3276 = vpack.c.b16 %v3244, %v3240
      %v3277 = vpack.c.b16 %v3249, %v3245
      %v3278 = vpack.c.b16 %v3250, %v3246
      %v3279 = vpack.c.b16 %v3251, %v3247
      %v3280 = vpack.c.b16 %v3252, %v3248
      %v3281 = vpack.c.b16 %v3257, %v3253
      %v3282 = vpack.c.b16 %v3258, %v3254
      %v3283 = vpack.c.b16 %v3259, %v3255
      %v3284 = vpack.c.b16 %v3260, %v3256
      %v3285 = vpack.c.b16 %v3265, %v3261
      %v3286 = vpack.c.b16 %v3266, %v3262
      %v3287 = vpack.c.b16 %v3267, %v3263
      %v3288 = vpack.c.b16 %v3268, %v3264
      %v3289 = vpack.c.b16 %v3269, %v3269
      %v3290 = vpack.c.b16 %v3270, %v3270
      %v3291 = vpack.c.b16 %v3271, %v3271
      %v3292 = vpack.c.b16 %v3272, %v3272
      %v3310 = vsel %vm1332, %v3200, 0
      %v3313 = vsel %vm1336, %v3289, 0
      %v3316 = vsel %vm1336, %v3290, 0
      %v3319 = vsel %vm1336, %v3291, 0
      %v3322 = vsel %vm1336, %v3292, 0
      %3324 = vmatprep.subr.bf16.mxu0 %v3274
      %3325 = vmatpush1.bf16.msra.mxu0 %v3273
      %3326 = vmatprep.subr.bf16.mxu0 %v3278
      %3327 = vmatpush1.bf16.msra.mxu0 %v3277
      %3328 = vmatprep.subr.bf16.mxu0 %v3282
      %3329 = vmatpush1.bf16.msra.mxu0 %v3281
      %3330 = vmatprep.subr.bf16.mxu0 %v3286
      %3331 = vmatpush1.bf16.msra.mxu0 %v3285
      %3332 = vmatprep.subr.bf16.mxu0 %v3316
      %3333 = vmatpush1.bf16.msra.mxu0 %v3313
      %3334 = vmatprep.subr.bf16.mxu0 0
      %3335 = vmatpush1.bf16.msra.mxu0 0
      %3336 = vmatprep.subr.bf16.mxu0 0
      %3337 = vmatpush1.bf16.msra.mxu0 0
      %3338 = vmatprep.subr.bf16.mxu0 0
      %3339 = vmatpush1.bf16.msra.mxu0 0
      %3340 = vmatprep.subr.bf16.mxu0 0
      %3341 = vmatpush1.bf16.msra.mxu0 0
      %3342 = vmatprep.subr.bf16.mxu0 0
      %3343 = vmatpush1.bf16.msra.mxu0 0
      %3344 = vmatprep.subr.bf16.mxu0 0
      %3345 = vmatpush1.bf16.msra.mxu0 0
      %3346 = vmatprep.subr.bf16.mxu0 0
      %3347 = vmatpush1.bf16.msra.mxu0 0
      %3348 = vmatprep.subr.bf16.mxu0 0
      %3349 = vmatpush1.bf16.msra.mxu0 0
      %3350 = vmatprep.subr.bf16.mxu0 0
      %3351 = vmatpush1.bf16.msra.mxu0 0
      %3352 = vmatprep.subr.bf16.mxu0 0
      %3353 = vmatpush1.bf16.msra.mxu0 0
      %3354 = vmatprep.subr.bf16.mxu0 0
      %3355 = vmatpush1.bf16.msra.mxu0 0
      %3356 = vmatprep.mubr.bf16.mxu0 0
      %3357 = vmatmul.mubr.bf16.gmra.mrb[0].mxu0 %v3310
      %v3358 = vpop.f32.mrb[0].mxu0
      %v3359 = vadd.f32 0.0, %v3358
      %v3360 = vpop.f32.mrb[0].mxu0
      %v3361 = vadd.f32 0.0, %v3360
      %v3362 = vpop.f32.mrb[0].mxu0
      %v3363 = vpop.f32.mrb[0].mxu0
      %3364 = vdwg.mxu0
      %3365 = vmatprep.subr.bf16.mxu0 %v3276
      %3366 = vmatpush1.bf16.msra.mxu0 %v3275
      %3367 = vmatprep.subr.bf16.mxu0 %v3280
      %3368 = vmatpush1.bf16.msra.mxu0 %v3279
      %3369 = vmatprep.subr.bf16.mxu0 %v3284
      %3370 = vmatpush1.bf16.msra.mxu0 %v3283
      %3371 = vmatprep.subr.bf16.mxu0 %v3288
      %3372 = vmatpush1.bf16.msra.mxu0 %v3287
      %3373 = vmatprep.subr.bf16.mxu0 %v3322
      %3374 = vmatpush1.bf16.msra.mxu0 %v3319
      %3375 = vmatprep.subr.bf16.mxu0 0
      %3376 = vmatpush1.bf16.msra.mxu0 0
      %3377 = vmatprep.subr.bf16.mxu0 0
      %3378 = vmatpush1.bf16.msra.mxu0 0
      %3379 = vmatprep.subr.bf16.mxu0 0
      %3380 = vmatpush1.bf16.msra.mxu0 0
      %3381 = vmatprep.subr.bf16.mxu0 0
      %3382 = vmatpush1.bf16.msra.mxu0 0
      %3383 = vmatprep.subr.bf16.mxu0 0
      %3384 = vmatpush1.bf16.msra.mxu0 0
      %3385 = vmatprep.subr.bf16.mxu0 0
      %3386 = vmatpush1.bf16.msra.mxu0 0
      %3387 = vmatprep.subr.bf16.mxu0 0
      %3388 = vmatpush1.bf16.msra.mxu0 0
      %3389 = vmatprep.subr.bf16.mxu0 0
      %3390 = vmatpush1.bf16.msra.mxu0 0
      %3391 = vmatprep.subr.bf16.mxu0 0
      %3392 = vmatpush1.bf16.msra.mxu0 0
      %3393 = vmatprep.subr.bf16.mxu0 0
      %3394 = vmatpush1.bf16.msra.mxu0 0
      %3395 = vmatprep.subr.bf16.mxu0 0
      %3396 = vmatpush1.bf16.msra.mxu0 0
      %3397 = vmatprep.mubr.bf16.mxu0 0
      %3398 = vmatmul.mubr.bf16.gmra.mrb[0].mxu0 %v3310
      %v3399 = vpop.f32.mrb[0].mxu0
      %v3400 = vadd.f32 0.0, %v3399
      %v3401 = vpop.f32.mrb[0].mxu0
      %v3402 = vadd.f32 0.0, %v3401
      %v3403 = vpop.f32.mrb[0].mxu0
      %v3404 = vpop.f32.mrb[0].mxu0
      %3405 = vdwg.mxu0
      %v3406 = vadd.f32 %v2921, %v3359
      %v3407 = vadd.f32 %v2923, %v3361
      %v3408 = vadd.f32 %v2962, %v3400
      %v3409 = vadd.f32 %v2964, %v3402
      %v3410 = vld [vmem:[%s6] sm:$0xff]
      %3412 = vset.pattern.permute.xlu0 0
      %3413 = vperm.xlu0 %3412, %v3410
      %v3414 = vpop.permute.xlu0 %3413
      %v3416 = vmul.f32 %v3406, %v3414
      %v3417 = vmul.f32 %v3407, %v3414
      %v3418 = vmul.f32 %v3408, %v3414
      %v3419 = vmul.f32 %v3409, %v3414
      %v3420 = vld [vmem:[%s7] sm:$0xff]
      %3422 = vset.pattern.permute.xlu0 0
      %3423 = vperm.xlu0 %3422, %v3420
      %v3424 = vpop.permute.xlu0 %3423
      %v3426 = vadd.f32 %v3416, %v3424
      %v3427 = vadd.f32 %v3417, %v3424
      %v3428 = vadd.f32 %v3418, %v3424
      %v3429 = vadd.f32 %v3419, %v3424
      %vm3430 = vcmp.gt.f32.partialorder %v3426, 0.0
      %vm3431 = vcmp.gt.f32.partialorder %v3427, 0.0
      %vm3432 = vcmp.gt.f32.partialorder %v3428, 0.0
      %vm3433 = vcmp.gt.f32.partialorder %v3429, 0.0
      %v3434 = vmul.f32 %v3426, 0.01
      %v3435 = vmul.f32 %v3427, 0.01
      %v3436 = vmul.f32 %v3428, 0.01
      %v3437 = vmul.f32 %v3429, 0.01
      %v3438 = vsel %vm3430, %v3426, %v3434
      %v3439 = vsel %vm3431, %v3427, %v3435
      %v3440 = vsel %vm3432, %v3428, %v3436
      %v3441 = vsel %vm3433, %v3429, %v3437
      %3442 = vst [vmem:[%s305] sm:$0xff] %v3438
      %3443 = vst [vmem:[%s305 + $0x8] sm:$0xff] %v3439
      %3444 = vst [vmem:[%s305 + $0x10] sm:$0xff] %v3440
      %3445 = vst [vmem:[%s305 + $0x18] sm:$0xff] %v3441
      %p3446 = scmp.lt.s32.totalorder %s19, 1
      %s3447 = scalar_select %p3446, %s19, 1
      %s3448 = smul.addr %s3447, 4
      %s3449 = smul.addr %s3448, 8
      %s3450 = scalar_lea.vmem %s8, %s3449
      // Predicated region
      $region53: #{conv_block_forward.1} parent=51 // pred_check
        %p3451 = pneg %p210
      $region54: #{conv_block_forward.1} parent=51 // pred_check_branch
        %3453 = sbr.rel (%p3451) target = $region56
      $region55: #{conv_block_forward.1} parent=51 // pred_region
        _
      $region56: #{conv_block_forward.1} parent=51 // pred_fallthru
        _
    $region52: #{conv_block_forward.1} parent=5 // pred_fallthru
      _
    %p3454 = scmp.le.s32.totalorder 2, %s14
    // Predicated region
    $region57: #{conv_block_forward.1} parent=5 // pred_check
      %p3455 = pneg %p3454
    $region58: #{conv_block_forward.1} parent=5 // pred_check_branch
      %3457 = sbr.rel (%p3455) target = $region60
    $region59: #{conv_block_forward.1} parent=5 // pred_region
      %s3458 = ssub.s32 %s14, 2
      // Predicated region
      $region61: #{conv_block_forward.1} parent=59 // pred_check
        %p3459 = pneg %p216
      $region62: #{conv_block_forward.1} parent=59 // pred_check_branch
        %3461 = sbr.rel (%p3459) target = $region64
      $region63: #{conv_block_forward.1} parent=59 // pred_region
        %p3462 = scmp.lt.s32.totalorder %s20, 1
        %s3463 = scalar_select %p3462, %s20, 1
        %s3464 = smul.addr %s3463, 4
        %s3465 = smul.addr %s3464, 8
        %s3466 = scalar_lea.vmem %s8, %s3465
      $region64: #{conv_block_forward.1} parent=59 // pred_fallthru
        _
    $region60: #{conv_block_forward.1} parent=5 // pred_fallthru
      _
  $region6: #{conv_block_forward.1} parent=0 // loop_footer
    %s18 = sadd.s32 1, %s14
  $region7: #{conv_block_forward.1} parent=0 // loop_footer_branch
    %13 = sbr.rel target = $region3
  $region8: #{conv_block_forward.1} parent=0 // loop_exit
    _

</llo_original>
